<compile_context>
chip_gen: v5e
topology: v5e:2x2
jax: 0.10.0
libtpu: 0.0.40
codegen_flags: <defaults>
</compile_context>

<pallas_src>
import functools

import jax
import jax.numpy as jnp
from jax.experimental import pallas as pl
from jax.experimental.pallas import tpu as pltpu


PARAM_NAMES = ("w1", "b1", "w2", "b2", "w3", "b3")


# ----------------------------------------------------------------------------
# Pallas kernels
# ----------------------------------------------------------------------------
def _dual_encoder_kernel(x_ref,
                         wq1_ref, bq1_ref, wq2_ref, bq2_ref, wq3_ref, bq3_ref,
                         wk1_ref, bk1_ref, wk2_ref, bk2_ref, wk3_ref, bk3_ref,
                         emb_ref,
                         wk1_out, bk1_out, wk2_out, bk2_out, wk3_out, bk3_out,
                         *, momentum):
    """Grid=(2,): branch 0 = query encoder (params_q), branch 1 = key encoder.

    The key-encoder momentum EMA is fused here: updated key params are both
    written out and used (only) by the key branch, matching the torch order
    (momentum update happens before encoder_k forward).
    """
    m = jnp.float32(momentum)
    # 0.0 for the query branch, 1.0 for the key branch.
    branch_f = pl.program_id(0).astype(jnp.float32)
    key_scale = branch_f * m

    def ema_and_select(q_ref_, k_ref_, out_ref_):
        pq = q_ref_[...]
        d = k_ref_[...] - pq
        out_ref_[...] = pq + m * d          # EMA-updated key parameter (f32)
        return pq + key_scale * d           # effective parameter for branch

    w1 = ema_and_select(wq1_ref, wk1_ref, wk1_out)
    b1 = ema_and_select(bq1_ref, bk1_ref, bk1_out)
    w2 = ema_and_select(wq2_ref, wk2_ref, wk2_out)
    b2 = ema_and_select(bq2_ref, bk2_ref, bk2_out)
    w3 = ema_and_select(wq3_ref, wk3_ref, wk3_out)
    b3 = ema_and_select(bq3_ref, bk3_ref, bk3_out)

    x = x_ref[0]                            # (N, Din), f32
    # bf16 MXU inputs, f32 accumulation; elementwise math stays f32.
    h1 = jnp.dot(x.astype(jnp.bfloat16), w1.astype(jnp.bfloat16),
                 preferred_element_type=jnp.float32) + b1
    h1 = jnp.maximum(h1, 0.0)
    h2 = jnp.dot(h1.astype(jnp.bfloat16), w2.astype(jnp.bfloat16),
                 preferred_element_type=jnp.float32) + b2
    h2 = jnp.maximum(h2, 0.0)
    z = jnp.dot(h2.astype(jnp.bfloat16), w3.astype(jnp.bfloat16),
                preferred_element_type=jnp.float32) + b3

    # torch.nn.functional.normalize(z, dim=1): z / max(||z||_2, 1e-12)
    sumsq = jnp.sum(z * z, axis=-1, keepdims=True)
    emb_ref[0] = z * jax.lax.rsqrt(jnp.maximum(sumsq, 1e-24))


def _logits_kernel(q_ref, k_ref, queue_ref, pos_ref, neg_ref):
    """pos = einsum('nc,nc->n'); neg = einsum('nc,ck->nk'), klen-tiled.

    pos is written as a lane-dense (N, 128) block (value broadcast across the
    lanes; the wrapper slices column 0) so no masked vst.msk stores occur.
    """
    q = q_ref[...]

    @pl.when(pl.program_id(0) == 0)
    def _():
        pos = jnp.sum(q * k_ref[...], axis=-1, keepdims=True)   # f32, exact
        pos_ref[...] = jnp.broadcast_to(pos, pos_ref.shape)

    neg_ref[...] = jnp.dot(q.astype(jnp.bfloat16),
                           queue_ref[...].astype(jnp.bfloat16),
                           preferred_element_type=jnp.float32)


# ----------------------------------------------------------------------------
# Wrappers
# ----------------------------------------------------------------------------
def _const_spec(shape):
    """Full-array block, same block for every grid step (stays VMEM-resident)."""
    return pl.BlockSpec(shape, lambda *_: (0,) * len(shape))


def dual_encoder_forward(x_stacked, params_q, params_k, momentum):
    """x_stacked: (2, N, Din).  Returns (q_emb, k_emb, params_k_new)."""
    _, n, d_in = x_stacked.shape
    feat = params_q["w3"].shape[1]

    pq = [params_q[name] for name in PARAM_NAMES]
    pk = [params_k[name] for name in PARAM_NAMES]

    out_shape = ((jax.ShapeDtypeStruct((2, n, feat), jnp.float32),)
                 + tuple(jax.ShapeDtypeStruct(p.shape, p.dtype) for p in pk))
    out_specs = ((pl.BlockSpec((1, n, feat), lambda b: (b, 0, 0)),)
                 + tuple(_const_spec(p.shape) for p in pk))

    # TODO(synk): at realistic backbone sizes (Din ~150K, hidden 2048) w1 does
    # not fit a single VMEM block; tile (N, Dout, Din) with a f32 VMEM
    # accumulator and pl.when init/finalize on the K axis, and size blocks for
    # v7x's 64 MiB VMEM.  Branch axis left "arbitrary" because the updated key
    # params share one output block across both grid steps.
    outs = pl.pallas_call(
        functools.partial(_dual_encoder_kernel, momentum=momentum),
        out_shape=out_shape,
        grid=(2,),
        in_specs=[pl.BlockSpec((1, n, d_in), lambda b: (b, 0, 0))]
                 + [_const_spec(p.shape) for p in pq]
                 + [_const_spec(p.shape) for p in pk],
        out_specs=out_specs,
        compiler_params=pltpu.CompilerParams(
            dimension_semantics=("arbitrary",)),
    )(x_stacked, *pq, *pk)

    emb = outs[0]
    params_k_new = dict(zip(PARAM_NAMES, outs[1:]))
    return emb[0], emb[1], params_k_new


def _pick_queue_tile(klen):
    """Largest lane-dense column tile that divides the queue length."""
    for t in (2048, 1024, 512, 256, 128):
        if klen % t == 0:
            return t
    return klen


def compute_logits(q_emb, k_emb, queue):
    """Returns pos (N,1) and neg (N, klen) logits."""
    n, d = q_emb.shape
    klen = queue.shape[1]
    tile_k = _pick_queue_tile(klen)

    pos_wide, neg = pl.pallas_call(
        _logits_kernel,
        out_shape=(jax.ShapeDtypeStruct((n, 128), jnp.float32),
                   jax.ShapeDtypeStruct((n, klen), jnp.float32)),
        grid=(klen // tile_k,),
        in_specs=[pl.BlockSpec((n, d), lambda j: (0, 0)),
                  pl.BlockSpec((n, d), lambda j: (0, 0)),
                  pl.BlockSpec((d, tile_k), lambda j: (0, j))],
        out_specs=(pl.BlockSpec((n, 128), lambda j: (0, 0)),
                   pl.BlockSpec((n, tile_k), lambda j: (0, j))),
        compiler_params=pltpu.CompilerParams(
            dimension_semantics=("arbitrary",)),
    )(q_emb, k_emb, queue)

    return pos_wide[:, :1], neg


# ----------------------------------------------------------------------------
# MoCo forward (glue in plain JAX, jitted with the queue donated)
# ----------------------------------------------------------------------------
def moco_forward(query_img, key_img, params_q, params_k, queue, queue_ptr,
                 momentum=0.999):
    n = query_img.shape[0]
    queue_len = queue.shape[1]
    assert queue_len % n == 0, "queue_len must be a multiple of the batch size"

    # flatten NCHW -> (N, C*H*W), stack query/key along a branch axis
    q_flat = query_img.reshape(n, -1)
    k_flat = key_img.reshape(n, -1)
    x_stacked = jnp.stack([q_flat, k_flat], axis=0)

    # TODO(synk): concat_all_gather / _batch_shuffle_ddp / _batch_unshuffle_ddp
    # rely on torch.distributed; for world_size == 1 they are identities on the
    # returned key embeddings (a multi-chip version needs remote DMA).
    query_embedding, key_embedding, params_k_new = dual_encoder_forward(
        x_stacked, params_q, params_k, momentum)

    pos_logits, neg_logits = compute_logits(query_embedding, key_embedding, queue)

    # _dequeue_and_enqueue: with the queue donated at the jit boundary this
    # dynamic_update_slice is performed in place (only the N new columns are
    # written) instead of copying the whole (feat_dim, queue_len) buffer.
    keys_t = key_embedding.T                       # (feat_dim, N)
    queue_new = jax.lax.dynamic_update_slice(
        queue, keys_t, (jnp.int32(0), queue_ptr))
    queue_ptr_new = (queue_ptr + n) % queue_len

    return pos_logits, neg_logits, params_k_new, queue_new, queue_ptr_new


# momentum (arg 6) is static; the queue (arg 4) is donated for in-place enqueue.
moco_step = jax.jit(moco_forward, static_argnums=(6,), donate_argnums=(4,))


# ----------------------------------------------------------------------------
# Deterministic parameter construction
# ----------------------------------------------------------------------------
def init_encoder_params(key, d_in, hidden, feat_dim):
    k1, k2, k3 = jax.random.split(key, 3)
    return {
        "w1": 0.02 * jax.random.normal(k1, (d_in, hidden), jnp.float32),
        "b1": jnp.zeros((1, hidden), jnp.float32),
        "w2": 0.02 * jax.random.normal(k2, (hidden, hidden), jnp.float32),
        "b2": jnp.zeros((1, hidden), jnp.float32),
        "w3": 0.02 * jax.random.normal(k3, (hidden, feat_dim), jnp.float32),
        "b3": jnp.zeros((1, feat_dim), jnp.float32),
    }


if __name__ == "__main__":
    # Small shapes consistent with the module's forward; all matmul dims are
    # multiples of 128 and feat_dim is MoCo's canonical 128.
    N, C, H, W = 8, 4, 16, 16                      # Din = 1024
    HIDDEN, FEAT_DIM, QUEUE_LEN = 128, 128, 256    # queue_len % batch == 0
    MOMENTUM = 0.999

    root = jax.random.PRNGKey(0)
    k_img_q, k_img_k, k_enc, k_queue = jax.random.split(root, 4)

    query_img = jax.random.normal(k_img_q, (N, C, H, W), jnp.float32)
    key_img = jax.random.normal(k_img_k, (N, C, H, W), jnp.float32)

    params_q = init_encoder_params(k_enc, C * H * W, HIDDEN, FEAT_DIM)
    # encoder_k is initialized as a copy of encoder_q (param_k.data.copy_)
    params_k = jax.tree_util.tree_map(jnp.copy, params_q)

    # queue: randn(feat_dim, queue_len), normalized along dim=0
    queue = jax.random.normal(k_queue, (FEAT_DIM, QUEUE_LEN), jnp.float32)
    queue = queue * jax.lax.rsqrt(
        jnp.maximum(jnp.sum(queue * queue, axis=0, keepdims=True), 1e-24))
    queue_ptr = jnp.int32(0)

    pos_logits, neg_logits, params_k, queue, queue_ptr = moco_step(
        query_img, key_img, params_q, params_k, queue, queue_ptr, MOMENTUM)

    jax.block_until_ready((pos_logits, neg_logits, queue, queue_ptr))
    assert pos_logits.shape == (N, 1)
    assert neg_logits.shape == (N, QUEUE_LEN)
    assert params_k["w1"].shape == (C * H * W, HIDDEN)
    assert queue.shape == (FEAT_DIM, QUEUE_LEN)
    assert bool(jnp.all(jnp.isfinite(pos_logits)))
    assert bool(jnp.all(jnp.isfinite(neg_logits)))
    print("KERNEL_OK")
</pallas_src>

<mosaic_0001>
module attributes {stable_mosaic.version = 11 : i64} {
  func.func @_dual_encoder_kernel(%arg0: i32, %arg1: memref<1x8x1024xf32, #tpu.memory_space<vmem>>, %arg2: memref<1024x128xf32, #tpu.memory_space<vmem>>, %arg3: memref<1x128xf32, #tpu.memory_space<vmem>>, %arg4: memref<128x128xf32, #tpu.memory_space<vmem>>, %arg5: memref<1x128xf32, #tpu.memory_space<vmem>>, %arg6: memref<128x128xf32, #tpu.memory_space<vmem>>, %arg7: memref<1x128xf32, #tpu.memory_space<vmem>>, %arg8: memref<1024x128xf32, #tpu.memory_space<vmem>>, %arg9: memref<1x128xf32, #tpu.memory_space<vmem>>, %arg10: memref<128x128xf32, #tpu.memory_space<vmem>>, %arg11: memref<1x128xf32, #tpu.memory_space<vmem>>, %arg12: memref<128x128xf32, #tpu.memory_space<vmem>>, %arg13: memref<1x128xf32, #tpu.memory_space<vmem>>, %arg14: memref<1x8x128xf32, #tpu.memory_space<vmem>>, %arg15: memref<1024x128xf32, #tpu.memory_space<vmem>>, %arg16: memref<1x128xf32, #tpu.memory_space<vmem>>, %arg17: memref<128x128xf32, #tpu.memory_space<vmem>>, %arg18: memref<1x128xf32, #tpu.memory_space<vmem>>, %arg19: memref<128x128xf32, #tpu.memory_space<vmem>>, %arg20: memref<1x128xf32, #tpu.memory_space<vmem>>) attributes {dimension_semantics = [#tpu.dimension_semantics<arbitrary>], iteration_bounds = array<i64: 2>, scalar_prefetch = 0 : i64, scratch_operands = 0 : i64, tpu.core_type = #tpu.core_type<tc>, window_params = [{transform_indices = @transform_0, window_bounds = array<i64: 1, 8, 1024>}, {pipeline_mode = #tpu.pipeline_mode<synchronous>, transform_indices = @transform_1, window_bounds = array<i64: 1024, 128>}, {pipeline_mode = #tpu.pipeline_mode<synchronous>, transform_indices = @transform_2, window_bounds = array<i64: 1, 128>}, {pipeline_mode = #tpu.pipeline_mode<synchronous>, transform_indices = @transform_3, window_bounds = array<i64: 128, 128>}, {pipeline_mode = #tpu.pipeline_mode<synchronous>, transform_indices = @transform_4, window_bounds = array<i64: 1, 128>}, {pipeline_mode = #tpu.pipeline_mode<synchronous>, transform_indices = @transform_5, window_bounds = array<i64: 128, 128>}, {pipeline_mode = #tpu.pipeline_mode<synchronous>, transform_indices = @transform_6, window_bounds = array<i64: 1, 128>}, {pipeline_mode = #tpu.pipeline_mode<synchronous>, transform_indices = @transform_7, window_bounds = array<i64: 1024, 128>}, {pipeline_mode = #tpu.pipeline_mode<synchronous>, transform_indices = @transform_8, window_bounds = array<i64: 1, 128>}, {pipeline_mode = #tpu.pipeline_mode<synchronous>, transform_indices = @transform_9, window_bounds = array<i64: 128, 128>}, {pipeline_mode = #tpu.pipeline_mode<synchronous>, transform_indices = @transform_10, window_bounds = array<i64: 1, 128>}, {pipeline_mode = #tpu.pipeline_mode<synchronous>, transform_indices = @transform_11, window_bounds = array<i64: 128, 128>}, {pipeline_mode = #tpu.pipeline_mode<synchronous>, transform_indices = @transform_12, window_bounds = array<i64: 1, 128>}, {transform_indices = @transform_13, window_bounds = array<i64: 1, 8, 128>}, {pipeline_mode = #tpu.pipeline_mode<synchronous>, transform_indices = @transform_14, window_bounds = array<i64: 1024, 128>}, {pipeline_mode = #tpu.pipeline_mode<synchronous>, transform_indices = @transform_15, window_bounds = array<i64: 1, 128>}, {pipeline_mode = #tpu.pipeline_mode<synchronous>, transform_indices = @transform_16, window_bounds = array<i64: 128, 128>}, {pipeline_mode = #tpu.pipeline_mode<synchronous>, transform_indices = @transform_17, window_bounds = array<i64: 1, 128>}, {pipeline_mode = #tpu.pipeline_mode<synchronous>, transform_indices = @transform_18, window_bounds = array<i64: 128, 128>}, {pipeline_mode = #tpu.pipeline_mode<synchronous>, transform_indices = @transform_19, window_bounds = array<i64: 1, 128>}]} {
    %0 = arith.sitofp %arg0 : i32 to f32
    %cst = arith.constant 9.990000e-01 : f32
    %1 = arith.mulf %0, %cst : f32
    %c0 = arith.constant 0 : index
    %c0_0 = arith.constant 0 : index
    %2 = vector.load %arg2[%c0, %c0_0] : memref<1024x128xf32, #tpu.memory_space<vmem>>, vector<1024x128xf32>
    %c0_1 = arith.constant 0 : index
    %c0_2 = arith.constant 0 : index
    %3 = vector.load %arg8[%c0_1, %c0_2] : memref<1024x128xf32, #tpu.memory_space<vmem>>, vector<1024x128xf32>
    %4 = arith.subf %3, %2 : vector<1024x128xf32>
    %cst_3 = arith.constant 9.990000e-01 : f32
    %5 = vector.broadcast %cst_3 : f32 to vector<1024x128xf32>
    %6 = arith.mulf %5, %4 : vector<1024x128xf32>
    %7 = arith.addf %2, %6 : vector<1024x128xf32>
    %c0_4 = arith.constant 0 : index
    %c0_5 = arith.constant 0 : index
    %8 = vector.load %arg15[%c0_4, %c0_5] : memref<1024x128xf32, #tpu.memory_space<vmem>>, vector<1024x128xf32>
    tpu.vector_store %arg15[%c0_4, %c0_5], %7 {strides = array<i32>} : memref<1024x128xf32, #tpu.memory_space<vmem>>, vector<1024x128xf32>,
    %9 = vector.broadcast %1 : f32 to vector<1024x128xf32>
    %10 = arith.mulf %9, %4 : vector<1024x128xf32>
    %11 = arith.addf %2, %10 : vector<1024x128xf32>
    %c0_6 = arith.constant 0 : index
    %c0_7 = arith.constant 0 : index
    %12 = vector.load %arg3[%c0_6, %c0_7] : memref<1x128xf32, #tpu.memory_space<vmem>>, vector<1x128xf32>
    %c0_8 = arith.constant 0 : index
    %c0_9 = arith.constant 0 : index
    %13 = vector.load %arg9[%c0_8, %c0_9] : memref<1x128xf32, #tpu.memory_space<vmem>>, vector<1x128xf32>
    %14 = arith.subf %13, %12 : vector<1x128xf32>
    %cst_10 = arith.constant 9.990000e-01 : f32
    %15 = vector.broadcast %cst_10 : f32 to vector<1x128xf32>
    %16 = arith.mulf %15, %14 : vector<1x128xf32>
    %17 = arith.addf %12, %16 : vector<1x128xf32>
    %c0_11 = arith.constant 0 : index
    %c0_12 = arith.constant 0 : index
    %18 = vector.load %arg16[%c0_11, %c0_12] : memref<1x128xf32, #tpu.memory_space<vmem>>, vector<1x128xf32>
    tpu.vector_store %arg16[%c0_11, %c0_12], %17 {strides = array<i32>} : memref<1x128xf32, #tpu.memory_space<vmem>>, vector<1x128xf32>,
    %19 = vector.broadcast %1 : f32 to vector<1x128xf32>
    %20 = arith.mulf %19, %14 : vector<1x128xf32>
    %21 = arith.addf %12, %20 : vector<1x128xf32>
    %c0_13 = arith.constant 0 : index
    %c0_14 = arith.constant 0 : index
    %22 = vector.load %arg4[%c0_13, %c0_14] : memref<128x128xf32, #tpu.memory_space<vmem>>, vector<128x128xf32>
    %c0_15 = arith.constant 0 : index
    %c0_16 = arith.constant 0 : index
    %23 = vector.load %arg10[%c0_15, %c0_16] : memref<128x128xf32, #tpu.memory_space<vmem>>, vector<128x128xf32>
    %24 = arith.subf %23, %22 : vector<128x128xf32>
    %cst_17 = arith.constant 9.990000e-01 : f32
    %25 = vector.broadcast %cst_17 : f32 to vector<128x128xf32>
    %26 = arith.mulf %25, %24 : vector<128x128xf32>
    %27 = arith.addf %22, %26 : vector<128x128xf32>
    %c0_18 = arith.constant 0 : index
    %c0_19 = arith.constant 0 : index
    %28 = vector.load %arg17[%c0_18, %c0_19] : memref<128x128xf32, #tpu.memory_space<vmem>>, vector<128x128xf32>
    tpu.vector_store %arg17[%c0_18, %c0_19], %27 {strides = array<i32>} : memref<128x128xf32, #tpu.memory_space<vmem>>, vector<128x128xf32>,
    %29 = vector.broadcast %1 : f32 to vector<128x128xf32>
    %30 = arith.mulf %29, %24 : vector<128x128xf32>
    %31 = arith.addf %22, %30 : vector<128x128xf32>
    %c0_20 = arith.constant 0 : index
    %c0_21 = arith.constant 0 : index
    %32 = vector.load %arg5[%c0_20, %c0_21] : memref<1x128xf32, #tpu.memory_space<vmem>>, vector<1x128xf32>
    %c0_22 = arith.constant 0 : index
    %c0_23 = arith.constant 0 : index
    %33 = vector.load %arg11[%c0_22, %c0_23] : memref<1x128xf32, #tpu.memory_space<vmem>>, vector<1x128xf32>
    %34 = arith.subf %33, %32 : vector<1x128xf32>
    %cst_24 = arith.constant 9.990000e-01 : f32
    %35 = vector.broadcast %cst_24 : f32 to vector<1x128xf32>
    %36 = arith.mulf %35, %34 : vector<1x128xf32>
    %37 = arith.addf %32, %36 : vector<1x128xf32>
    %c0_25 = arith.constant 0 : index
    %c0_26 = arith.constant 0 : index
    %38 = vector.load %arg18[%c0_25, %c0_26] : memref<1x128xf32, #tpu.memory_space<vmem>>, vector<1x128xf32>
    tpu.vector_store %arg18[%c0_25, %c0_26], %37 {strides = array<i32>} : memref<1x128xf32, #tpu.memory_space<vmem>>, vector<1x128xf32>,
    %39 = vector.broadcast %1 : f32 to vector<1x128xf32>
    %40 = arith.mulf %39, %34 : vector<1x128xf32>
    %41 = arith.addf %32, %40 : vector<1x128xf32>
    %c0_27 = arith.constant 0 : index
    %c0_28 = arith.constant 0 : index
    %42 = vector.load %arg6[%c0_27, %c0_28] : memref<128x128xf32, #tpu.memory_space<vmem>>, vector<128x128xf32>
    %c0_29 = arith.constant 0 : index
    %c0_30 = arith.constant 0 : index
    %43 = vector.load %arg12[%c0_29, %c0_30] : memref<128x128xf32, #tpu.memory_space<vmem>>, vector<128x128xf32>
    %44 = arith.subf %43, %42 : vector<128x128xf32>
    %cst_31 = arith.constant 9.990000e-01 : f32
    %45 = vector.broadcast %cst_31 : f32 to vector<128x128xf32>
    %46 = arith.mulf %45, %44 : vector<128x128xf32>
    %47 = arith.addf %42, %46 : vector<128x128xf32>
    %c0_32 = arith.constant 0 : index
    %c0_33 = arith.constant 0 : index
    %48 = vector.load %arg19[%c0_32, %c0_33] : memref<128x128xf32, #tpu.memory_space<vmem>>, vector<128x128xf32>
    tpu.vector_store %arg19[%c0_32, %c0_33], %47 {strides = array<i32>} : memref<128x128xf32, #tpu.memory_space<vmem>>, vector<128x128xf32>,
    %49 = vector.broadcast %1 : f32 to vector<128x128xf32>
    %50 = arith.mulf %49, %44 : vector<128x128xf32>
    %51 = arith.addf %42, %50 : vector<128x128xf32>
    %c0_34 = arith.constant 0 : index
    %c0_35 = arith.constant 0 : index
    %52 = vector.load %arg7[%c0_34, %c0_35] : memref<1x128xf32, #tpu.memory_space<vmem>>, vector<1x128xf32>
    %c0_36 = arith.constant 0 : index
    %c0_37 = arith.constant 0 : index
    %53 = vector.load %arg13[%c0_36, %c0_37] : memref<1x128xf32, #tpu.memory_space<vmem>>, vector<1x128xf32>
    %54 = arith.subf %53, %52 : vector<1x128xf32>
    %cst_38 = arith.constant 9.990000e-01 : f32
    %55 = vector.broadcast %cst_38 : f32 to vector<1x128xf32>
    %56 = arith.mulf %55, %54 : vector<1x128xf32>
    %57 = arith.addf %52, %56 : vector<1x128xf32>
    %c0_39 = arith.constant 0 : index
    %c0_40 = arith.constant 0 : index
    %58 = vector.load %arg20[%c0_39, %c0_40] : memref<1x128xf32, #tpu.memory_space<vmem>>, vector<1x128xf32>
    tpu.vector_store %arg20[%c0_39, %c0_40], %57 {strides = array<i32>} : memref<1x128xf32, #tpu.memory_space<vmem>>, vector<1x128xf32>,
    %59 = vector.broadcast %1 : f32 to vector<1x128xf32>
    %60 = arith.mulf %59, %54 : vector<1x128xf32>
    %61 = arith.addf %52, %60 : vector<1x128xf32>
    %c0_41 = arith.constant 0 : index
    %c0_42 = arith.constant 0 : index
    %c0_43 = arith.constant 0 : index
    %62 = vector.load %arg1[%c0_41, %c0_42, %c0_43] : memref<1x8x1024xf32, #tpu.memory_space<vmem>>, vector<1x8x1024xf32>
    %63 = vector.shape_cast %62 : vector<1x8x1024xf32> to vector<8x1024xf32>
    %64 = arith.truncf %63 : vector<8x1024xf32> to vector<8x1024xbf16>
    %65 = arith.truncf %11 : vector<1024x128xf32> to vector<1024x128xbf16>
    %cst_44 = arith.constant dense<0.000000e+00> : vector<8x128xf32>
    %66 = tpu.matmul %64, %65, %cst_44 {dimension_numbers = #tpu.dot_dimension_numbers<[1], [0], [0], [1], [0, 0, 1, 1], [], []>} : vector<8x1024xbf16>, vector<1024x128xbf16>, vector<8x128xf32> -> vector<8x128xf32>
    %67 = vector.broadcast %21 : vector<1x128xf32> to vector<8x128xf32>
    %68 = arith.addf %66, %67 : vector<8x128xf32>
    %cst_45 = arith.constant 0.000000e+00 : f32
    %69 = vector.broadcast %cst_45 : f32 to vector<8x128xf32>
    %70 = arith.maximumf %68, %69 : vector<8x128xf32>
    %71 = arith.truncf %70 : vector<8x128xf32> to vector<8x128xbf16>
    %72 = arith.truncf %31 : vector<128x128xf32> to vector<128x128xbf16>
    %cst_46 = arith.constant dense<0.000000e+00> : vector<8x128xf32>
    %73 = tpu.matmul %71, %72, %cst_46 {dimension_numbers = #tpu.dot_dimension_numbers<[1], [0], [0], [1], [0, 0, 1, 1], [], []>} : vector<8x128xbf16>, vector<128x128xbf16>, vector<8x128xf32> -> vector<8x128xf32>
    %74 = vector.broadcast %41 : vector<1x128xf32> to vector<8x128xf32>
    %75 = arith.addf %73, %74 : vector<8x128xf32>
    %cst_47 = arith.constant 0.000000e+00 : f32
    %76 = vector.broadcast %cst_47 : f32 to vector<8x128xf32>
    %77 = arith.maximumf %75, %76 : vector<8x128xf32>
    %78 = arith.truncf %77 : vector<8x128xf32> to vector<8x128xbf16>
    %79 = arith.truncf %51 : vector<128x128xf32> to vector<128x128xbf16>
    %cst_48 = arith.constant dense<0.000000e+00> : vector<8x128xf32>
    %80 = tpu.matmul %78, %79, %cst_48 {dimension_numbers = #tpu.dot_dimension_numbers<[1], [0], [0], [1], [0, 0, 1, 1], [], []>} : vector<8x128xbf16>, vector<128x128xbf16>, vector<8x128xf32> -> vector<8x128xf32>
    %81 = vector.broadcast %61 : vector<1x128xf32> to vector<8x128xf32>
    %82 = arith.addf %80, %81 : vector<8x128xf32>
    %83 = arith.mulf %82, %82 : vector<8x128xf32>
    %cst_49 = arith.constant dense<0.000000e+00> : vector<8xf32>
    %84 = vector.multi_reduction <add>, %83, %cst_49 [1] : vector<8x128xf32> to vector<8xf32>
    %85 = vector.shape_cast %84 : vector<8xf32> to vector<8x1xf32>
    %cst_50 = arith.constant 1.000000e-24 : f32
    %86 = vector.broadcast %cst_50 : f32 to vector<8x1xf32>
    %87 = arith.maximumf %85, %86 : vector<8x1xf32>
    %88 = math.rsqrt %87 : vector<8x1xf32>
    %89 = vector.broadcast %88 : vector<8x1xf32> to vector<8x128xf32>
    %90 = arith.mulf %82, %89 : vector<8x128xf32>
    %c0_51 = arith.constant 0 : index
    %c0_52 = arith.constant 0 : index
    %c0_53 = arith.constant 0 : index
    %91 = vector.load %arg14[%c0_51, %c0_52, %c0_53] : memref<1x8x128xf32, #tpu.memory_space<vmem>>, vector<1x8x128xf32>
    %92 = vector.shape_cast %91 : vector<1x8x128xf32> to vector<8x128xf32>
    %93 = vector.shape_cast %90 : vector<8x128xf32> to vector<1x8x128xf32>
    tpu.vector_store %arg14[%c0_51, %c0_52, %c0_53], %93 {strides = array<i32>} : memref<1x8x128xf32, #tpu.memory_space<vmem>>, vector<1x8x128xf32>,
    return
  }
  func.func @transform_0(%arg0: i32) -> (i32, i32, i32) {
    %c0_i32 = arith.constant 0 : i32
    %c0_i32_0 = arith.constant 0 : i32
    %c0_i32_1 = arith.constant 0 : i32
    return %arg0, %c0_i32, %c0_i32_0 : i32, i32, i32
  }
  func.func @transform_1(%arg0: i32) -> (i32, i32) {
    %c0_i32 = arith.constant 0 : i32
    %c0_i32_0 = arith.constant 0 : i32
    %c0_i32_1 = arith.constant 0 : i32
    return %c0_i32, %c0_i32_0 : i32, i32
  }
  func.func @transform_2(%arg0: i32) -> (i32, i32) {
    %c0_i32 = arith.constant 0 : i32
    %c0_i32_0 = arith.constant 0 : i32
    %c0_i32_1 = arith.constant 0 : i32
    return %c0_i32, %c0_i32_0 : i32, i32
  }
  func.func @transform_3(%arg0: i32) -> (i32, i32) {
    %c0_i32 = arith.constant 0 : i32
    %c0_i32_0 = arith.constant 0 : i32
    %c0_i32_1 = arith.constant 0 : i32
    return %c0_i32, %c0_i32_0 : i32, i32
  }
  func.func @transform_4(%arg0: i32) -> (i32, i32) {
    %c0_i32 = arith.constant 0 : i32
    %c0_i32_0 = arith.constant 0 : i32
    %c0_i32_1 = arith.constant 0 : i32
    return %c0_i32, %c0_i32_0 : i32, i32
  }
  func.func @transform_5(%arg0: i32) -> (i32, i32) {
    %c0_i32 = arith.constant 0 : i32
    %c0_i32_0 = arith.constant 0 : i32
    %c0_i32_1 = arith.constant 0 : i32
    return %c0_i32, %c0_i32_0 : i32, i32
  }
  func.func @transform_6(%arg0: i32) -> (i32, i32) {
    %c0_i32 = arith.constant 0 : i32
    %c0_i32_0 = arith.constant 0 : i32
    %c0_i32_1 = arith.constant 0 : i32
    return %c0_i32, %c0_i32_0 : i32, i32
  }
  func.func @transform_7(%arg0: i32) -> (i32, i32) {
    %c0_i32 = arith.constant 0 : i32
    %c0_i32_0 = arith.constant 0 : i32
    %c0_i32_1 = arith.constant 0 : i32
    return %c0_i32, %c0_i32_0 : i32, i32
  }
  func.func @transform_8(%arg0: i32) -> (i32, i32) {
    %c0_i32 = arith.constant 0 : i32
    %c0_i32_0 = arith.constant 0 : i32
    %c0_i32_1 = arith.constant 0 : i32
    return %c0_i32, %c0_i32_0 : i32, i32
  }
  func.func @transform_9(%arg0: i32) -> (i32, i32) {
    %c0_i32 = arith.constant 0 : i32
    %c0_i32_0 = arith.constant 0 : i32
    %c0_i32_1 = arith.constant 0 : i32
    return %c0_i32, %c0_i32_0 : i32, i32
  }
  func.func @transform_10(%arg0: i32) -> (i32, i32) {
    %c0_i32 = arith.constant 0 : i32
    %c0_i32_0 = arith.constant 0 : i32
    %c0_i32_1 = arith.constant 0 : i32
    return %c0_i32, %c0_i32_0 : i32, i32
  }
  func.func @transform_11(%arg0: i32) -> (i32, i32) {
    %c0_i32 = arith.constant 0 : i32
    %c0_i32_0 = arith.constant 0 : i32
    %c0_i32_1 = arith.constant 0 : i32
    return %c0_i32, %c0_i32_0 : i32, i32
  }
  func.func @transform_12(%arg0: i32) -> (i32, i32) {
    %c0_i32 = arith.constant 0 : i32
    %c0_i32_0 = arith.constant 0 : i32
    %c0_i32_1 = arith.constant 0 : i32
    return %c0_i32, %c0_i32_0 : i32, i32
  }
  func.func @transform_13(%arg0: i32) -> (i32, i32, i32) {
    %c0_i32 = arith.constant 0 : i32
    %c0_i32_0 = arith.constant 0 : i32
    %c0_i32_1 = arith.constant 0 : i32
    return %arg0, %c0_i32, %c0_i32_0 : i32, i32, i32
  }
  func.func @transform_14(%arg0: i32) -> (i32, i32) {
    %c0_i32 = arith.constant 0 : i32
    %c0_i32_0 = arith.constant 0 : i32
    %c0_i32_1 = arith.constant 0 : i32
    return %c0_i32, %c0_i32_0 : i32, i32
  }
  func.func @transform_15(%arg0: i32) -> (i32, i32) {
    %c0_i32 = arith.constant 0 : i32
    %c0_i32_0 = arith.constant 0 : i32
    %c0_i32_1 = arith.constant 0 : i32
    return %c0_i32, %c0_i32_0 : i32, i32
  }
  func.func @transform_16(%arg0: i32) -> (i32, i32) {
    %c0_i32 = arith.constant 0 : i32
    %c0_i32_0 = arith.constant 0 : i32
    %c0_i32_1 = arith.constant 0 : i32
    return %c0_i32, %c0_i32_0 : i32, i32
  }
  func.func @transform_17(%arg0: i32) -> (i32, i32) {
    %c0_i32 = arith.constant 0 : i32
    %c0_i32_0 = arith.constant 0 : i32
    %c0_i32_1 = arith.constant 0 : i32
    return %c0_i32, %c0_i32_0 : i32, i32
  }
  func.func @transform_18(%arg0: i32) -> (i32, i32) {
    %c0_i32 = arith.constant 0 : i32
    %c0_i32_0 = arith.constant 0 : i32
    %c0_i32_1 = arith.constant 0 : i32
    return %c0_i32, %c0_i32_0 : i32, i32
  }
  func.func @transform_19(%arg0: i32) -> (i32, i32) {
    %c0_i32 = arith.constant 0 : i32
    %c0_i32_0 = arith.constant 0 : i32
    %c0_i32_1 = arith.constant 0 : i32
    return %c0_i32, %c0_i32_0 : i32, i32
  }
}

module attributes {stable_mosaic.version = 11 : i64} {
  func.func @_logits_kernel(%arg0: i32, %arg1: memref<8x128xf32, #tpu.memory_space<vmem>>, %arg2: memref<8x128xf32, #tpu.memory_space<vmem>>, %arg3: memref<128x256xf32, #tpu.memory_space<vmem>>, %arg4: memref<8x128xf32, #tpu.memory_space<vmem>>, %arg5: memref<8x256xf32, #tpu.memory_space<vmem>>) attributes {dimension_semantics = [#tpu.dimension_semantics<arbitrary>], iteration_bounds = array<i64: 1>, scalar_prefetch = 0 : i64, scratch_operands = 0 : i64, tpu.core_type = #tpu.core_type<tc>, window_params = [{pipeline_mode = #tpu.pipeline_mode<synchronous>, transform_indices = @transform_0, window_bounds = array<i64: 8, 128>}, {pipeline_mode = #tpu.pipeline_mode<synchronous>, transform_indices = @transform_1, window_bounds = array<i64: 8, 128>}, {transform_indices = @transform_2, window_bounds = array<i64: 128, 256>}, {pipeline_mode = #tpu.pipeline_mode<synchronous>, transform_indices = @transform_3, window_bounds = array<i64: 8, 128>}, {transform_indices = @transform_4, window_bounds = array<i64: 8, 256>}]} {
    %c0 = arith.constant 0 : index
    %c0_0 = arith.constant 0 : index
    %0 = vector.load %arg1[%c0, %c0_0] : memref<8x128xf32, #tpu.memory_space<vmem>>, vector<8x128xf32>
    %c0_i32 = arith.constant 0 : i32
    %1 = arith.cmpi eq, %arg0, %c0_i32 : i32
    %2 = arith.extui %1 : i1 to i32
    %c0_i32_1 = arith.constant 0 : i32
    %3 = arith.cmpi ne, %2, %c0_i32_1 : i32
    scf.if %3 {
      %c0_6 = arith.constant 0 : index
      %c0_7 = arith.constant 0 : index
      %9 = vector.load %arg2[%c0_6, %c0_7] : memref<8x128xf32, #tpu.memory_space<vmem>>, vector<8x128xf32>
      %10 = arith.mulf %0, %9 : vector<8x128xf32>
      %cst_8 = arith.constant dense<0.000000e+00> : vector<8xf32>
      %11 = vector.multi_reduction <add>, %10, %cst_8 [1] : vector<8x128xf32> to vector<8xf32>
      %12 = vector.shape_cast %11 : vector<8xf32> to vector<8x1xf32>
      %13 = vector.shape_cast %12 : vector<8x1xf32> to vector<8x1xf32>
      %14 = vector.broadcast %13 : vector<8x1xf32> to vector<8x128xf32>
      %c0_9 = arith.constant 0 : index
      %c0_10 = arith.constant 0 : index
      %15 = vector.load %arg4[%c0_9, %c0_10] : memref<8x128xf32, #tpu.memory_space<vmem>>, vector<8x128xf32>
      tpu.vector_store %arg4[%c0_9, %c0_10], %14 {strides = array<i32>} : memref<8x128xf32, #tpu.memory_space<vmem>>, vector<8x128xf32>,
    } else {
    }
    %4 = arith.truncf %0 : vector<8x128xf32> to vector<8x128xbf16>
    %c0_2 = arith.constant 0 : index
    %c0_3 = arith.constant 0 : index
    %5 = vector.load %arg3[%c0_2, %c0_3] : memref<128x256xf32, #tpu.memory_space<vmem>>, vector<128x256xf32>
    %6 = arith.truncf %5 : vector<128x256xf32> to vector<128x256xbf16>
    %cst = arith.constant dense<0.000000e+00> : vector<8x256xf32>
    %7 = tpu.matmul %4, %6, %cst {dimension_numbers = #tpu.dot_dimension_numbers<[1], [0], [0], [1], [0, 0, 1, 1], [], []>} : vector<8x128xbf16>, vector<128x256xbf16>, vector<8x256xf32> -> vector<8x256xf32>
    %c0_4 = arith.constant 0 : index
    %c0_5 = arith.constant 0 : index
    %8 = vector.load %arg5[%c0_4, %c0_5] : memref<8x256xf32, #tpu.memory_space<vmem>>, vector<8x256xf32>
    tpu.vector_store %arg5[%c0_4, %c0_5], %7 {strides = array<i32>} : memref<8x256xf32, #tpu.memory_space<vmem>>, vector<8x256xf32>,
    return
  }
  func.func @transform_0(%arg0: i32) -> (i32, i32) {
    %c0_i32 = arith.constant 0 : i32
    %c0_i32_0 = arith.constant 0 : i32
    %c0_i32_1 = arith.constant 0 : i32
    return %c0_i32, %c0_i32_0 : i32, i32
  }
  func.func @transform_1(%arg0: i32) -> (i32, i32) {
    %c0_i32 = arith.constant 0 : i32
    %c0_i32_0 = arith.constant 0 : i32
    %c0_i32_1 = arith.constant 0 : i32
    return %c0_i32, %c0_i32_0 : i32, i32
  }
  func.func @transform_2(%arg0: i32) -> (i32, i32) {
    %c0_i32 = arith.constant 0 : i32
    %c0_i32_0 = arith.constant 0 : i32
    return %c0_i32, %arg0 : i32, i32
  }
  func.func @transform_3(%arg0: i32) -> (i32, i32) {
    %c0_i32 = arith.constant 0 : i32
    %c0_i32_0 = arith.constant 0 : i32
    %c0_i32_1 = arith.constant 0 : i32
    return %c0_i32, %c0_i32_0 : i32, i32
  }
  func.func @transform_4(%arg0: i32) -> (i32, i32) {
    %c0_i32 = arith.constant 0 : i32
    %c0_i32_0 = arith.constant 0 : i32
    return %c0_i32, %arg0 : i32, i32
  }
}

</mosaic_0001>

<llo_original>
// kernel: moco_forward.3
$region0: #{moco_forward.3}
  #allocation0 [shape = 'u32[]', space=smem, size = 0x4, offset = 0x4, fixed_abs, tag = 'smem constant byte address 0x4 - core index']
  #allocation1 [shape = 'u32[72,128]{1,0:T(1,128)}', space=vmem, size = 0x9000, scoped, tag = 'internal scratch']
  %s0 = inlined_call_operand.vmem [shape: f32[8,128], index: 0, kind: input, shape index: {}]
  %s1 = inlined_call_operand.vmem [shape: f32[8,128], index: 1, kind: input, shape index: {}]
  %s2 = inlined_call_operand.vmem [shape: f32[128,256], index: 2, kind: input, shape index: {}]
  %s3 = inlined_call_operand.vmem [shape: f32[8,128], index: 3, kind: output, shape index: {0}]
  %s4 = inlined_call_operand.hbm [shape: f32[8,256], index: 4, kind: output, shape index: {1}]
  %5 = xla_tuple %s3, %s4
  %s6 = sld [smem:[#allocation0]]
  $region34: #{moco_forward.3} parent=0
    _
  %s8 = ssub.s32 1, %s6
  %s9 = scalar_select 0, %s8, %s6
  $region1: #{moco_forward.3} parent=0
    #allocation2 [shape = 'u8[8192]{0}', space=vmem, size = 0x2000, scoped, tag = 'output window, operand 1, single buffered']
    #allocation3 [shape = 's32[1]{0}', space=sflag, size = 0x4, scoped, tag = 'scoped memory for moco_forward.3']
    %10 = vsyncpa [#allocation3], 0
    // Predicated region
    $region2: #{moco_forward.3} parent=1 // pred_check
      _
    $region3: #{moco_forward.3} parent=1 // pred_check_branch
      %12 = sbr.rel (0) target = $region5
    $region4: #{moco_forward.3} parent=1 // pred_region
      _
    $region5: #{moco_forward.3} parent=1 // pred_fallthru
      _
    // Predicated region
    $region6: #{moco_forward.3} parent=1 // pred_check
      _
    $region7: #{moco_forward.3} parent=1 // pred_check_branch
      %14 = sbr.rel (0) target = $region9
    $region8: #{moco_forward.3} parent=1 // pred_region
      _
    $region9: #{moco_forward.3} parent=1 // pred_fallthru
      _
    // Predicated region
    $region10: #{moco_forward.3} parent=1 // pred_check
      _
    $region11: #{moco_forward.3} parent=1 // pred_check_branch
      %16 = sbr.rel (0) target = $region13
    $region12: #{moco_forward.3} parent=1 // pred_region
      _
    $region13: #{moco_forward.3} parent=1 // pred_fallthru
      _
    %v17 = vld [vmem:[%s0] sm:$0xff]
    %p18 = scmp.eq.s32.totalorder 0, 0
    // Predicated region
    $region14: #{moco_forward.3} parent=1 // pred_check
      %p19 = pneg %p18
    $region15: #{moco_forward.3} parent=1 // pred_check_branch
      %21 = sbr.rel (%p19) target = $region17
    $region16: #{moco_forward.3} parent=1 // pred_region
      %v22 = vld [vmem:[%s1] sm:$0xff]
      %v23 = vmul.f32 %v17, %v22
      %24 = vadd.xlane.f32.xlu0 %v23
      %v25 = vpop.xlane.xlu0 %24
      %26 = vst [vmem:[%s3] sm:$0xff] %v25
    $region17: #{moco_forward.3} parent=1 // pred_fallthru
      _
    %v27 = vpack.c.bf16 %v17, %v17
    %v28 = vld [vmem:[%s2] sm:$0xff]
    %v29 = vld [vmem:[%s2 + $0x8] sm:$0xff]
    %v30 = vld [vmem:[%s2 + $0x10] sm:$0xff]
    %v31 = vld [vmem:[%s2 + $0x18] sm:$0xff]
    %v32 = vld [vmem:[%s2 + $0x20] sm:$0xff]
    %v33 = vld [vmem:[%s2 + $0x28] sm:$0xff]
    %v34 = vld [vmem:[%s2 + $0x30] sm:$0xff]
    %v35 = vld [vmem:[%s2 + $0x38] sm:$0xff]
    %v36 = vld [vmem:[%s2 + $0x40] sm:$0xff]
    %v37 = vld [vmem:[%s2 + $0x48] sm:$0xff]
    %v38 = vld [vmem:[%s2 + $0x50] sm:$0xff]
    %v39 = vld [vmem:[%s2 + $0x58] sm:$0xff]
    %v40 = vld [vmem:[%s2 + $0x60] sm:$0xff]
    %v41 = vld [vmem:[%s2 + $0x68] sm:$0xff]
    %v42 = vld [vmem:[%s2 + $0x70] sm:$0xff]
    %v43 = vld [vmem:[%s2 + $0x78] sm:$0xff]
    %v44 = vld [vmem:[%s2 + $0x80] sm:$0xff]
    %v45 = vld [vmem:[%s2 + $0x88] sm:$0xff]
    %v46 = vld [vmem:[%s2 + $0x90] sm:$0xff]
    %v47 = vld [vmem:[%s2 + $0x98] sm:$0xff]
    %v48 = vld [vmem:[%s2 + $0xa0] sm:$0xff]
    %v49 = vld [vmem:[%s2 + $0xa8] sm:$0xff]
    %v50 = vld [vmem:[%s2 + $0xb0] sm:$0xff]
    %v51 = vld [vmem:[%s2 + $0xb8] sm:$0xff]
    %v52 = vld [vmem:[%s2 + $0xc0] sm:$0xff]
    %v53 = vld [vmem:[%s2 + $0xc8] sm:$0xff]
    %v54 = vld [vmem:[%s2 + $0xd0] sm:$0xff]
    %v55 = vld [vmem:[%s2 + $0xd8] sm:$0xff]
    %v56 = vld [vmem:[%s2 + $0xe0] sm:$0xff]
    %v57 = vld [vmem:[%s2 + $0xe8] sm:$0xff]
    %v58 = vld [vmem:[%s2 + $0xf0] sm:$0xff]
    %v59 = vld [vmem:[%s2 + $0xf8] sm:$0xff]
    %v60 = vpack.c.bf16 %v30, %v28
    %v61 = vpack.c.bf16 %v31, %v29
    %v62 = vpack.c.bf16 %v34, %v32
    %v63 = vpack.c.bf16 %v35, %v33
    %v64 = vpack.c.bf16 %v38, %v36
    %v65 = vpack.c.bf16 %v39, %v37
    %v66 = vpack.c.bf16 %v42, %v40
    %v67 = vpack.c.bf16 %v43, %v41
    %v68 = vpack.c.bf16 %v46, %v44
    %v69 = vpack.c.bf16 %v47, %v45
    %v70 = vpack.c.bf16 %v50, %v48
    %v71 = vpack.c.bf16 %v51, %v49
    %v72 = vpack.c.bf16 %v54, %v52
    %v73 = vpack.c.bf16 %v55, %v53
    %v74 = vpack.c.bf16 %v58, %v56
    %v75 = vpack.c.bf16 %v59, %v57
    %76 = vmatpush.bf16.msra.mxu0 %v74
    %77 = vmatpush.bf16.msra.mxu0 %v72
    %78 = vmatpush.bf16.msra.mxu0 %v70
    %79 = vmatpush.bf16.msra.mxu0 %v68
    %80 = vmatpush.bf16.msra.mxu0 %v66
    %81 = vmatpush.bf16.msra.mxu0 %v64
    %82 = vmatpush.bf16.msra.mxu0 %v62
    %83 = vmatpush.bf16.msra.mxu0 %v60
    %84 = vmatmul.bf16.gmra.mxu0 %v27
    %v85 = vpop.f32.mrf.mxu0
    %v86 = vadd.f32 0.0, %v85
    %v87 = vpop.f32.mrf.mxu0
    %88 = vdwg.mxu0
    %89 = vmatpush.bf16.msra.mxu0 %v75
    %90 = vmatpush.bf16.msra.mxu0 %v73
    %91 = vmatpush.bf16.msra.mxu0 %v71
    %92 = vmatpush.bf16.msra.mxu0 %v69
    %93 = vmatpush.bf16.msra.mxu0 %v67
    %94 = vmatpush.bf16.msra.mxu0 %v65
    %95 = vmatpush.bf16.msra.mxu0 %v63
    %96 = vmatpush.bf16.msra.mxu0 %v61
    %97 = vmatmul.bf16.gmra.mxu0 %v27
    %v98 = vpop.f32.mrf.mxu0
    %v99 = vadd.f32 0.0, %v98
    %v100 = vpop.f32.mrf.mxu0
    %101 = vdwg.mxu0
    %102 = vst [vmem:[#allocation2] sm:$0xff] %v86
    %103 = vst [vmem:[#allocation2 + $0x8] sm:$0xff] %v99
    // Predicated region
    $region18: #{moco_forward.3} parent=1 // pred_check
      _
    $region19: #{moco_forward.3} parent=1 // pred_check_branch
      %105 = sbr.rel (0) target = $region21
    $region20: #{moco_forward.3} parent=1 // pred_region
      _
    $region21: #{moco_forward.3} parent=1 // pred_fallthru
      _
    // Predicated region
    $region22: #{moco_forward.3} parent=1 // pred_check
      _
    $region23: #{moco_forward.3} parent=1 // pred_check_branch
      %107 = sbr.rel (0) target = $region25
    $region24: #{moco_forward.3} parent=1 // pred_region
      %109 = vsyncadd [#allocation3], 0
      %s111 = sshll.u32 [#allocation2], 4
      %s112 = int_to_ptr.vmem [resolvable:$true] %s111
      %s113 = sshll.u32 %s4, 4
      %s114 = int_to_ptr.hbm [resolvable:$true] %s113
      %116 = dma.vmem_to_hbm [thread:$0]  %s112, 256, %s114, [#allocation3]
    $region25: #{moco_forward.3} parent=1 // pred_fallthru
      _
    // Predicated region
    $region26: #{moco_forward.3} parent=1 // pred_check
      _
    $region27: #{moco_forward.3} parent=1 // pred_check_branch
      %118 = sbr.rel (0) target = $region29
    $region28: #{moco_forward.3} parent=1 // pred_region
      _
    $region29: #{moco_forward.3} parent=1 // pred_fallthru
      _
    // Predicated region
    $region30: #{moco_forward.3} parent=1 // pred_check
      _
    $region31: #{moco_forward.3} parent=1 // pred_check_branch
      %120 = sbr.rel (0) target = $region33
    $region32: #{moco_forward.3} parent=1 // pred_region
      %122 = dma.done [#allocation3], 256
    $region33: #{moco_forward.3} parent=1 // pred_fallthru
      _
    %123 = vsyncpa [#allocation3], 1

// kernel: moco_forward.2
$region0: #{moco_forward.2}
  #allocation0 [shape = 'u32[]', space=smem, size = 0x4, offset = 0x4, fixed_abs, tag = 'smem constant byte address 0x4 - core index']
  #allocation1 [shape = 'u32[72,128]{1,0:T(1,128)}', space=vmem, size = 0x9000, scoped, tag = 'internal scratch']
  %s0 = inlined_call_operand.vmem [shape: f32[2,8,1024], index: 0, kind: input, shape index: {}]
  %s1 = inlined_call_operand.hbm [shape: f32[1024,128], index: 1, kind: input, shape index: {}]
  %s2 = inlined_call_operand.vmem [shape: f32[1,128], index: 2, kind: input, shape index: {}]
  %s3 = inlined_call_operand.vmem [shape: f32[128,128], index: 3, kind: input, shape index: {}]
  %s4 = inlined_call_operand.vmem [shape: f32[1,128], index: 4, kind: input, shape index: {}]
  %s5 = inlined_call_operand.vmem [shape: f32[128,128], index: 5, kind: input, shape index: {}]
  %s6 = inlined_call_operand.vmem [shape: f32[1,128], index: 6, kind: input, shape index: {}]
  %s7 = inlined_call_operand.hbm [shape: f32[1024,128], index: 7, kind: input, shape index: {}]
  %s8 = inlined_call_operand.vmem [shape: f32[1,128], index: 8, kind: input, shape index: {}]
  %s9 = inlined_call_operand.vmem [shape: f32[128,128], index: 9, kind: input, shape index: {}]
  %s10 = inlined_call_operand.vmem [shape: f32[1,128], index: 10, kind: input, shape index: {}]
  %s11 = inlined_call_operand.vmem [shape: f32[128,128], index: 11, kind: input, shape index: {}]
  %s12 = inlined_call_operand.vmem [shape: f32[1,128], index: 12, kind: input, shape index: {}]
  %s13 = inlined_call_operand.vmem [shape: f32[2,8,128], index: 13, kind: output, shape index: {0}]
  %s14 = inlined_call_operand.hbm [shape: f32[1024,128], index: 14, kind: output, shape index: {1}]
  %s15 = inlined_call_operand.hbm [shape: f32[1,128], index: 15, kind: output, shape index: {2}]
  %s16 = inlined_call_operand.hbm [shape: f32[128,128], index: 16, kind: output, shape index: {3}]
  %s17 = inlined_call_operand.hbm [shape: f32[1,128], index: 17, kind: output, shape index: {4}]
  %s18 = inlined_call_operand.hbm [shape: f32[128,128], index: 18, kind: output, shape index: {5}]
  %s19 = inlined_call_operand.hbm [shape: f32[1,128], index: 19, kind: output, shape index: {6}]
  %20 = xla_tuple %s13, %s14, %s15, %s16, %s17, %s18, %s19
  %s21 = sld [smem:[#allocation0]]
  $region141: #{moco_forward.2} parent=0
    _
  %s23 = ssub.s32 1, %s21
  %s24 = scalar_select 0, %s23, %s21
  $region1: #{moco_forward.2} parent=0
    #allocation2 [shape = 'u8[524288]{0}', space=vmem, size = 0x80000, scoped, tag = 'input window, operand 1, single buffered']
    #allocation3 [shape = 's32[2]{0}', space=sflag, size = 0x8, scoped, tag = 'scoped memory for moco_forward.2']
    #allocation4 [shape = 's32[2]{0}', space=sflag, size = 0x8, scoped, tag = 'scoped memory for moco_forward.2']
    #allocation5 [shape = 'u8[524288]{0}', space=vmem, size = 0x80000, scoped, tag = 'input window, operand 7, single buffered']
    #allocation6 [shape = 's32[1]{0}', space=sflag, size = 0x4, scoped, tag = 'scoped memory for moco_forward.2']
    #allocation7 [shape = 'u8[524288]{0}', space=vmem, size = 0x80000, scoped, tag = 'output window, operand 1, single buffered']
    #allocation8 [shape = 'u8[512]{0}', space=vmem, size = 0x400, scoped, tag = 'output window, operand 2, single buffered']
    #allocation9 [shape = 's32[1]{0}', space=sflag, size = 0x4, scoped, tag = 'scoped memory for moco_forward.2']
    #allocation10 [shape = 'u8[65536]{0}', space=vmem, size = 0x10000, scoped, tag = 'output window, operand 3, single buffered']
    #allocation11 [shape = 'u8[512]{0}', space=vmem, size = 0x400, scoped, tag = 'output window, operand 4, single buffered']
    #allocation12 [shape = 's32[1]{0}', space=sflag, size = 0x4, scoped, tag = 'scoped memory for moco_forward.2']
    #allocation13 [shape = 'u8[65536]{0}', space=vmem, size = 0x10000, scoped, tag = 'output window, operand 5, single buffered']
    #allocation14 [shape = 'u8[512]{0}', space=vmem, size = 0x400, scoped, tag = 'output window, operand 6, single buffered']
    #allocation15 [shape = 's32[1]{0}', space=sflag, size = 0x4, scoped, tag = 'scoped memory for moco_forward.2']
    %25 = vsyncpa [#allocation3], 0
    %26 = vsyncpa [#allocation6], 0
    %27 = vsyncpa [#allocation4], 0
    %28 = vsyncpa [#allocation9], 0
    %29 = vsyncpa [#allocation12], 0
    %30 = vsyncpa [#allocation15], 0
    loop: start=0, step=1, limit=4
    $region2: #{moco_forward.2} parent=1 // loop_pre_header
      _
    $region3: #{moco_forward.2} parent=1 // loop_header
      %s32 = sphi 0, %s36
      %p33 = scmp.ge.s32.totalorder %s32, 4
      %s42 = sphi 0, %s44
      %s45 = sphi 0, %s42
      %s46 = sphi 0, %s45
      %s62 = sphi 0, %s46
      %s66 = sphi 0, %s66
      %s68 = sphi 0, %s66
      %s69 = sphi 0, %s68
      %s83 = sphi 0, %s69
      %s87 = sphi 0, %s87
      %s89 = sphi 0, %s87
      %s90 = sphi 0, %s89
      %s104 = sphi 0, %s90
      %s108 = sphi 0, %s108
      %s110 = sphi 0, %s108
      %s111 = sphi 0, %s110
      %s125 = sphi 0, %s111
      %s129 = sphi 0, %s129
      %s131 = sphi 0, %s129
      %s132 = sphi 0, %s131
      %s146 = sphi 0, %s132
      %s150 = sphi 0, %s150
      %s152 = sphi 0, %s150
      %s153 = sphi 0, %s152
      %s167 = sphi 0, %s153
      %s171 = sphi 0, %s171
      %s173 = sphi 0, %s171
      %s174 = sphi 0, %s173
      %s188 = sphi 0, %s174
      %s192 = sphi 0, %s192
      %s194 = sphi 0, %s192
      %s195 = sphi 0, %s194
      %s209 = sphi 0, %s195
      %s213 = sphi 0, %s213
      %s215 = sphi 0, %s213
      %s216 = sphi 0, %s215
      %s230 = sphi 0, %s216
      %s234 = sphi 0, %s234
      %s236 = sphi 0, %s234
      %s237 = sphi 0, %s236
      %s251 = sphi 0, %s237
      %s255 = sphi 0, %s255
      %s257 = sphi 0, %s255
      %s258 = sphi 0, %s257
      %s272 = sphi 0, %s258
      %s276 = sphi 0, %s276
      %s278 = sphi 0, %s276
      %s279 = sphi 0, %s278
      %s293 = sphi 0, %s279
      %s297 = sphi 0, %s297
      %s299 = sphi 0, %s297
      %s300 = sphi 0, %s299
      %s314 = sphi 0, %s300
      %s320 = sphi 0, %s322
      %s323 = sphi 0, %s320
      %s324 = sphi 0, %s323
      %s340 = sphi 0, %s324
      %s344 = sphi 0, %s344
      %s346 = sphi 0, %s344
      %s347 = sphi 0, %s346
      %s361 = sphi 0, %s347
      %s365 = sphi 0, %s365
      %s367 = sphi 0, %s365
      %s368 = sphi 0, %s367
      %s382 = sphi 0, %s368
      %s386 = sphi 0, %s386
      %s388 = sphi 0, %s386
      %s389 = sphi 0, %s388
      %s403 = sphi 0, %s389
      %s407 = sphi 0, %s407
      %s409 = sphi 0, %s407
      %s410 = sphi 0, %s409
      %s424 = sphi 0, %s410
      %s428 = sphi 0, %s428
      %s430 = sphi 0, %s428
      %s431 = sphi 0, %s430
      %s445 = sphi 0, %s431
      %s449 = sphi 0, %s449
      %s451 = sphi 0, %s449
      %s452 = sphi 0, %s451
      %s466 = sphi 0, %s452
    $region4: #{moco_forward.2} parent=1 // loop_header_branch
      %35 = sbr.rel (%p33) target = $region8
    $region5: #{moco_forward.2} parent=1 // loop_body
      %s37 = ssub.s32 %s32, 1
      %s38 = ssub.s32 %s32, 2
      %s39 = sadd.s32 %s32, 1
      %s40 = ssub.s32 %s32, %s39
      %p41 = scmp.eq.s32.totalorder %s40, 0
      %s43 = sadd.s32 %s42, 1
      %s44 = scalar_select %p41, %s42, %s43
      %p47 = pneg %p41
      %p48 = scmp.eq.s32.totalorder %s32, 1
      %p49 = por %p47, %p48
      %p50 = scmp.ne.s32.totalorder %s42, %s45
      %p51 = scmp.eq.s32.totalorder %s32, 0
      %p52 = por %p50, %p51
      %p53 = scmp.ne.s32.totalorder %s42, %s45
      %p54 = scmp.eq.s32.totalorder %s37, 1
      %p55 = por %p53, %p54
      %p56 = scmp.ne.s32.totalorder %s45, %s46
      %p57 = scmp.eq.s32.totalorder %s37, 0
      %p58 = por %p56, %p57
      %p59 = scmp.ne.s32.totalorder %s45, %s46
      %p60 = scmp.eq.s32.totalorder %s38, 1
      %p61 = por %p59, %p60
      %p63 = scmp.ne.s32.totalorder %s46, %s62
      %p64 = scmp.eq.s32.totalorder %s38, 0
      %p65 = por %p63, %p64
      %s67 = sadd.s32 %s66, 1
      %p70 = scmp.eq.s32.totalorder %s32, 1
      %p71 = scmp.ne.s32.totalorder %s66, %s68
      %p72 = scmp.eq.s32.totalorder %s32, 0
      %p73 = por %p71, %p72
      %p74 = scmp.ne.s32.totalorder %s66, %s68
      %p75 = scmp.eq.s32.totalorder %s37, 1
      %p76 = por %p74, %p75
      %p77 = scmp.ne.s32.totalorder %s68, %s69
      %p78 = scmp.eq.s32.totalorder %s37, 0
      %p79 = por %p77, %p78
      %p80 = scmp.ne.s32.totalorder %s68, %s69
      %p81 = scmp.eq.s32.totalorder %s38, 1
      %p82 = por %p80, %p81
      %p84 = scmp.ne.s32.totalorder %s69, %s83
      %p85 = scmp.eq.s32.totalorder %s38, 0
      %p86 = por %p84, %p85
      %s88 = sadd.s32 %s87, 1
      %p91 = scmp.eq.s32.totalorder %s32, 1
      %p92 = scmp.ne.s32.totalorder %s87, %s89
      %p93 = scmp.eq.s32.totalorder %s32, 0
      %p94 = por %p92, %p93
      %p95 = scmp.ne.s32.totalorder %s87, %s89
      %p96 = scmp.eq.s32.totalorder %s37, 1
      %p97 = por %p95, %p96
      %p98 = scmp.ne.s32.totalorder %s89, %s90
      %p99 = scmp.eq.s32.totalorder %s37, 0
      %p100 = por %p98, %p99
      %p101 = scmp.ne.s32.totalorder %s89, %s90
      %p102 = scmp.eq.s32.totalorder %s38, 1
      %p103 = por %p101, %p102
      %p105 = scmp.ne.s32.totalorder %s90, %s104
      %p106 = scmp.eq.s32.totalorder %s38, 0
      %p107 = por %p105, %p106
      %s109 = sadd.s32 %s108, 1
      %p112 = scmp.eq.s32.totalorder %s32, 1
      %p113 = scmp.ne.s32.totalorder %s108, %s110
      %p114 = scmp.eq.s32.totalorder %s32, 0
      %p115 = por %p113, %p114
      %p116 = scmp.ne.s32.totalorder %s108, %s110
      %p117 = scmp.eq.s32.totalorder %s37, 1
      %p118 = por %p116, %p117
      %p119 = scmp.ne.s32.totalorder %s110, %s111
      %p120 = scmp.eq.s32.totalorder %s37, 0
      %p121 = por %p119, %p120
      %p122 = scmp.ne.s32.totalorder %s110, %s111
      %p123 = scmp.eq.s32.totalorder %s38, 1
      %p124 = por %p122, %p123
      %p126 = scmp.ne.s32.totalorder %s111, %s125
      %p127 = scmp.eq.s32.totalorder %s38, 0
      %p128 = por %p126, %p127
      %s130 = sadd.s32 %s129, 1
      %p133 = scmp.eq.s32.totalorder %s32, 1
      %p134 = scmp.ne.s32.totalorder %s129, %s131
      %p135 = scmp.eq.s32.totalorder %s32, 0
      %p136 = por %p134, %p135
      %p137 = scmp.ne.s32.totalorder %s129, %s131
      %p138 = scmp.eq.s32.totalorder %s37, 1
      %p139 = por %p137, %p138
      %p140 = scmp.ne.s32.totalorder %s131, %s132
      %p141 = scmp.eq.s32.totalorder %s37, 0
      %p142 = por %p140, %p141
      %p143 = scmp.ne.s32.totalorder %s131, %s132
      %p144 = scmp.eq.s32.totalorder %s38, 1
      %p145 = por %p143, %p144
      %p147 = scmp.ne.s32.totalorder %s132, %s146
      %p148 = scmp.eq.s32.totalorder %s38, 0
      %p149 = por %p147, %p148
      %s151 = sadd.s32 %s150, 1
      %p154 = scmp.eq.s32.totalorder %s32, 1
      %p155 = scmp.ne.s32.totalorder %s150, %s152
      %p156 = scmp.eq.s32.totalorder %s32, 0
      %p157 = por %p155, %p156
      %p158 = scmp.ne.s32.totalorder %s150, %s152
      %p159 = scmp.eq.s32.totalorder %s37, 1
      %p160 = por %p158, %p159
      %p161 = scmp.ne.s32.totalorder %s152, %s153
      %p162 = scmp.eq.s32.totalorder %s37, 0
      %p163 = por %p161, %p162
      %p164 = scmp.ne.s32.totalorder %s152, %s153
      %p165 = scmp.eq.s32.totalorder %s38, 1
      %p166 = por %p164, %p165
      %p168 = scmp.ne.s32.totalorder %s153, %s167
      %p169 = scmp.eq.s32.totalorder %s38, 0
      %p170 = por %p168, %p169
      %s172 = sadd.s32 %s171, 1
      %p175 = scmp.eq.s32.totalorder %s32, 1
      %p176 = scmp.ne.s32.totalorder %s171, %s173
      %p177 = scmp.eq.s32.totalorder %s32, 0
      %p178 = por %p176, %p177
      %p179 = scmp.ne.s32.totalorder %s171, %s173
      %p180 = scmp.eq.s32.totalorder %s37, 1
      %p181 = por %p179, %p180
      %p182 = scmp.ne.s32.totalorder %s173, %s174
      %p183 = scmp.eq.s32.totalorder %s37, 0
      %p184 = por %p182, %p183
      %p185 = scmp.ne.s32.totalorder %s173, %s174
      %p186 = scmp.eq.s32.totalorder %s38, 1
      %p187 = por %p185, %p186
      %p189 = scmp.ne.s32.totalorder %s174, %s188
      %p190 = scmp.eq.s32.totalorder %s38, 0
      %p191 = por %p189, %p190
      %s193 = sadd.s32 %s192, 1
      %p196 = scmp.eq.s32.totalorder %s32, 1
      %p197 = scmp.ne.s32.totalorder %s192, %s194
      %p198 = scmp.eq.s32.totalorder %s32, 0
      %p199 = por %p197, %p198
      %p200 = scmp.ne.s32.totalorder %s192, %s194
      %p201 = scmp.eq.s32.totalorder %s37, 1
      %p202 = por %p200, %p201
      %p203 = scmp.ne.s32.totalorder %s194, %s195
      %p204 = scmp.eq.s32.totalorder %s37, 0
      %p205 = por %p203, %p204
      %p206 = scmp.ne.s32.totalorder %s194, %s195
      %p207 = scmp.eq.s32.totalorder %s38, 1
      %p208 = por %p206, %p207
      %p210 = scmp.ne.s32.totalorder %s195, %s209
      %p211 = scmp.eq.s32.totalorder %s38, 0
      %p212 = por %p210, %p211
      %s214 = sadd.s32 %s213, 1
      %p217 = scmp.eq.s32.totalorder %s32, 1
      %p218 = scmp.ne.s32.totalorder %s213, %s215
      %p219 = scmp.eq.s32.totalorder %s32, 0
      %p220 = por %p218, %p219
      %p221 = scmp.ne.s32.totalorder %s213, %s215
      %p222 = scmp.eq.s32.totalorder %s37, 1
      %p223 = por %p221, %p222
      %p224 = scmp.ne.s32.totalorder %s215, %s216
      %p225 = scmp.eq.s32.totalorder %s37, 0
      %p226 = por %p224, %p225
      %p227 = scmp.ne.s32.totalorder %s215, %s216
      %p228 = scmp.eq.s32.totalorder %s38, 1
      %p229 = por %p227, %p228
      %p231 = scmp.ne.s32.totalorder %s216, %s230
      %p232 = scmp.eq.s32.totalorder %s38, 0
      %p233 = por %p231, %p232
      %s235 = sadd.s32 %s234, 1
      %p238 = scmp.eq.s32.totalorder %s32, 1
      %p239 = scmp.ne.s32.totalorder %s234, %s236
      %p240 = scmp.eq.s32.totalorder %s32, 0
      %p241 = por %p239, %p240
      %p242 = scmp.ne.s32.totalorder %s234, %s236
      %p243 = scmp.eq.s32.totalorder %s37, 1
      %p244 = por %p242, %p243
      %p245 = scmp.ne.s32.totalorder %s236, %s237
      %p246 = scmp.eq.s32.totalorder %s37, 0
      %p247 = por %p245, %p246
      %p248 = scmp.ne.s32.totalorder %s236, %s237
      %p249 = scmp.eq.s32.totalorder %s38, 1
      %p250 = por %p248, %p249
      %p252 = scmp.ne.s32.totalorder %s237, %s251
      %p253 = scmp.eq.s32.totalorder %s38, 0
      %p254 = por %p252, %p253
      %s256 = sadd.s32 %s255, 1
      %p259 = scmp.eq.s32.totalorder %s32, 1
      %p260 = scmp.ne.s32.totalorder %s255, %s257
      %p261 = scmp.eq.s32.totalorder %s32, 0
      %p262 = por %p260, %p261
      %p263 = scmp.ne.s32.totalorder %s255, %s257
      %p264 = scmp.eq.s32.totalorder %s37, 1
      %p265 = por %p263, %p264
      %p266 = scmp.ne.s32.totalorder %s257, %s258
      %p267 = scmp.eq.s32.totalorder %s37, 0
      %p268 = por %p266, %p267
      %p269 = scmp.ne.s32.totalorder %s257, %s258
      %p270 = scmp.eq.s32.totalorder %s38, 1
      %p271 = por %p269, %p270
      %p273 = scmp.ne.s32.totalorder %s258, %s272
      %p274 = scmp.eq.s32.totalorder %s38, 0
      %p275 = por %p273, %p274
      %s277 = sadd.s32 %s276, 1
      %p280 = scmp.eq.s32.totalorder %s32, 1
      %p281 = scmp.ne.s32.totalorder %s276, %s278
      %p282 = scmp.eq.s32.totalorder %s32, 0
      %p283 = por %p281, %p282
      %p284 = scmp.ne.s32.totalorder %s276, %s278
      %p285 = scmp.eq.s32.totalorder %s37, 1
      %p286 = por %p284, %p285
      %p287 = scmp.ne.s32.totalorder %s278, %s279
      %p288 = scmp.eq.s32.totalorder %s37, 0
      %p289 = por %p287, %p288
      %p290 = scmp.ne.s32.totalorder %s278, %s279
      %p291 = scmp.eq.s32.totalorder %s38, 1
      %p292 = por %p290, %p291
      %p294 = scmp.ne.s32.totalorder %s279, %s293
      %p295 = scmp.eq.s32.totalorder %s38, 0
      %p296 = por %p294, %p295
      %s298 = sadd.s32 %s297, 1
      %p301 = scmp.eq.s32.totalorder %s32, 1
      %p302 = scmp.ne.s32.totalorder %s297, %s299
      %p303 = scmp.eq.s32.totalorder %s32, 0
      %p304 = por %p302, %p303
      %p305 = scmp.ne.s32.totalorder %s297, %s299
      %p306 = scmp.eq.s32.totalorder %s37, 1
      %p307 = por %p305, %p306
      %p308 = scmp.ne.s32.totalorder %s299, %s300
      %p309 = scmp.eq.s32.totalorder %s37, 0
      %p310 = por %p308, %p309
      %p311 = scmp.ne.s32.totalorder %s299, %s300
      %p312 = scmp.eq.s32.totalorder %s38, 1
      %p313 = por %p311, %p312
      %p315 = scmp.ne.s32.totalorder %s300, %s314
      %p316 = scmp.eq.s32.totalorder %s38, 0
      %p317 = por %p315, %p316
      %s318 = ssub.s32 %s32, %s39
      %p319 = scmp.eq.s32.totalorder %s318, 0
      %s321 = sadd.s32 %s320, 1
      %s322 = scalar_select %p319, %s320, %s321
      %p325 = pneg %p319
      %p326 = scmp.eq.s32.totalorder %s32, 1
      %p327 = por %p325, %p326
      %p328 = scmp.ne.s32.totalorder %s320, %s323
      %p329 = scmp.eq.s32.totalorder %s32, 0
      %p330 = por %p328, %p329
      %p331 = scmp.ne.s32.totalorder %s320, %s323
      %p332 = scmp.eq.s32.totalorder %s37, 1
      %p333 = por %p331, %p332
      %p334 = scmp.ne.s32.totalorder %s323, %s324
      %p335 = scmp.eq.s32.totalorder %s37, 0
      %p336 = por %p334, %p335
      %p337 = scmp.ne.s32.totalorder %s323, %s324
      %p338 = scmp.eq.s32.totalorder %s38, 1
      %p339 = por %p337, %p338
      %p341 = scmp.ne.s32.totalorder %s324, %s340
      %p342 = scmp.eq.s32.totalorder %s38, 0
      %p343 = por %p341, %p342
      %s345 = sadd.s32 %s344, 1
      %p348 = scmp.eq.s32.totalorder %s32, 1
      %p349 = scmp.ne.s32.totalorder %s344, %s346
      %p350 = scmp.eq.s32.totalorder %s32, 0
      %p351 = por %p349, %p350
      %p352 = scmp.ne.s32.totalorder %s344, %s346
      %p353 = scmp.eq.s32.totalorder %s37, 1
      %p354 = por %p352, %p353
      %p355 = scmp.ne.s32.totalorder %s346, %s347
      %p356 = scmp.eq.s32.totalorder %s37, 0
      %p357 = por %p355, %p356
      %p358 = scmp.ne.s32.totalorder %s346, %s347
      %p359 = scmp.eq.s32.totalorder %s38, 1
      %p360 = por %p358, %p359
      %p362 = scmp.ne.s32.totalorder %s347, %s361
      %p363 = scmp.eq.s32.totalorder %s38, 0
      %p364 = por %p362, %p363
      %s366 = sadd.s32 %s365, 1
      %p369 = scmp.eq.s32.totalorder %s32, 1
      %p370 = scmp.ne.s32.totalorder %s365, %s367
      %p371 = scmp.eq.s32.totalorder %s32, 0
      %p372 = por %p370, %p371
      %p373 = scmp.ne.s32.totalorder %s365, %s367
      %p374 = scmp.eq.s32.totalorder %s37, 1
      %p375 = por %p373, %p374
      %p376 = scmp.ne.s32.totalorder %s367, %s368
      %p377 = scmp.eq.s32.totalorder %s37, 0
      %p378 = por %p376, %p377
      %p379 = scmp.ne.s32.totalorder %s367, %s368
      %p380 = scmp.eq.s32.totalorder %s38, 1
      %p381 = por %p379, %p380
      %p383 = scmp.ne.s32.totalorder %s368, %s382
      %p384 = scmp.eq.s32.totalorder %s38, 0
      %p385 = por %p383, %p384
      %s387 = sadd.s32 %s386, 1
      %p390 = scmp.eq.s32.totalorder %s32, 1
      %p391 = scmp.ne.s32.totalorder %s386, %s388
      %p392 = scmp.eq.s32.totalorder %s32, 0
      %p393 = por %p391, %p392
      %p394 = scmp.ne.s32.totalorder %s386, %s388
      %p395 = scmp.eq.s32.totalorder %s37, 1
      %p396 = por %p394, %p395
      %p397 = scmp.ne.s32.totalorder %s388, %s389
      %p398 = scmp.eq.s32.totalorder %s37, 0
      %p399 = por %p397, %p398
      %p400 = scmp.ne.s32.totalorder %s388, %s389
      %p401 = scmp.eq.s32.totalorder %s38, 1
      %p402 = por %p400, %p401
      %p404 = scmp.ne.s32.totalorder %s389, %s403
      %p405 = scmp.eq.s32.totalorder %s38, 0
      %p406 = por %p404, %p405
      %s408 = sadd.s32 %s407, 1
      %p411 = scmp.eq.s32.totalorder %s32, 1
      %p412 = scmp.ne.s32.totalorder %s407, %s409
      %p413 = scmp.eq.s32.totalorder %s32, 0
      %p414 = por %p412, %p413
      %p415 = scmp.ne.s32.totalorder %s407, %s409
      %p416 = scmp.eq.s32.totalorder %s37, 1
      %p417 = por %p415, %p416
      %p418 = scmp.ne.s32.totalorder %s409, %s410
      %p419 = scmp.eq.s32.totalorder %s37, 0
      %p420 = por %p418, %p419
      %p421 = scmp.ne.s32.totalorder %s409, %s410
      %p422 = scmp.eq.s32.totalorder %s38, 1
      %p423 = por %p421, %p422
      %p425 = scmp.ne.s32.totalorder %s410, %s424
      %p426 = scmp.eq.s32.totalorder %s38, 0
      %p427 = por %p425, %p426
      %s429 = sadd.s32 %s428, 1
      %p432 = scmp.eq.s32.totalorder %s32, 1
      %p433 = scmp.ne.s32.totalorder %s428, %s430
      %p434 = scmp.eq.s32.totalorder %s32, 0
      %p435 = por %p433, %p434
      %p436 = scmp.ne.s32.totalorder %s428, %s430
      %p437 = scmp.eq.s32.totalorder %s37, 1
      %p438 = por %p436, %p437
      %p439 = scmp.ne.s32.totalorder %s430, %s431
      %p440 = scmp.eq.s32.totalorder %s37, 0
      %p441 = por %p439, %p440
      %p442 = scmp.ne.s32.totalorder %s430, %s431
      %p443 = scmp.eq.s32.totalorder %s38, 1
      %p444 = por %p442, %p443
      %p446 = scmp.ne.s32.totalorder %s431, %s445
      %p447 = scmp.eq.s32.totalorder %s38, 0
      %p448 = por %p446, %p447
      %s450 = sadd.s32 %s449, 1
      %p453 = scmp.eq.s32.totalorder %s32, 1
      %p454 = scmp.ne.s32.totalorder %s449, %s451
      %p455 = scmp.eq.s32.totalorder %s32, 0
      %p456 = por %p454, %p455
      %p457 = scmp.ne.s32.totalorder %s449, %s451
      %p458 = scmp.eq.s32.totalorder %s37, 1
      %p459 = por %p457, %p458
      %p460 = scmp.ne.s32.totalorder %s451, %s452
      %p461 = scmp.eq.s32.totalorder %s37, 0
      %p462 = por %p460, %p461
      %p463 = scmp.ne.s32.totalorder %s451, %s452
      %p464 = scmp.eq.s32.totalorder %s38, 1
      %p465 = por %p463, %p464
      %p467 = scmp.ne.s32.totalorder %s452, %s466
      %p468 = scmp.eq.s32.totalorder %s38, 0
      %p469 = por %p467, %p468
      %p470 = scmp.le.s32.totalorder 1, %s32
      %p471 = scmp.lt.s32.totalorder %s32, 3
      %p472 = pnand %p470, %p471
      %p473 = pneg %p472
      // Predicated region
      $region9: #{moco_forward.2} parent=5 // pred_check
        _
      $region10: #{moco_forward.2} parent=5 // pred_check_branch
        %475 = sbr.rel (%p472) target = $region12
      $region11: #{moco_forward.2} parent=5 // pred_region
        %s476 = ssub.s32 %s32, 1
        // Predicated region
        $region13: #{moco_forward.2} parent=11 // pred_check
          %p477 = pneg %p79
        $region14: #{moco_forward.2} parent=11 // pred_check_branch
          %479 = sbr.rel (%p477) target = $region16
        $region15: #{moco_forward.2} parent=11 // pred_region
          %481 = vsyncadd [#allocation3], 0
          %s482 = sshll.u32 %s1, 4
          %s483 = int_to_ptr.hbm [resolvable:$true] %s482
          %s484 = sshll.u32 [#allocation2], 4
          %s485 = int_to_ptr.vmem [resolvable:$true] %s484
          %490 = dma.hbm_to_vmem [thread:$0]  %s483, 16384, %s485, [#allocation3], 128, 128, 8
        $region16: #{moco_forward.2} parent=11 // pred_fallthru
          _
        // Predicated region
        $region17: #{moco_forward.2} parent=11 // pred_check
          %p491 = pneg %p100
        $region18: #{moco_forward.2} parent=11 // pred_check_branch
          %493 = sbr.rel (%p491) target = $region20
        $region19: #{moco_forward.2} parent=11 // pred_region
          _
        $region20: #{moco_forward.2} parent=11 // pred_fallthru
          _
        // Predicated region
        $region21: #{moco_forward.2} parent=11 // pred_check
          %p494 = pneg %p121
        $region22: #{moco_forward.2} parent=11 // pred_check_branch
          %496 = sbr.rel (%p494) target = $region24
        $region23: #{moco_forward.2} parent=11 // pred_region
          _
        $region24: #{moco_forward.2} parent=11 // pred_fallthru
          _
        // Predicated region
        $region25: #{moco_forward.2} parent=11 // pred_check
          %p497 = pneg %p142
        $region26: #{moco_forward.2} parent=11 // pred_check_branch
          %499 = sbr.rel (%p497) target = $region28
        $region27: #{moco_forward.2} parent=11 // pred_region
          _
        $region28: #{moco_forward.2} parent=11 // pred_fallthru
          _
        // Predicated region
        $region29: #{moco_forward.2} parent=11 // pred_check
          %p500 = pneg %p163
        $region30: #{moco_forward.2} parent=11 // pred_check_branch
          %502 = sbr.rel (%p500) target = $region32
        $region31: #{moco_forward.2} parent=11 // pred_region
          _
        $region32: #{moco_forward.2} parent=11 // pred_fallthru
          _
        // Predicated region
        $region33: #{moco_forward.2} parent=11 // pred_check
          %p503 = pneg %p184
        $region34: #{moco_forward.2} parent=11 // pred_check_branch
          %505 = sbr.rel (%p503) target = $region36
        $region35: #{moco_forward.2} parent=11 // pred_region
          _
        $region36: #{moco_forward.2} parent=11 // pred_fallthru
          _
        // Predicated region
        $region37: #{moco_forward.2} parent=11 // pred_check
          %p506 = pneg %p205
        $region38: #{moco_forward.2} parent=11 // pred_check_branch
          %508 = sbr.rel (%p506) target = $region40
        $region39: #{moco_forward.2} parent=11 // pred_region
          %510 = vsyncadd [#allocation6], 0
          %s511 = sshll.u32 %s7, 4
          %s512 = int_to_ptr.hbm [resolvable:$true] %s511
          %s513 = sshll.u32 [#allocation5], 4
          %s514 = int_to_ptr.vmem [resolvable:$true] %s513
          %519 = dma.hbm_to_vmem [thread:$0]  %s512, 16384, %s514, [#allocation6], 128, 128, 8
        $region40: #{moco_forward.2} parent=11 // pred_fallthru
          _
        // Predicated region
        $region41: #{moco_forward.2} parent=11 // pred_check
          %p520 = pneg %p226
        $region42: #{moco_forward.2} parent=11 // pred_check_branch
          %522 = sbr.rel (%p520) target = $region44
        $region43: #{moco_forward.2} parent=11 // pred_region
          _
        $region44: #{moco_forward.2} parent=11 // pred_fallthru
          _
        // Predicated region
        $region45: #{moco_forward.2} parent=11 // pred_check
          %p523 = pneg %p247
        $region46: #{moco_forward.2} parent=11 // pred_check_branch
          %525 = sbr.rel (%p523) target = $region48
        $region47: #{moco_forward.2} parent=11 // pred_region
          _
        $region48: #{moco_forward.2} parent=11 // pred_fallthru
          _
        // Predicated region
        $region49: #{moco_forward.2} parent=11 // pred_check
          %p526 = pneg %p268
        $region50: #{moco_forward.2} parent=11 // pred_check_branch
          %528 = sbr.rel (%p526) target = $region52
        $region51: #{moco_forward.2} parent=11 // pred_region
          _
        $region52: #{moco_forward.2} parent=11 // pred_fallthru
          _
        // Predicated region
        $region53: #{moco_forward.2} parent=11 // pred_check
          %p529 = pneg %p289
        $region54: #{moco_forward.2} parent=11 // pred_check_branch
          %531 = sbr.rel (%p529) target = $region56
        $region55: #{moco_forward.2} parent=11 // pred_region
          _
        $region56: #{moco_forward.2} parent=11 // pred_fallthru
          _
        // Predicated region
        $region57: #{moco_forward.2} parent=11 // pred_check
          %p532 = pneg %p310
        $region58: #{moco_forward.2} parent=11 // pred_check_branch
          %534 = sbr.rel (%p532) target = $region60
        $region59: #{moco_forward.2} parent=11 // pred_region
          _
        $region60: #{moco_forward.2} parent=11 // pred_fallthru
          _
      $region12: #{moco_forward.2} parent=5 // pred_fallthru
        _
      %p535 = scmp.lt.s32.totalorder %s32, 2
      // Predicated region
      $region61: #{moco_forward.2} parent=5 // pred_check
        %p536 = pneg %p535
      $region62: #{moco_forward.2} parent=5 // pred_check_branch
        %538 = sbr.rel (%p536) target = $region64
      $region63: #{moco_forward.2} parent=5 // pred_region
        // Predicated region
        $region65: #{moco_forward.2} parent=63 // pred_check
          %p539 = pneg %p52
        $region66: #{moco_forward.2} parent=63 // pred_check_branch
          %541 = sbr.rel (%p539) target = $region68
        $region67: #{moco_forward.2} parent=63 // pred_region
          %p542 = scmp.lt.s32.totalorder %s32, 1
          %s543 = scalar_select %p542, %s32, 1
          %s544 = smul.addr %s543, 8
          %s545 = smul.addr %s544, 8
          %s546 = scalar_lea.vmem %s0, %s545
        $region68: #{moco_forward.2} parent=63 // pred_fallthru
          _
      $region64: #{moco_forward.2} parent=5 // pred_fallthru
        _
      %p547 = scmp.le.s32.totalorder 1, %s32
      %p548 = scmp.lt.s32.totalorder %s32, 3
      %p549 = pnand %p547, %p548
      %p550 = pneg %p549
      // Predicated region
      $region69: #{moco_forward.2} parent=5 // pred_check
        _
      $region70: #{moco_forward.2} parent=5 // pred_check_branch
        %552 = sbr.rel (%p549) target = $region72
      $region71: #{moco_forward.2} parent=5 // pred_region
        %s553 = ssub.s32 %s32, 1
        // Predicated region
        $region73: #{moco_forward.2} parent=71 // pred_check
          %p554 = pneg %p79
        $region74: #{moco_forward.2} parent=71 // pred_check_branch
          %556 = sbr.rel (%p554) target = $region76
        $region75: #{moco_forward.2} parent=71 // pred_region
          %558 = dma.done [#allocation3], 16384
        $region76: #{moco_forward.2} parent=71 // pred_fallthru
          _
        // Predicated region
        $region77: #{moco_forward.2} parent=71 // pred_check
          %p559 = pneg %p205
        $region78: #{moco_forward.2} parent=71 // pred_check_branch
          %561 = sbr.rel (%p559) target = $region80
        $region79: #{moco_forward.2} parent=71 // pred_region
          %563 = dma.done [#allocation6], 16384
        $region80: #{moco_forward.2} parent=71 // pred_fallthru
          _
        %p564 = scmp.lt.s32.totalorder %s37, 1
        %s565 = scalar_select %p564, %s37, 1
        %s566 = smul.addr %s565, 8
        %s567 = smul.addr %s566, 8
        %s568 = scalar_lea.vmem %s0, %s567
        %p569 = pneg %p58
        %p570 = pneg %p55
        %p571 = pneg %p79
        %p572 = pneg %p76
        %p573 = pneg %p100
        %p574 = pneg %p97
        %p575 = pneg %p121
        %p576 = pneg %p118
        %p577 = pneg %p142
        %p578 = pneg %p139
        %p579 = pneg %p163
        %p580 = pneg %p160
        %p581 = pneg %p184
        %p582 = pneg %p181
        %p583 = pneg %p205
        %p584 = pneg %p202
        %p585 = pneg %p226
        %p586 = pneg %p223
        %p587 = pneg %p247
        %p588 = pneg %p244
        %p589 = pneg %p268
        %p590 = pneg %p265
        %p591 = pneg %p289
        %p592 = pneg %p286
        %p593 = pneg %p310
        %p594 = pneg %p307
        %p595 = pneg %p336
        %p596 = pneg %p333
        %p597 = scmp.lt.s32.totalorder %s37, 1
        %s598 = scalar_select %p597, %s37, 1
        %s599 = smul.addr %s598, 8
        %s600 = scalar_lea.vmem %s13, %s599
        %p601 = pneg %p357
        %p602 = pneg %p354
        %p603 = pneg %p378
        %p604 = pneg %p375
        %p605 = pneg %p399
        %p606 = pneg %p396
        %p607 = pneg %p420
        %p608 = pneg %p417
        %p609 = pneg %p441
        %p610 = pneg %p438
        %p611 = pneg %p462
        %p612 = pneg %p459
        %p613 = scmp.lt.s32.totalorder %s37, 1
        %s614 = scalar_select %p613, %s37, 1
        %s615 = smul.addr %s614, 8
        %s616 = smul.addr %s615, 8
        %s617 = scalar_lea.vmem %s0, %s616
        %p618 = scmp.lt.s32.totalorder %s37, 1
        %s619 = scalar_select %p618, %s37, 1
        %s620 = smul.addr %s619, 8
        %s621 = scalar_lea.vmem %s13, %s620
        %s622 = scvt.s32.f32 %s37
        %s623 = smul.f32 %s622, 0.999
        %v624 = vld [vmem:[#allocation2] sm:$0xff]
        %v625 = vld [vmem:[#allocation2 + $0x8] sm:$0xff]
        %v626 = vld [vmem:[#allocation2 + $0x10] sm:$0xff]
        %v627 = vld [vmem:[#allocation2 + $0x18] sm:$0xff]
        %v628 = vld [vmem:[#allocation2 + $0x20] sm:$0xff]
        %v629 = vld [vmem:[#allocation2 + $0x28] sm:$0xff]
        %v630 = vld [vmem:[#allocation2 + $0x30] sm:$0xff]
        %v631 = vld [vmem:[#allocation2 + $0x38] sm:$0xff]
        %v632 = vld [vmem:[#allocation2 + $0x40] sm:$0xff]
        %v633 = vld [vmem:[#allocation2 + $0x48] sm:$0xff]
        %v634 = vld [vmem:[#allocation2 + $0x50] sm:$0xff]
        %v635 = vld [vmem:[#allocation2 + $0x58] sm:$0xff]
        %v636 = vld [vmem:[#allocation2 + $0x60] sm:$0xff]
        %v637 = vld [vmem:[#allocation2 + $0x68] sm:$0xff]
        %v638 = vld [vmem:[#allocation2 + $0x70] sm:$0xff]
        %v639 = vld [vmem:[#allocation2 + $0x78] sm:$0xff]
        %v640 = vld [vmem:[#allocation2 + $0x80] sm:$0xff]
        %v641 = vld [vmem:[#allocation2 + $0x88] sm:$0xff]
        %v642 = vld [vmem:[#allocation2 + $0x90] sm:$0xff]
        %v643 = vld [vmem:[#allocation2 + $0x98] sm:$0xff]
        %v644 = vld [vmem:[#allocation2 + $0xa0] sm:$0xff]
        %v645 = vld [vmem:[#allocation2 + $0xa8] sm:$0xff]
        %v646 = vld [vmem:[#allocation2 + $0xb0] sm:$0xff]
        %v647 = vld [vmem:[#allocation2 + $0xb8] sm:$0xff]
        %v648 = vld [vmem:[#allocation2 + $0xc0] sm:$0xff]
        %v649 = vld [vmem:[#allocation2 + $0xc8] sm:$0xff]
        %v650 = vld [vmem:[#allocation2 + $0xd0] sm:$0xff]
        %v651 = vld [vmem:[#allocation2 + $0xd8] sm:$0xff]
        %v652 = vld [vmem:[#allocation2 + $0xe0] sm:$0xff]
        %v653 = vld [vmem:[#allocation2 + $0xe8] sm:$0xff]
        %v654 = vld [vmem:[#allocation2 + $0xf0] sm:$0xff]
        %v655 = vld [vmem:[#allocation2 + $0xf8] sm:$0xff]
        %v656 = vld [vmem:[#allocation2 + $0x100] sm:$0xff]
        %v657 = vld [vmem:[#allocation2 + $0x108] sm:$0xff]
        %v658 = vld [vmem:[#allocation2 + $0x110] sm:$0xff]
        %v659 = vld [vmem:[#allocation2 + $0x118] sm:$0xff]
        %v660 = vld [vmem:[#allocation2 + $0x120] sm:$0xff]
        %v661 = vld [vmem:[#allocation2 + $0x128] sm:$0xff]
        %v662 = vld [vmem:[#allocation2 + $0x130] sm:$0xff]
        %v663 = vld [vmem:[#allocation2 + $0x138] sm:$0xff]
        %v664 = vld [vmem:[#allocation2 + $0x140] sm:$0xff]
        %v665 = vld [vmem:[#allocation2 + $0x148] sm:$0xff]
        %v666 = vld [vmem:[#allocation2 + $0x150] sm:$0xff]
        %v667 = vld [vmem:[#allocation2 + $0x158] sm:$0xff]
        %v668 = vld [vmem:[#allocation2 + $0x160] sm:$0xff]
        %v669 = vld [vmem:[#allocation2 + $0x168] sm:$0xff]
        %v670 = vld [vmem:[#allocation2 + $0x170] sm:$0xff]
        %v671 = vld [vmem:[#allocation2 + $0x178] sm:$0xff]
        %v672 = vld [vmem:[#allocation2 + $0x180] sm:$0xff]
        %v673 = vld [vmem:[#allocation2 + $0x188] sm:$0xff]
        %v674 = vld [vmem:[#allocation2 + $0x190] sm:$0xff]
        %v675 = vld [vmem:[#allocation2 + $0x198] sm:$0xff]
        %v676 = vld [vmem:[#allocation2 + $0x1a0] sm:$0xff]
        %v677 = vld [vmem:[#allocation2 + $0x1a8] sm:$0xff]
        %v678 = vld [vmem:[#allocation2 + $0x1b0] sm:$0xff]
        %v679 = vld [vmem:[#allocation2 + $0x1b8] sm:$0xff]
        %v680 = vld [vmem:[#allocation2 + $0x1c0] sm:$0xff]
        %v681 = vld [vmem:[#allocation2 + $0x1c8] sm:$0xff]
        %v682 = vld [vmem:[#allocation2 + $0x1d0] sm:$0xff]
        %v683 = vld [vmem:[#allocation2 + $0x1d8] sm:$0xff]
        %v684 = vld [vmem:[#allocation2 + $0x1e0] sm:$0xff]
        %v685 = vld [vmem:[#allocation2 + $0x1e8] sm:$0xff]
        %v686 = vld [vmem:[#allocation2 + $0x1f0] sm:$0xff]
        %v687 = vld [vmem:[#allocation2 + $0x1f8] sm:$0xff]
        %v688 = vld [vmem:[#allocation2 + $0x200] sm:$0xff]
        %v689 = vld [vmem:[#allocation2 + $0x208] sm:$0xff]
        %v690 = vld [vmem:[#allocation2 + $0x210] sm:$0xff]
        %v691 = vld [vmem:[#allocation2 + $0x218] sm:$0xff]
        %v692 = vld [vmem:[#allocation2 + $0x220] sm:$0xff]
        %v693 = vld [vmem:[#allocation2 + $0x228] sm:$0xff]
        %v694 = vld [vmem:[#allocation2 + $0x230] sm:$0xff]
        %v695 = vld [vmem:[#allocation2 + $0x238] sm:$0xff]
        %v696 = vld [vmem:[#allocation2 + $0x240] sm:$0xff]
        %v697 = vld [vmem:[#allocation2 + $0x248] sm:$0xff]
        %v698 = vld [vmem:[#allocation2 + $0x250] sm:$0xff]
        %v699 = vld [vmem:[#allocation2 + $0x258] sm:$0xff]
        %v700 = vld [vmem:[#allocation2 + $0x260] sm:$0xff]
        %v701 = vld [vmem:[#allocation2 + $0x268] sm:$0xff]
        %v702 = vld [vmem:[#allocation2 + $0x270] sm:$0xff]
        %v703 = vld [vmem:[#allocation2 + $0x278] sm:$0xff]
        %v704 = vld [vmem:[#allocation2 + $0x280] sm:$0xff]
        %v705 = vld [vmem:[#allocation2 + $0x288] sm:$0xff]
        %v706 = vld [vmem:[#allocation2 + $0x290] sm:$0xff]
        %v707 = vld [vmem:[#allocation2 + $0x298] sm:$0xff]
        %v708 = vld [vmem:[#allocation2 + $0x2a0] sm:$0xff]
        %v709 = vld [vmem:[#allocation2 + $0x2a8] sm:$0xff]
        %v710 = vld [vmem:[#allocation2 + $0x2b0] sm:$0xff]
        %v711 = vld [vmem:[#allocation2 + $0x2b8] sm:$0xff]
        %v712 = vld [vmem:[#allocation2 + $0x2c0] sm:$0xff]
        %v713 = vld [vmem:[#allocation2 + $0x2c8] sm:$0xff]
        %v714 = vld [vmem:[#allocation2 + $0x2d0] sm:$0xff]
        %v715 = vld [vmem:[#allocation2 + $0x2d8] sm:$0xff]
        %v716 = vld [vmem:[#allocation2 + $0x2e0] sm:$0xff]
        %v717 = vld [vmem:[#allocation2 + $0x2e8] sm:$0xff]
        %v718 = vld [vmem:[#allocation2 + $0x2f0] sm:$0xff]
        %v719 = vld [vmem:[#allocation2 + $0x2f8] sm:$0xff]
        %v720 = vld [vmem:[#allocation2 + $0x300] sm:$0xff]
        %v721 = vld [vmem:[#allocation2 + $0x308] sm:$0xff]
        %v722 = vld [vmem:[#allocation2 + $0x310] sm:$0xff]
        %v723 = vld [vmem:[#allocation2 + $0x318] sm:$0xff]
        %v724 = vld [vmem:[#allocation2 + $0x320] sm:$0xff]
        %v725 = vld [vmem:[#allocation2 + $0x328] sm:$0xff]
        %v726 = vld [vmem:[#allocation2 + $0x330] sm:$0xff]
        %v727 = vld [vmem:[#allocation2 + $0x338] sm:$0xff]
        %v728 = vld [vmem:[#allocation2 + $0x340] sm:$0xff]
        %v729 = vld [vmem:[#allocation2 + $0x348] sm:$0xff]
        %v730 = vld [vmem:[#allocation2 + $0x350] sm:$0xff]
        %v731 = vld [vmem:[#allocation2 + $0x358] sm:$0xff]
        %v732 = vld [vmem:[#allocation2 + $0x360] sm:$0xff]
        %v733 = vld [vmem:[#allocation2 + $0x368] sm:$0xff]
        %v734 = vld [vmem:[#allocation2 + $0x370] sm:$0xff]
        %v735 = vld [vmem:[#allocation2 + $0x378] sm:$0xff]
        %v736 = vld [vmem:[#allocation2 + $0x380] sm:$0xff]
        %v737 = vld [vmem:[#allocation2 + $0x388] sm:$0xff]
        %v738 = vld [vmem:[#allocation2 + $0x390] sm:$0xff]
        %v739 = vld [vmem:[#allocation2 + $0x398] sm:$0xff]
        %v740 = vld [vmem:[#allocation2 + $0x3a0] sm:$0xff]
        %v741 = vld [vmem:[#allocation2 + $0x3a8] sm:$0xff]
        %v742 = vld [vmem:[#allocation2 + $0x3b0] sm:$0xff]
        %v743 = vld [vmem:[#allocation2 + $0x3b8] sm:$0xff]
        %v744 = vld [vmem:[#allocation2 + $0x3c0] sm:$0xff]
        %v745 = vld [vmem:[#allocation2 + $0x3c8] sm:$0xff]
        %v746 = vld [vmem:[#allocation2 + $0x3d0] sm:$0xff]
        %v747 = vld [vmem:[#allocation2 + $0x3d8] sm:$0xff]
        %v748 = vld [vmem:[#allocation2 + $0x3e0] sm:$0xff]
        %v749 = vld [vmem:[#allocation2 + $0x3e8] sm:$0xff]
        %v750 = vld [vmem:[#allocation2 + $0x3f0] sm:$0xff]
        %v751 = vld [vmem:[#allocation2 + $0x3f8] sm:$0xff]
        %v752 = vld [vmem:[#allocation5] sm:$0xff]
        %v753 = vld [vmem:[#allocation5 + $0x8] sm:$0xff]
        %v754 = vld [vmem:[#allocation5 + $0x10] sm:$0xff]
        %v755 = vld [vmem:[#allocation5 + $0x18] sm:$0xff]
        %v756 = vld [vmem:[#allocation5 + $0x20] sm:$0xff]
        %v757 = vld [vmem:[#allocation5 + $0x28] sm:$0xff]
        %v758 = vld [vmem:[#allocation5 + $0x30] sm:$0xff]
        %v759 = vld [vmem:[#allocation5 + $0x38] sm:$0xff]
        %v760 = vld [vmem:[#allocation5 + $0x40] sm:$0xff]
        %v761 = vld [vmem:[#allocation5 + $0x48] sm:$0xff]
        %v762 = vld [vmem:[#allocation5 + $0x50] sm:$0xff]
        %v763 = vld [vmem:[#allocation5 + $0x58] sm:$0xff]
        %v764 = vld [vmem:[#allocation5 + $0x60] sm:$0xff]
        %v765 = vld [vmem:[#allocation5 + $0x68] sm:$0xff]
        %v766 = vld [vmem:[#allocation5 + $0x70] sm:$0xff]
        %v767 = vld [vmem:[#allocation5 + $0x78] sm:$0xff]
        %v768 = vld [vmem:[#allocation5 + $0x80] sm:$0xff]
        %v769 = vld [vmem:[#allocation5 + $0x88] sm:$0xff]
        %v770 = vld [vmem:[#allocation5 + $0x90] sm:$0xff]
        %v771 = vld [vmem:[#allocation5 + $0x98] sm:$0xff]
        %v772 = vld [vmem:[#allocation5 + $0xa0] sm:$0xff]
        %v773 = vld [vmem:[#allocation5 + $0xa8] sm:$0xff]
        %v774 = vld [vmem:[#allocation5 + $0xb0] sm:$0xff]
        %v775 = vld [vmem:[#allocation5 + $0xb8] sm:$0xff]
        %v776 = vld [vmem:[#allocation5 + $0xc0] sm:$0xff]
        %v777 = vld [vmem:[#allocation5 + $0xc8] sm:$0xff]
        %v778 = vld [vmem:[#allocation5 + $0xd0] sm:$0xff]
        %v779 = vld [vmem:[#allocation5 + $0xd8] sm:$0xff]
        %v780 = vld [vmem:[#allocation5 + $0xe0] sm:$0xff]
        %v781 = vld [vmem:[#allocation5 + $0xe8] sm:$0xff]
        %v782 = vld [vmem:[#allocation5 + $0xf0] sm:$0xff]
        %v783 = vld [vmem:[#allocation5 + $0xf8] sm:$0xff]
        %v784 = vld [vmem:[#allocation5 + $0x100] sm:$0xff]
        %v785 = vld [vmem:[#allocation5 + $0x108] sm:$0xff]
        %v786 = vld [vmem:[#allocation5 + $0x110] sm:$0xff]
        %v787 = vld [vmem:[#allocation5 + $0x118] sm:$0xff]
        %v788 = vld [vmem:[#allocation5 + $0x120] sm:$0xff]
        %v789 = vld [vmem:[#allocation5 + $0x128] sm:$0xff]
        %v790 = vld [vmem:[#allocation5 + $0x130] sm:$0xff]
        %v791 = vld [vmem:[#allocation5 + $0x138] sm:$0xff]
        %v792 = vld [vmem:[#allocation5 + $0x140] sm:$0xff]
        %v793 = vld [vmem:[#allocation5 + $0x148] sm:$0xff]
        %v794 = vld [vmem:[#allocation5 + $0x150] sm:$0xff]
        %v795 = vld [vmem:[#allocation5 + $0x158] sm:$0xff]
        %v796 = vld [vmem:[#allocation5 + $0x160] sm:$0xff]
        %v797 = vld [vmem:[#allocation5 + $0x168] sm:$0xff]
        %v798 = vld [vmem:[#allocation5 + $0x170] sm:$0xff]
        %v799 = vld [vmem:[#allocation5 + $0x178] sm:$0xff]
        %v800 = vld [vmem:[#allocation5 + $0x180] sm:$0xff]
        %v801 = vld [vmem:[#allocation5 + $0x188] sm:$0xff]
        %v802 = vld [vmem:[#allocation5 + $0x190] sm:$0xff]
        %v803 = vld [vmem:[#allocation5 + $0x198] sm:$0xff]
        %v804 = vld [vmem:[#allocation5 + $0x1a0] sm:$0xff]
        %v805 = vld [vmem:[#allocation5 + $0x1a8] sm:$0xff]
        %v806 = vld [vmem:[#allocation5 + $0x1b0] sm:$0xff]
        %v807 = vld [vmem:[#allocation5 + $0x1b8] sm:$0xff]
        %v808 = vld [vmem:[#allocation5 + $0x1c0] sm:$0xff]
        %v809 = vld [vmem:[#allocation5 + $0x1c8] sm:$0xff]
        %v810 = vld [vmem:[#allocation5 + $0x1d0] sm:$0xff]
        %v811 = vld [vmem:[#allocation5 + $0x1d8] sm:$0xff]
        %v812 = vld [vmem:[#allocation5 + $0x1e0] sm:$0xff]
        %v813 = vld [vmem:[#allocation5 + $0x1e8] sm:$0xff]
        %v814 = vld [vmem:[#allocation5 + $0x1f0] sm:$0xff]
        %v815 = vld [vmem:[#allocation5 + $0x1f8] sm:$0xff]
        %v816 = vld [vmem:[#allocation5 + $0x200] sm:$0xff]
        %v817 = vld [vmem:[#allocation5 + $0x208] sm:$0xff]
        %v818 = vld [vmem:[#allocation5 + $0x210] sm:$0xff]
        %v819 = vld [vmem:[#allocation5 + $0x218] sm:$0xff]
        %v820 = vld [vmem:[#allocation5 + $0x220] sm:$0xff]
        %v821 = vld [vmem:[#allocation5 + $0x228] sm:$0xff]
        %v822 = vld [vmem:[#allocation5 + $0x230] sm:$0xff]
        %v823 = vld [vmem:[#allocation5 + $0x238] sm:$0xff]
        %v824 = vld [vmem:[#allocation5 + $0x240] sm:$0xff]
        %v825 = vld [vmem:[#allocation5 + $0x248] sm:$0xff]
        %v826 = vld [vmem:[#allocation5 + $0x250] sm:$0xff]
        %v827 = vld [vmem:[#allocation5 + $0x258] sm:$0xff]
        %v828 = vld [vmem:[#allocation5 + $0x260] sm:$0xff]
        %v829 = vld [vmem:[#allocation5 + $0x268] sm:$0xff]
        %v830 = vld [vmem:[#allocation5 + $0x270] sm:$0xff]
        %v831 = vld [vmem:[#allocation5 + $0x278] sm:$0xff]
        %v832 = vld [vmem:[#allocation5 + $0x280] sm:$0xff]
        %v833 = vld [vmem:[#allocation5 + $0x288] sm:$0xff]
        %v834 = vld [vmem:[#allocation5 + $0x290] sm:$0xff]
        %v835 = vld [vmem:[#allocation5 + $0x298] sm:$0xff]
        %v836 = vld [vmem:[#allocation5 + $0x2a0] sm:$0xff]
        %v837 = vld [vmem:[#allocation5 + $0x2a8] sm:$0xff]
        %v838 = vld [vmem:[#allocation5 + $0x2b0] sm:$0xff]
        %v839 = vld [vmem:[#allocation5 + $0x2b8] sm:$0xff]
        %v840 = vld [vmem:[#allocation5 + $0x2c0] sm:$0xff]
        %v841 = vld [vmem:[#allocation5 + $0x2c8] sm:$0xff]
        %v842 = vld [vmem:[#allocation5 + $0x2d0] sm:$0xff]
        %v843 = vld [vmem:[#allocation5 + $0x2d8] sm:$0xff]
        %v844 = vld [vmem:[#allocation5 + $0x2e0] sm:$0xff]
        %v845 = vld [vmem:[#allocation5 + $0x2e8] sm:$0xff]
        %v846 = vld [vmem:[#allocation5 + $0x2f0] sm:$0xff]
        %v847 = vld [vmem:[#allocation5 + $0x2f8] sm:$0xff]
        %v848 = vld [vmem:[#allocation5 + $0x300] sm:$0xff]
        %v849 = vld [vmem:[#allocation5 + $0x308] sm:$0xff]
        %v850 = vld [vmem:[#allocation5 + $0x310] sm:$0xff]
        %v851 = vld [vmem:[#allocation5 + $0x318] sm:$0xff]
        %v852 = vld [vmem:[#allocation5 + $0x320] sm:$0xff]
        %v853 = vld [vmem:[#allocation5 + $0x328] sm:$0xff]
        %v854 = vld [vmem:[#allocation5 + $0x330] sm:$0xff]
        %v855 = vld [vmem:[#allocation5 + $0x338] sm:$0xff]
        %v856 = vld [vmem:[#allocation5 + $0x340] sm:$0xff]
        %v857 = vld [vmem:[#allocation5 + $0x348] sm:$0xff]
        %v858 = vld [vmem:[#allocation5 + $0x350] sm:$0xff]
        %v859 = vld [vmem:[#allocation5 + $0x358] sm:$0xff]
        %v860 = vld [vmem:[#allocation5 + $0x360] sm:$0xff]
        %v861 = vld [vmem:[#allocation5 + $0x368] sm:$0xff]
        %v862 = vld [vmem:[#allocation5 + $0x370] sm:$0xff]
        %v863 = vld [vmem:[#allocation5 + $0x378] sm:$0xff]
        %v864 = vld [vmem:[#allocation5 + $0x380] sm:$0xff]
        %v865 = vld [vmem:[#allocation5 + $0x388] sm:$0xff]
        %v866 = vld [vmem:[#allocation5 + $0x390] sm:$0xff]
        %v867 = vld [vmem:[#allocation5 + $0x398] sm:$0xff]
        %v868 = vld [vmem:[#allocation5 + $0x3a0] sm:$0xff]
        %v869 = vld [vmem:[#allocation5 + $0x3a8] sm:$0xff]
        %v870 = vld [vmem:[#allocation5 + $0x3b0] sm:$0xff]
        %v871 = vld [vmem:[#allocation5 + $0x3b8] sm:$0xff]
        %v872 = vld [vmem:[#allocation5 + $0x3c0] sm:$0xff]
        %v873 = vld [vmem:[#allocation5 + $0x3c8] sm:$0xff]
        %v874 = vld [vmem:[#allocation5 + $0x3d0] sm:$0xff]
        %v875 = vld [vmem:[#allocation5 + $0x3d8] sm:$0xff]
        %v876 = vld [vmem:[#allocation5 + $0x3e0] sm:$0xff]
        %v877 = vld [vmem:[#allocation5 + $0x3e8] sm:$0xff]
        %v878 = vld [vmem:[#allocation5 + $0x3f0] sm:$0xff]
        %v879 = vld [vmem:[#allocation5 + $0x3f8] sm:$0xff]
        %v880 = vsub.f32 %v752, %v624
        %v881 = vsub.f32 %v753, %v625
        %v882 = vsub.f32 %v754, %v626
        %v883 = vsub.f32 %v755, %v627
        %v884 = vsub.f32 %v756, %v628
        %v885 = vsub.f32 %v757, %v629
        %v886 = vsub.f32 %v758, %v630
        %v887 = vsub.f32 %v759, %v631
        %v888 = vsub.f32 %v760, %v632
        %v889 = vsub.f32 %v761, %v633
        %v890 = vsub.f32 %v762, %v634
        %v891 = vsub.f32 %v763, %v635
        %v892 = vsub.f32 %v764, %v636
        %v893 = vsub.f32 %v765, %v637
        %v894 = vsub.f32 %v766, %v638
        %v895 = vsub.f32 %v767, %v639
        %v896 = vsub.f32 %v768, %v640
        %v897 = vsub.f32 %v769, %v641
        %v898 = vsub.f32 %v770, %v642
        %v899 = vsub.f32 %v771, %v643
        %v900 = vsub.f32 %v772, %v644
        %v901 = vsub.f32 %v773, %v645
        %v902 = vsub.f32 %v774, %v646
        %v903 = vsub.f32 %v775, %v647
        %v904 = vsub.f32 %v776, %v648
        %v905 = vsub.f32 %v777, %v649
        %v906 = vsub.f32 %v778, %v650
        %v907 = vsub.f32 %v779, %v651
        %v908 = vsub.f32 %v780, %v652
        %v909 = vsub.f32 %v781, %v653
        %v910 = vsub.f32 %v782, %v654
        %v911 = vsub.f32 %v783, %v655
        %v912 = vsub.f32 %v784, %v656
        %v913 = vsub.f32 %v785, %v657
        %v914 = vsub.f32 %v786, %v658
        %v915 = vsub.f32 %v787, %v659
        %v916 = vsub.f32 %v788, %v660
        %v917 = vsub.f32 %v789, %v661
        %v918 = vsub.f32 %v790, %v662
        %v919 = vsub.f32 %v791, %v663
        %v920 = vsub.f32 %v792, %v664
        %v921 = vsub.f32 %v793, %v665
        %v922 = vsub.f32 %v794, %v666
        %v923 = vsub.f32 %v795, %v667
        %v924 = vsub.f32 %v796, %v668
        %v925 = vsub.f32 %v797, %v669
        %v926 = vsub.f32 %v798, %v670
        %v927 = vsub.f32 %v799, %v671
        %v928 = vsub.f32 %v800, %v672
        %v929 = vsub.f32 %v801, %v673
        %v930 = vsub.f32 %v802, %v674
        %v931 = vsub.f32 %v803, %v675
        %v932 = vsub.f32 %v804, %v676
        %v933 = vsub.f32 %v805, %v677
        %v934 = vsub.f32 %v806, %v678
        %v935 = vsub.f32 %v807, %v679
        %v936 = vsub.f32 %v808, %v680
        %v937 = vsub.f32 %v809, %v681
        %v938 = vsub.f32 %v810, %v682
        %v939 = vsub.f32 %v811, %v683
        %v940 = vsub.f32 %v812, %v684
        %v941 = vsub.f32 %v813, %v685
        %v942 = vsub.f32 %v814, %v686
        %v943 = vsub.f32 %v815, %v687
        %v944 = vsub.f32 %v816, %v688
        %v945 = vsub.f32 %v817, %v689
        %v946 = vsub.f32 %v818, %v690
        %v947 = vsub.f32 %v819, %v691
        %v948 = vsub.f32 %v820, %v692
        %v949 = vsub.f32 %v821, %v693
        %v950 = vsub.f32 %v822, %v694
        %v951 = vsub.f32 %v823, %v695
        %v952 = vsub.f32 %v824, %v696
        %v953 = vsub.f32 %v825, %v697
        %v954 = vsub.f32 %v826, %v698
        %v955 = vsub.f32 %v827, %v699
        %v956 = vsub.f32 %v828, %v700
        %v957 = vsub.f32 %v829, %v701
        %v958 = vsub.f32 %v830, %v702
        %v959 = vsub.f32 %v831, %v703
        %v960 = vsub.f32 %v832, %v704
        %v961 = vsub.f32 %v833, %v705
        %v962 = vsub.f32 %v834, %v706
        %v963 = vsub.f32 %v835, %v707
        %v964 = vsub.f32 %v836, %v708
        %v965 = vsub.f32 %v837, %v709
        %v966 = vsub.f32 %v838, %v710
        %v967 = vsub.f32 %v839, %v711
        %v968 = vsub.f32 %v840, %v712
        %v969 = vsub.f32 %v841, %v713
        %v970 = vsub.f32 %v842, %v714
        %v971 = vsub.f32 %v843, %v715
        %v972 = vsub.f32 %v844, %v716
        %v973 = vsub.f32 %v845, %v717
        %v974 = vsub.f32 %v846, %v718
        %v975 = vsub.f32 %v847, %v719
        %v976 = vsub.f32 %v848, %v720
        %v977 = vsub.f32 %v849, %v721
        %v978 = vsub.f32 %v850, %v722
        %v979 = vsub.f32 %v851, %v723
        %v980 = vsub.f32 %v852, %v724
        %v981 = vsub.f32 %v853, %v725
        %v982 = vsub.f32 %v854, %v726
        %v983 = vsub.f32 %v855, %v727
        %v984 = vsub.f32 %v856, %v728
        %v985 = vsub.f32 %v857, %v729
        %v986 = vsub.f32 %v858, %v730
        %v987 = vsub.f32 %v859, %v731
        %v988 = vsub.f32 %v860, %v732
        %v989 = vsub.f32 %v861, %v733
        %v990 = vsub.f32 %v862, %v734
        %v991 = vsub.f32 %v863, %v735
        %v992 = vsub.f32 %v864, %v736
        %v993 = vsub.f32 %v865, %v737
        %v994 = vsub.f32 %v866, %v738
        %v995 = vsub.f32 %v867, %v739
        %v996 = vsub.f32 %v868, %v740
        %v997 = vsub.f32 %v869, %v741
        %v998 = vsub.f32 %v870, %v742
        %v999 = vsub.f32 %v871, %v743
        %v1000 = vsub.f32 %v872, %v744
        %v1001 = vsub.f32 %v873, %v745
        %v1002 = vsub.f32 %v874, %v746
        %v1003 = vsub.f32 %v875, %v747
        %v1004 = vsub.f32 %v876, %v748
        %v1005 = vsub.f32 %v877, %v749
        %v1006 = vsub.f32 %v878, %v750
        %v1007 = vsub.f32 %v879, %v751
        %v1008 = vmul.f32 %v880, 0.999
        %v1009 = vmul.f32 %v881, 0.999
        %v1010 = vmul.f32 %v882, 0.999
        %v1011 = vmul.f32 %v883, 0.999
        %v1012 = vmul.f32 %v884, 0.999
        %v1013 = vmul.f32 %v885, 0.999
        %v1014 = vmul.f32 %v886, 0.999
        %v1015 = vmul.f32 %v887, 0.999
        %v1016 = vmul.f32 %v888, 0.999
        %v1017 = vmul.f32 %v889, 0.999
        %v1018 = vmul.f32 %v890, 0.999
        %v1019 = vmul.f32 %v891, 0.999
        %v1020 = vmul.f32 %v892, 0.999
        %v1021 = vmul.f32 %v893, 0.999
        %v1022 = vmul.f32 %v894, 0.999
        %v1023 = vmul.f32 %v895, 0.999
        %v1024 = vmul.f32 %v896, 0.999
        %v1025 = vmul.f32 %v897, 0.999
        %v1026 = vmul.f32 %v898, 0.999
        %v1027 = vmul.f32 %v899, 0.999
        %v1028 = vmul.f32 %v900, 0.999
        %v1029 = vmul.f32 %v901, 0.999
        %v1030 = vmul.f32 %v902, 0.999
        %v1031 = vmul.f32 %v903, 0.999
        %v1032 = vmul.f32 %v904, 0.999
        %v1033 = vmul.f32 %v905, 0.999
        %v1034 = vmul.f32 %v906, 0.999
        %v1035 = vmul.f32 %v907, 0.999
        %v1036 = vmul.f32 %v908, 0.999
        %v1037 = vmul.f32 %v909, 0.999
        %v1038 = vmul.f32 %v910, 0.999
        %v1039 = vmul.f32 %v911, 0.999
        %v1040 = vmul.f32 %v912, 0.999
        %v1041 = vmul.f32 %v913, 0.999
        %v1042 = vmul.f32 %v914, 0.999
        %v1043 = vmul.f32 %v915, 0.999
        %v1044 = vmul.f32 %v916, 0.999
        %v1045 = vmul.f32 %v917, 0.999
        %v1046 = vmul.f32 %v918, 0.999
        %v1047 = vmul.f32 %v919, 0.999
        %v1048 = vmul.f32 %v920, 0.999
        %v1049 = vmul.f32 %v921, 0.999
        %v1050 = vmul.f32 %v922, 0.999
        %v1051 = vmul.f32 %v923, 0.999
        %v1052 = vmul.f32 %v924, 0.999
        %v1053 = vmul.f32 %v925, 0.999
        %v1054 = vmul.f32 %v926, 0.999
        %v1055 = vmul.f32 %v927, 0.999
        %v1056 = vmul.f32 %v928, 0.999
        %v1057 = vmul.f32 %v929, 0.999
        %v1058 = vmul.f32 %v930, 0.999
        %v1059 = vmul.f32 %v931, 0.999
        %v1060 = vmul.f32 %v932, 0.999
        %v1061 = vmul.f32 %v933, 0.999
        %v1062 = vmul.f32 %v934, 0.999
        %v1063 = vmul.f32 %v935, 0.999
        %v1064 = vmul.f32 %v936, 0.999
        %v1065 = vmul.f32 %v937, 0.999
        %v1066 = vmul.f32 %v938, 0.999
        %v1067 = vmul.f32 %v939, 0.999
        %v1068 = vmul.f32 %v940, 0.999
        %v1069 = vmul.f32 %v941, 0.999
        %v1070 = vmul.f32 %v942, 0.999
        %v1071 = vmul.f32 %v943, 0.999
        %v1072 = vmul.f32 %v944, 0.999
        %v1073 = vmul.f32 %v945, 0.999
        %v1074 = vmul.f32 %v946, 0.999
        %v1075 = vmul.f32 %v947, 0.999
        %v1076 = vmul.f32 %v948, 0.999
        %v1077 = vmul.f32 %v949, 0.999
        %v1078 = vmul.f32 %v950, 0.999
        %v1079 = vmul.f32 %v951, 0.999
        %v1080 = vmul.f32 %v952, 0.999
        %v1081 = vmul.f32 %v953, 0.999
        %v1082 = vmul.f32 %v954, 0.999
        %v1083 = vmul.f32 %v955, 0.999
        %v1084 = vmul.f32 %v956, 0.999
        %v1085 = vmul.f32 %v957, 0.999
        %v1086 = vmul.f32 %v958, 0.999
        %v1087 = vmul.f32 %v959, 0.999
        %v1088 = vmul.f32 %v960, 0.999
        %v1089 = vmul.f32 %v961, 0.999
        %v1090 = vmul.f32 %v962, 0.999
        %v1091 = vmul.f32 %v963, 0.999
        %v1092 = vmul.f32 %v964, 0.999
        %v1093 = vmul.f32 %v965, 0.999
        %v1094 = vmul.f32 %v966, 0.999
        %v1095 = vmul.f32 %v967, 0.999
        %v1096 = vmul.f32 %v968, 0.999
        %v1097 = vmul.f32 %v969, 0.999
        %v1098 = vmul.f32 %v970, 0.999
        %v1099 = vmul.f32 %v971, 0.999
        %v1100 = vmul.f32 %v972, 0.999
        %v1101 = vmul.f32 %v973, 0.999
        %v1102 = vmul.f32 %v974, 0.999
        %v1103 = vmul.f32 %v975, 0.999
        %v1104 = vmul.f32 %v976, 0.999
        %v1105 = vmul.f32 %v977, 0.999
        %v1106 = vmul.f32 %v978, 0.999
        %v1107 = vmul.f32 %v979, 0.999
        %v1108 = vmul.f32 %v980, 0.999
        %v1109 = vmul.f32 %v981, 0.999
        %v1110 = vmul.f32 %v982, 0.999
        %v1111 = vmul.f32 %v983, 0.999
        %v1112 = vmul.f32 %v984, 0.999
        %v1113 = vmul.f32 %v985, 0.999
        %v1114 = vmul.f32 %v986, 0.999
        %v1115 = vmul.f32 %v987, 0.999
        %v1116 = vmul.f32 %v988, 0.999
        %v1117 = vmul.f32 %v989, 0.999
        %v1118 = vmul.f32 %v990, 0.999
        %v1119 = vmul.f32 %v991, 0.999
        %v1120 = vmul.f32 %v992, 0.999
        %v1121 = vmul.f32 %v993, 0.999
        %v1122 = vmul.f32 %v994, 0.999
        %v1123 = vmul.f32 %v995, 0.999
        %v1124 = vmul.f32 %v996, 0.999
        %v1125 = vmul.f32 %v997, 0.999
        %v1126 = vmul.f32 %v998, 0.999
        %v1127 = vmul.f32 %v999, 0.999
        %v1128 = vmul.f32 %v1000, 0.999
        %v1129 = vmul.f32 %v1001, 0.999
        %v1130 = vmul.f32 %v1002, 0.999
        %v1131 = vmul.f32 %v1003, 0.999
        %v1132 = vmul.f32 %v1004, 0.999
        %v1133 = vmul.f32 %v1005, 0.999
        %v1134 = vmul.f32 %v1006, 0.999
        %v1135 = vmul.f32 %v1007, 0.999
        %v1136 = vadd.f32 %v624, %v1008
        %v1137 = vadd.f32 %v625, %v1009
        %v1138 = vadd.f32 %v626, %v1010
        %v1139 = vadd.f32 %v627, %v1011
        %v1140 = vadd.f32 %v628, %v1012
        %v1141 = vadd.f32 %v629, %v1013
        %v1142 = vadd.f32 %v630, %v1014
        %v1143 = vadd.f32 %v631, %v1015
        %v1144 = vadd.f32 %v632, %v1016
        %v1145 = vadd.f32 %v633, %v1017
        %v1146 = vadd.f32 %v634, %v1018
        %v1147 = vadd.f32 %v635, %v1019
        %v1148 = vadd.f32 %v636, %v1020
        %v1149 = vadd.f32 %v637, %v1021
        %v1150 = vadd.f32 %v638, %v1022
        %v1151 = vadd.f32 %v639, %v1023
        %v1152 = vadd.f32 %v640, %v1024
        %v1153 = vadd.f32 %v641, %v1025
        %v1154 = vadd.f32 %v642, %v1026
        %v1155 = vadd.f32 %v643, %v1027
        %v1156 = vadd.f32 %v644, %v1028
        %v1157 = vadd.f32 %v645, %v1029
        %v1158 = vadd.f32 %v646, %v1030
        %v1159 = vadd.f32 %v647, %v1031
        %v1160 = vadd.f32 %v648, %v1032
        %v1161 = vadd.f32 %v649, %v1033
        %v1162 = vadd.f32 %v650, %v1034
        %v1163 = vadd.f32 %v651, %v1035
        %v1164 = vadd.f32 %v652, %v1036
        %v1165 = vadd.f32 %v653, %v1037
        %v1166 = vadd.f32 %v654, %v1038
        %v1167 = vadd.f32 %v655, %v1039
        %v1168 = vadd.f32 %v656, %v1040
        %v1169 = vadd.f32 %v657, %v1041
        %v1170 = vadd.f32 %v658, %v1042
        %v1171 = vadd.f32 %v659, %v1043
        %v1172 = vadd.f32 %v660, %v1044
        %v1173 = vadd.f32 %v661, %v1045
        %v1174 = vadd.f32 %v662, %v1046
        %v1175 = vadd.f32 %v663, %v1047
        %v1176 = vadd.f32 %v664, %v1048
        %v1177 = vadd.f32 %v665, %v1049
        %v1178 = vadd.f32 %v666, %v1050
        %v1179 = vadd.f32 %v667, %v1051
        %v1180 = vadd.f32 %v668, %v1052
        %v1181 = vadd.f32 %v669, %v1053
        %v1182 = vadd.f32 %v670, %v1054
        %v1183 = vadd.f32 %v671, %v1055
        %v1184 = vadd.f32 %v672, %v1056
        %v1185 = vadd.f32 %v673, %v1057
        %v1186 = vadd.f32 %v674, %v1058
        %v1187 = vadd.f32 %v675, %v1059
        %v1188 = vadd.f32 %v676, %v1060
        %v1189 = vadd.f32 %v677, %v1061
        %v1190 = vadd.f32 %v678, %v1062
        %v1191 = vadd.f32 %v679, %v1063
        %v1192 = vadd.f32 %v680, %v1064
        %v1193 = vadd.f32 %v681, %v1065
        %v1194 = vadd.f32 %v682, %v1066
        %v1195 = vadd.f32 %v683, %v1067
        %v1196 = vadd.f32 %v684, %v1068
        %v1197 = vadd.f32 %v685, %v1069
        %v1198 = vadd.f32 %v686, %v1070
        %v1199 = vadd.f32 %v687, %v1071
        %v1200 = vadd.f32 %v688, %v1072
        %v1201 = vadd.f32 %v689, %v1073
        %v1202 = vadd.f32 %v690, %v1074
        %v1203 = vadd.f32 %v691, %v1075
        %v1204 = vadd.f32 %v692, %v1076
        %v1205 = vadd.f32 %v693, %v1077
        %v1206 = vadd.f32 %v694, %v1078
        %v1207 = vadd.f32 %v695, %v1079
        %v1208 = vadd.f32 %v696, %v1080
        %v1209 = vadd.f32 %v697, %v1081
        %v1210 = vadd.f32 %v698, %v1082
        %v1211 = vadd.f32 %v699, %v1083
        %v1212 = vadd.f32 %v700, %v1084
        %v1213 = vadd.f32 %v701, %v1085
        %v1214 = vadd.f32 %v702, %v1086
        %v1215 = vadd.f32 %v703, %v1087
        %v1216 = vadd.f32 %v704, %v1088
        %v1217 = vadd.f32 %v705, %v1089
        %v1218 = vadd.f32 %v706, %v1090
        %v1219 = vadd.f32 %v707, %v1091
        %v1220 = vadd.f32 %v708, %v1092
        %v1221 = vadd.f32 %v709, %v1093
        %v1222 = vadd.f32 %v710, %v1094
        %v1223 = vadd.f32 %v711, %v1095
        %v1224 = vadd.f32 %v712, %v1096
        %v1225 = vadd.f32 %v713, %v1097
        %v1226 = vadd.f32 %v714, %v1098
        %v1227 = vadd.f32 %v715, %v1099
        %v1228 = vadd.f32 %v716, %v1100
        %v1229 = vadd.f32 %v717, %v1101
        %v1230 = vadd.f32 %v718, %v1102
        %v1231 = vadd.f32 %v719, %v1103
        %v1232 = vadd.f32 %v720, %v1104
        %v1233 = vadd.f32 %v721, %v1105
        %v1234 = vadd.f32 %v722, %v1106
        %v1235 = vadd.f32 %v723, %v1107
        %v1236 = vadd.f32 %v724, %v1108
        %v1237 = vadd.f32 %v725, %v1109
        %v1238 = vadd.f32 %v726, %v1110
        %v1239 = vadd.f32 %v727, %v1111
        %v1240 = vadd.f32 %v728, %v1112
        %v1241 = vadd.f32 %v729, %v1113
        %v1242 = vadd.f32 %v730, %v1114
        %v1243 = vadd.f32 %v731, %v1115
        %v1244 = vadd.f32 %v732, %v1116
        %v1245 = vadd.f32 %v733, %v1117
        %v1246 = vadd.f32 %v734, %v1118
        %v1247 = vadd.f32 %v735, %v1119
        %v1248 = vadd.f32 %v736, %v1120
        %v1249 = vadd.f32 %v737, %v1121
        %v1250 = vadd.f32 %v738, %v1122
        %v1251 = vadd.f32 %v739, %v1123
        %v1252 = vadd.f32 %v740, %v1124
        %v1253 = vadd.f32 %v741, %v1125
        %v1254 = vadd.f32 %v742, %v1126
        %v1255 = vadd.f32 %v743, %v1127
        %v1256 = vadd.f32 %v744, %v1128
        %v1257 = vadd.f32 %v745, %v1129
        %v1258 = vadd.f32 %v746, %v1130
        %v1259 = vadd.f32 %v747, %v1131
        %v1260 = vadd.f32 %v748, %v1132
        %v1261 = vadd.f32 %v749, %v1133
        %v1262 = vadd.f32 %v750, %v1134
        %v1263 = vadd.f32 %v751, %v1135
        %1264 = vst [vmem:[#allocation7] sm:$0xff] %v1136
        %1265 = vst [vmem:[#allocation7 + $0x8] sm:$0xff] %v1137
        %1266 = vst [vmem:[#allocation7 + $0x10] sm:$0xff] %v1138
        %1267 = vst [vmem:[#allocation7 + $0x18] sm:$0xff] %v1139
        %1268 = vst [vmem:[#allocation7 + $0x20] sm:$0xff] %v1140
        %1269 = vst [vmem:[#allocation7 + $0x28] sm:$0xff] %v1141
        %1270 = vst [vmem:[#allocation7 + $0x30] sm:$0xff] %v1142
        %1271 = vst [vmem:[#allocation7 + $0x38] sm:$0xff] %v1143
        %1272 = vst [vmem:[#allocation7 + $0x40] sm:$0xff] %v1144
        %1273 = vst [vmem:[#allocation7 + $0x48] sm:$0xff] %v1145
        %1274 = vst [vmem:[#allocation7 + $0x50] sm:$0xff] %v1146
        %1275 = vst [vmem:[#allocation7 + $0x58] sm:$0xff] %v1147
        %1276 = vst [vmem:[#allocation7 + $0x60] sm:$0xff] %v1148
        %1277 = vst [vmem:[#allocation7 + $0x68] sm:$0xff] %v1149
        %1278 = vst [vmem:[#allocation7 + $0x70] sm:$0xff] %v1150
        %1279 = vst [vmem:[#allocation7 + $0x78] sm:$0xff] %v1151
        %1280 = vst [vmem:[#allocation7 + $0x80] sm:$0xff] %v1152
        %1281 = vst [vmem:[#allocation7 + $0x88] sm:$0xff] %v1153
        %1282 = vst [vmem:[#allocation7 + $0x90] sm:$0xff] %v1154
        %1283 = vst [vmem:[#allocation7 + $0x98] sm:$0xff] %v1155
        %1284 = vst [vmem:[#allocation7 + $0xa0] sm:$0xff] %v1156
        %1285 = vst [vmem:[#allocation7 + $0xa8] sm:$0xff] %v1157
        %1286 = vst [vmem:[#allocation7 + $0xb0] sm:$0xff] %v1158
        %1287 = vst [vmem:[#allocation7 + $0xb8] sm:$0xff] %v1159
        %1288 = vst [vmem:[#allocation7 + $0xc0] sm:$0xff] %v1160
        %1289 = vst [vmem:[#allocation7 + $0xc8] sm:$0xff] %v1161
        %1290 = vst [vmem:[#allocation7 + $0xd0] sm:$0xff] %v1162
        %1291 = vst [vmem:[#allocation7 + $0xd8] sm:$0xff] %v1163
        %1292 = vst [vmem:[#allocation7 + $0xe0] sm:$0xff] %v1164
        %1293 = vst [vmem:[#allocation7 + $0xe8] sm:$0xff] %v1165
        %1294 = vst [vmem:[#allocation7 + $0xf0] sm:$0xff] %v1166
        %1295 = vst [vmem:[#allocation7 + $0xf8] sm:$0xff] %v1167
        %1296 = vst [vmem:[#allocation7 + $0x100] sm:$0xff] %v1168
        %1297 = vst [vmem:[#allocation7 + $0x108] sm:$0xff] %v1169
        %1298 = vst [vmem:[#allocation7 + $0x110] sm:$0xff] %v1170
        %1299 = vst [vmem:[#allocation7 + $0x118] sm:$0xff] %v1171
        %1300 = vst [vmem:[#allocation7 + $0x120] sm:$0xff] %v1172
        %1301 = vst [vmem:[#allocation7 + $0x128] sm:$0xff] %v1173
        %1302 = vst [vmem:[#allocation7 + $0x130] sm:$0xff] %v1174
        %1303 = vst [vmem:[#allocation7 + $0x138] sm:$0xff] %v1175
        %1304 = vst [vmem:[#allocation7 + $0x140] sm:$0xff] %v1176
        %1305 = vst [vmem:[#allocation7 + $0x148] sm:$0xff] %v1177
        %1306 = vst [vmem:[#allocation7 + $0x150] sm:$0xff] %v1178
        %1307 = vst [vmem:[#allocation7 + $0x158] sm:$0xff] %v1179
        %1308 = vst [vmem:[#allocation7 + $0x160] sm:$0xff] %v1180
        %1309 = vst [vmem:[#allocation7 + $0x168] sm:$0xff] %v1181
        %1310 = vst [vmem:[#allocation7 + $0x170] sm:$0xff] %v1182
        %1311 = vst [vmem:[#allocation7 + $0x178] sm:$0xff] %v1183
        %1312 = vst [vmem:[#allocation7 + $0x180] sm:$0xff] %v1184
        %1313 = vst [vmem:[#allocation7 + $0x188] sm:$0xff] %v1185
        %1314 = vst [vmem:[#allocation7 + $0x190] sm:$0xff] %v1186
        %1315 = vst [vmem:[#allocation7 + $0x198] sm:$0xff] %v1187
        %1316 = vst [vmem:[#allocation7 + $0x1a0] sm:$0xff] %v1188
        %1317 = vst [vmem:[#allocation7 + $0x1a8] sm:$0xff] %v1189
        %1318 = vst [vmem:[#allocation7 + $0x1b0] sm:$0xff] %v1190
        %1319 = vst [vmem:[#allocation7 + $0x1b8] sm:$0xff] %v1191
        %1320 = vst [vmem:[#allocation7 + $0x1c0] sm:$0xff] %v1192
        %1321 = vst [vmem:[#allocation7 + $0x1c8] sm:$0xff] %v1193
        %1322 = vst [vmem:[#allocation7 + $0x1d0] sm:$0xff] %v1194
        %1323 = vst [vmem:[#allocation7 + $0x1d8] sm:$0xff] %v1195
        %1324 = vst [vmem:[#allocation7 + $0x1e0] sm:$0xff] %v1196
        %1325 = vst [vmem:[#allocation7 + $0x1e8] sm:$0xff] %v1197
        %1326 = vst [vmem:[#allocation7 + $0x1f0] sm:$0xff] %v1198
        %1327 = vst [vmem:[#allocation7 + $0x1f8] sm:$0xff] %v1199
        %1328 = vst [vmem:[#allocation7 + $0x200] sm:$0xff] %v1200
        %1329 = vst [vmem:[#allocation7 + $0x208] sm:$0xff] %v1201
        %1330 = vst [vmem:[#allocation7 + $0x210] sm:$0xff] %v1202
        %1331 = vst [vmem:[#allocation7 + $0x218] sm:$0xff] %v1203
        %1332 = vst [vmem:[#allocation7 + $0x220] sm:$0xff] %v1204
        %1333 = vst [vmem:[#allocation7 + $0x228] sm:$0xff] %v1205
        %1334 = vst [vmem:[#allocation7 + $0x230] sm:$0xff] %v1206
        %1335 = vst [vmem:[#allocation7 + $0x238] sm:$0xff] %v1207
        %1336 = vst [vmem:[#allocation7 + $0x240] sm:$0xff] %v1208
        %1337 = vst [vmem:[#allocation7 + $0x248] sm:$0xff] %v1209
        %1338 = vst [vmem:[#allocation7 + $0x250] sm:$0xff] %v1210
        %1339 = vst [vmem:[#allocation7 + $0x258] sm:$0xff] %v1211
        %1340 = vst [vmem:[#allocation7 + $0x260] sm:$0xff] %v1212
        %1341 = vst [vmem:[#allocation7 + $0x268] sm:$0xff] %v1213
        %1342 = vst [vmem:[#allocation7 + $0x270] sm:$0xff] %v1214
        %1343 = vst [vmem:[#allocation7 + $0x278] sm:$0xff] %v1215
        %1344 = vst [vmem:[#allocation7 + $0x280] sm:$0xff] %v1216
        %1345 = vst [vmem:[#allocation7 + $0x288] sm:$0xff] %v1217
        %1346 = vst [vmem:[#allocation7 + $0x290] sm:$0xff] %v1218
        %1347 = vst [vmem:[#allocation7 + $0x298] sm:$0xff] %v1219
        %1348 = vst [vmem:[#allocation7 + $0x2a0] sm:$0xff] %v1220
        %1349 = vst [vmem:[#allocation7 + $0x2a8] sm:$0xff] %v1221
        %1350 = vst [vmem:[#allocation7 + $0x2b0] sm:$0xff] %v1222
        %1351 = vst [vmem:[#allocation7 + $0x2b8] sm:$0xff] %v1223
        %1352 = vst [vmem:[#allocation7 + $0x2c0] sm:$0xff] %v1224
        %1353 = vst [vmem:[#allocation7 + $0x2c8] sm:$0xff] %v1225
        %1354 = vst [vmem:[#allocation7 + $0x2d0] sm:$0xff] %v1226
        %1355 = vst [vmem:[#allocation7 + $0x2d8] sm:$0xff] %v1227
        %1356 = vst [vmem:[#allocation7 + $0x2e0] sm:$0xff] %v1228
        %1357 = vst [vmem:[#allocation7 + $0x2e8] sm:$0xff] %v1229
        %1358 = vst [vmem:[#allocation7 + $0x2f0] sm:$0xff] %v1230
        %1359 = vst [vmem:[#allocation7 + $0x2f8] sm:$0xff] %v1231
        %1360 = vst [vmem:[#allocation7 + $0x300] sm:$0xff] %v1232
        %1361 = vst [vmem:[#allocation7 + $0x308] sm:$0xff] %v1233
        %1362 = vst [vmem:[#allocation7 + $0x310] sm:$0xff] %v1234
        %1363 = vst [vmem:[#allocation7 + $0x318] sm:$0xff] %v1235
        %1364 = vst [vmem:[#allocation7 + $0x320] sm:$0xff] %v1236
        %1365 = vst [vmem:[#allocation7 + $0x328] sm:$0xff] %v1237
        %1366 = vst [vmem:[#allocation7 + $0x330] sm:$0xff] %v1238
        %1367 = vst [vmem:[#allocation7 + $0x338] sm:$0xff] %v1239
        %1368 = vst [vmem:[#allocation7 + $0x340] sm:$0xff] %v1240
        %1369 = vst [vmem:[#allocation7 + $0x348] sm:$0xff] %v1241
        %1370 = vst [vmem:[#allocation7 + $0x350] sm:$0xff] %v1242
        %1371 = vst [vmem:[#allocation7 + $0x358] sm:$0xff] %v1243
        %1372 = vst [vmem:[#allocation7 + $0x360] sm:$0xff] %v1244
        %1373 = vst [vmem:[#allocation7 + $0x368] sm:$0xff] %v1245
        %1374 = vst [vmem:[#allocation7 + $0x370] sm:$0xff] %v1246
        %1375 = vst [vmem:[#allocation7 + $0x378] sm:$0xff] %v1247
        %1376 = vst [vmem:[#allocation7 + $0x380] sm:$0xff] %v1248
        %1377 = vst [vmem:[#allocation7 + $0x388] sm:$0xff] %v1249
        %1378 = vst [vmem:[#allocation7 + $0x390] sm:$0xff] %v1250
        %1379 = vst [vmem:[#allocation7 + $0x398] sm:$0xff] %v1251
        %1380 = vst [vmem:[#allocation7 + $0x3a0] sm:$0xff] %v1252
        %1381 = vst [vmem:[#allocation7 + $0x3a8] sm:$0xff] %v1253
        %1382 = vst [vmem:[#allocation7 + $0x3b0] sm:$0xff] %v1254
        %1383 = vst [vmem:[#allocation7 + $0x3b8] sm:$0xff] %v1255
        %1384 = vst [vmem:[#allocation7 + $0x3c0] sm:$0xff] %v1256
        %1385 = vst [vmem:[#allocation7 + $0x3c8] sm:$0xff] %v1257
        %1386 = vst [vmem:[#allocation7 + $0x3d0] sm:$0xff] %v1258
        %1387 = vst [vmem:[#allocation7 + $0x3d8] sm:$0xff] %v1259
        %1388 = vst [vmem:[#allocation7 + $0x3e0] sm:$0xff] %v1260
        %1389 = vst [vmem:[#allocation7 + $0x3e8] sm:$0xff] %v1261
        %1390 = vst [vmem:[#allocation7 + $0x3f0] sm:$0xff] %v1262
        %1391 = vst [vmem:[#allocation7 + $0x3f8] sm:$0xff] %v1263
        %v1392 = vstv %s623
        %v1393 = vmul.f32 %v1392, %v880
        %v1394 = vmul.f32 %v1392, %v881
        %v1395 = vmul.f32 %v1392, %v882
        %v1396 = vmul.f32 %v1392, %v883
        %v1397 = vmul.f32 %v1392, %v884
        %v1398 = vmul.f32 %v1392, %v885
        %v1399 = vmul.f32 %v1392, %v886
        %v1400 = vmul.f32 %v1392, %v887
        %v1401 = vmul.f32 %v1392, %v888
        %v1402 = vmul.f32 %v1392, %v889
        %v1403 = vmul.f32 %v1392, %v890
        %v1404 = vmul.f32 %v1392, %v891
        %v1405 = vmul.f32 %v1392, %v892
        %v1406 = vmul.f32 %v1392, %v893
        %v1407 = vmul.f32 %v1392, %v894
        %v1408 = vmul.f32 %v1392, %v895
        %v1409 = vmul.f32 %v1392, %v896
        %v1410 = vmul.f32 %v1392, %v897
        %v1411 = vmul.f32 %v1392, %v898
        %v1412 = vmul.f32 %v1392, %v899
        %v1413 = vmul.f32 %v1392, %v900
        %v1414 = vmul.f32 %v1392, %v901
        %v1415 = vmul.f32 %v1392, %v902
        %v1416 = vmul.f32 %v1392, %v903
        %v1417 = vmul.f32 %v1392, %v904
        %v1418 = vmul.f32 %v1392, %v905
        %v1419 = vmul.f32 %v1392, %v906
        %v1420 = vmul.f32 %v1392, %v907
        %v1421 = vmul.f32 %v1392, %v908
        %v1422 = vmul.f32 %v1392, %v909
        %v1423 = vmul.f32 %v1392, %v910
        %v1424 = vmul.f32 %v1392, %v911
        %v1425 = vmul.f32 %v1392, %v912
        %v1426 = vmul.f32 %v1392, %v913
        %v1427 = vmul.f32 %v1392, %v914
        %v1428 = vmul.f32 %v1392, %v915
        %v1429 = vmul.f32 %v1392, %v916
        %v1430 = vmul.f32 %v1392, %v917
        %v1431 = vmul.f32 %v1392, %v918
        %v1432 = vmul.f32 %v1392, %v919
        %v1433 = vmul.f32 %v1392, %v920
        %v1434 = vmul.f32 %v1392, %v921
        %v1435 = vmul.f32 %v1392, %v922
        %v1436 = vmul.f32 %v1392, %v923
        %v1437 = vmul.f32 %v1392, %v924
        %v1438 = vmul.f32 %v1392, %v925
        %v1439 = vmul.f32 %v1392, %v926
        %v1440 = vmul.f32 %v1392, %v927
        %v1441 = vmul.f32 %v1392, %v928
        %v1442 = vmul.f32 %v1392, %v929
        %v1443 = vmul.f32 %v1392, %v930
        %v1444 = vmul.f32 %v1392, %v931
        %v1445 = vmul.f32 %v1392, %v932
        %v1446 = vmul.f32 %v1392, %v933
        %v1447 = vmul.f32 %v1392, %v934
        %v1448 = vmul.f32 %v1392, %v935
        %v1449 = vmul.f32 %v1392, %v936
        %v1450 = vmul.f32 %v1392, %v937
        %v1451 = vmul.f32 %v1392, %v938
        %v1452 = vmul.f32 %v1392, %v939
        %v1453 = vmul.f32 %v1392, %v940
        %v1454 = vmul.f32 %v1392, %v941
        %v1455 = vmul.f32 %v1392, %v942
        %v1456 = vmul.f32 %v1392, %v943
        %v1457 = vmul.f32 %v1392, %v944
        %v1458 = vmul.f32 %v1392, %v945
        %v1459 = vmul.f32 %v1392, %v946
        %v1460 = vmul.f32 %v1392, %v947
        %v1461 = vmul.f32 %v1392, %v948
        %v1462 = vmul.f32 %v1392, %v949
        %v1463 = vmul.f32 %v1392, %v950
        %v1464 = vmul.f32 %v1392, %v951
        %v1465 = vmul.f32 %v1392, %v952
        %v1466 = vmul.f32 %v1392, %v953
        %v1467 = vmul.f32 %v1392, %v954
        %v1468 = vmul.f32 %v1392, %v955
        %v1469 = vmul.f32 %v1392, %v956
        %v1470 = vmul.f32 %v1392, %v957
        %v1471 = vmul.f32 %v1392, %v958
        %v1472 = vmul.f32 %v1392, %v959
        %v1473 = vmul.f32 %v1392, %v960
        %v1474 = vmul.f32 %v1392, %v961
        %v1475 = vmul.f32 %v1392, %v962
        %v1476 = vmul.f32 %v1392, %v963
        %v1477 = vmul.f32 %v1392, %v964
        %v1478 = vmul.f32 %v1392, %v965
        %v1479 = vmul.f32 %v1392, %v966
        %v1480 = vmul.f32 %v1392, %v967
        %v1481 = vmul.f32 %v1392, %v968
        %v1482 = vmul.f32 %v1392, %v969
        %v1483 = vmul.f32 %v1392, %v970
        %v1484 = vmul.f32 %v1392, %v971
        %v1485 = vmul.f32 %v1392, %v972
        %v1486 = vmul.f32 %v1392, %v973
        %v1487 = vmul.f32 %v1392, %v974
        %v1488 = vmul.f32 %v1392, %v975
        %v1489 = vmul.f32 %v1392, %v976
        %v1490 = vmul.f32 %v1392, %v977
        %v1491 = vmul.f32 %v1392, %v978
        %v1492 = vmul.f32 %v1392, %v979
        %v1493 = vmul.f32 %v1392, %v980
        %v1494 = vmul.f32 %v1392, %v981
        %v1495 = vmul.f32 %v1392, %v982
        %v1496 = vmul.f32 %v1392, %v983
        %v1497 = vmul.f32 %v1392, %v984
        %v1498 = vmul.f32 %v1392, %v985
        %v1499 = vmul.f32 %v1392, %v986
        %v1500 = vmul.f32 %v1392, %v987
        %v1501 = vmul.f32 %v1392, %v988
        %v1502 = vmul.f32 %v1392, %v989
        %v1503 = vmul.f32 %v1392, %v990
        %v1504 = vmul.f32 %v1392, %v991
        %v1505 = vmul.f32 %v1392, %v992
        %v1506 = vmul.f32 %v1392, %v993
        %v1507 = vmul.f32 %v1392, %v994
        %v1508 = vmul.f32 %v1392, %v995
        %v1509 = vmul.f32 %v1392, %v996
        %v1510 = vmul.f32 %v1392, %v997
        %v1511 = vmul.f32 %v1392, %v998
        %v1512 = vmul.f32 %v1392, %v999
        %v1513 = vmul.f32 %v1392, %v1000
        %v1514 = vmul.f32 %v1392, %v1001
        %v1515 = vmul.f32 %v1392, %v1002
        %v1516 = vmul.f32 %v1392, %v1003
        %v1517 = vmul.f32 %v1392, %v1004
        %v1518 = vmul.f32 %v1392, %v1005
        %v1519 = vmul.f32 %v1392, %v1006
        %v1520 = vmul.f32 %v1392, %v1007
        %v1521 = vadd.f32 %v624, %v1393
        %v1522 = vadd.f32 %v625, %v1394
        %v1523 = vadd.f32 %v626, %v1395
        %v1524 = vadd.f32 %v627, %v1396
        %v1525 = vadd.f32 %v628, %v1397
        %v1526 = vadd.f32 %v629, %v1398
        %v1527 = vadd.f32 %v630, %v1399
        %v1528 = vadd.f32 %v631, %v1400
        %v1529 = vadd.f32 %v632, %v1401
        %v1530 = vadd.f32 %v633, %v1402
        %v1531 = vadd.f32 %v634, %v1403
        %v1532 = vadd.f32 %v635, %v1404
        %v1533 = vadd.f32 %v636, %v1405
        %v1534 = vadd.f32 %v637, %v1406
        %v1535 = vadd.f32 %v638, %v1407
        %v1536 = vadd.f32 %v639, %v1408
        %v1537 = vadd.f32 %v640, %v1409
        %v1538 = vadd.f32 %v641, %v1410
        %v1539 = vadd.f32 %v642, %v1411
        %v1540 = vadd.f32 %v643, %v1412
        %v1541 = vadd.f32 %v644, %v1413
        %v1542 = vadd.f32 %v645, %v1414
        %v1543 = vadd.f32 %v646, %v1415
        %v1544 = vadd.f32 %v647, %v1416
        %v1545 = vadd.f32 %v648, %v1417
        %v1546 = vadd.f32 %v649, %v1418
        %v1547 = vadd.f32 %v650, %v1419
        %v1548 = vadd.f32 %v651, %v1420
        %v1549 = vadd.f32 %v652, %v1421
        %v1550 = vadd.f32 %v653, %v1422
        %v1551 = vadd.f32 %v654, %v1423
        %v1552 = vadd.f32 %v655, %v1424
        %v1553 = vadd.f32 %v656, %v1425
        %v1554 = vadd.f32 %v657, %v1426
        %v1555 = vadd.f32 %v658, %v1427
        %v1556 = vadd.f32 %v659, %v1428
        %v1557 = vadd.f32 %v660, %v1429
        %v1558 = vadd.f32 %v661, %v1430
        %v1559 = vadd.f32 %v662, %v1431
        %v1560 = vadd.f32 %v663, %v1432
        %v1561 = vadd.f32 %v664, %v1433
        %v1562 = vadd.f32 %v665, %v1434
        %v1563 = vadd.f32 %v666, %v1435
        %v1564 = vadd.f32 %v667, %v1436
        %v1565 = vadd.f32 %v668, %v1437
        %v1566 = vadd.f32 %v669, %v1438
        %v1567 = vadd.f32 %v670, %v1439
        %v1568 = vadd.f32 %v671, %v1440
        %v1569 = vadd.f32 %v672, %v1441
        %v1570 = vadd.f32 %v673, %v1442
        %v1571 = vadd.f32 %v674, %v1443
        %v1572 = vadd.f32 %v675, %v1444
        %v1573 = vadd.f32 %v676, %v1445
        %v1574 = vadd.f32 %v677, %v1446
        %v1575 = vadd.f32 %v678, %v1447
        %v1576 = vadd.f32 %v679, %v1448
        %v1577 = vadd.f32 %v680, %v1449
        %v1578 = vadd.f32 %v681, %v1450
        %v1579 = vadd.f32 %v682, %v1451
        %v1580 = vadd.f32 %v683, %v1452
        %v1581 = vadd.f32 %v684, %v1453
        %v1582 = vadd.f32 %v685, %v1454
        %v1583 = vadd.f32 %v686, %v1455
        %v1584 = vadd.f32 %v687, %v1456
        %v1585 = vadd.f32 %v688, %v1457
        %v1586 = vadd.f32 %v689, %v1458
        %v1587 = vadd.f32 %v690, %v1459
        %v1588 = vadd.f32 %v691, %v1460
        %v1589 = vadd.f32 %v692, %v1461
        %v1590 = vadd.f32 %v693, %v1462
        %v1591 = vadd.f32 %v694, %v1463
        %v1592 = vadd.f32 %v695, %v1464
        %v1593 = vadd.f32 %v696, %v1465
        %v1594 = vadd.f32 %v697, %v1466
        %v1595 = vadd.f32 %v698, %v1467
        %v1596 = vadd.f32 %v699, %v1468
        %v1597 = vadd.f32 %v700, %v1469
        %v1598 = vadd.f32 %v701, %v1470
        %v1599 = vadd.f32 %v702, %v1471
        %v1600 = vadd.f32 %v703, %v1472
        %v1601 = vadd.f32 %v704, %v1473
        %v1602 = vadd.f32 %v705, %v1474
        %v1603 = vadd.f32 %v706, %v1475
        %v1604 = vadd.f32 %v707, %v1476
        %v1605 = vadd.f32 %v708, %v1477
        %v1606 = vadd.f32 %v709, %v1478
        %v1607 = vadd.f32 %v710, %v1479
        %v1608 = vadd.f32 %v711, %v1480
        %v1609 = vadd.f32 %v712, %v1481
        %v1610 = vadd.f32 %v713, %v1482
        %v1611 = vadd.f32 %v714, %v1483
        %v1612 = vadd.f32 %v715, %v1484
        %v1613 = vadd.f32 %v716, %v1485
        %v1614 = vadd.f32 %v717, %v1486
        %v1615 = vadd.f32 %v718, %v1487
        %v1616 = vadd.f32 %v719, %v1488
        %v1617 = vadd.f32 %v720, %v1489
        %v1618 = vadd.f32 %v721, %v1490
        %v1619 = vadd.f32 %v722, %v1491
        %v1620 = vadd.f32 %v723, %v1492
        %v1621 = vadd.f32 %v724, %v1493
        %v1622 = vadd.f32 %v725, %v1494
        %v1623 = vadd.f32 %v726, %v1495
        %v1624 = vadd.f32 %v727, %v1496
        %v1625 = vadd.f32 %v728, %v1497
        %v1626 = vadd.f32 %v729, %v1498
        %v1627 = vadd.f32 %v730, %v1499
        %v1628 = vadd.f32 %v731, %v1500
        %v1629 = vadd.f32 %v732, %v1501
        %v1630 = vadd.f32 %v733, %v1502
        %v1631 = vadd.f32 %v734, %v1503
        %v1632 = vadd.f32 %v735, %v1504
        %v1633 = vadd.f32 %v736, %v1505
        %v1634 = vadd.f32 %v737, %v1506
        %v1635 = vadd.f32 %v738, %v1507
        %v1636 = vadd.f32 %v739, %v1508
        %v1637 = vadd.f32 %v740, %v1509
        %v1638 = vadd.f32 %v741, %v1510
        %v1639 = vadd.f32 %v742, %v1511
        %v1640 = vadd.f32 %v743, %v1512
        %v1641 = vadd.f32 %v744, %v1513
        %v1642 = vadd.f32 %v745, %v1514
        %v1643 = vadd.f32 %v746, %v1515
        %v1644 = vadd.f32 %v747, %v1516
        %v1645 = vadd.f32 %v748, %v1517
        %v1646 = vadd.f32 %v749, %v1518
        %v1647 = vadd.f32 %v750, %v1519
        %v1648 = vadd.f32 %v751, %v1520
        %v1649 = vld [vmem:[%s2] sm:$0x1]
        %v1650 = vld [vmem:[%s8] sm:$0x1]
        %v1651 = vsub.f32 %v1650, %v1649
        %v1652 = vmul.f32 %v1651, 0.999
        %v1653 = vadd.f32 %v1649, %v1652
        %1654 = vst [vmem:[#allocation8] sm:$0x1] %v1653
        %v1655 = vmul.f32 %v1392, %v1651
        %v1656 = vadd.f32 %v1649, %v1655
        %v1657 = vld [vmem:[%s3] sm:$0xff]
        %v1658 = vld [vmem:[%s3 + $0x8] sm:$0xff]
        %v1659 = vld [vmem:[%s3 + $0x10] sm:$0xff]
        %v1660 = vld [vmem:[%s3 + $0x18] sm:$0xff]
        %v1661 = vld [vmem:[%s3 + $0x20] sm:$0xff]
        %v1662 = vld [vmem:[%s3 + $0x28] sm:$0xff]
        %v1663 = vld [vmem:[%s3 + $0x30] sm:$0xff]
        %v1664 = vld [vmem:[%s3 + $0x38] sm:$0xff]
        %v1665 = vld [vmem:[%s3 + $0x40] sm:$0xff]
        %v1666 = vld [vmem:[%s3 + $0x48] sm:$0xff]
        %v1667 = vld [vmem:[%s3 + $0x50] sm:$0xff]
        %v1668 = vld [vmem:[%s3 + $0x58] sm:$0xff]
        %v1669 = vld [vmem:[%s3 + $0x60] sm:$0xff]
        %v1670 = vld [vmem:[%s3 + $0x68] sm:$0xff]
        %v1671 = vld [vmem:[%s3 + $0x70] sm:$0xff]
        %v1672 = vld [vmem:[%s3 + $0x78] sm:$0xff]
        %v1673 = vld [vmem:[%s9] sm:$0xff]
        %v1674 = vld [vmem:[%s9 + $0x8] sm:$0xff]
        %v1675 = vld [vmem:[%s9 + $0x10] sm:$0xff]
        %v1676 = vld [vmem:[%s9 + $0x18] sm:$0xff]
        %v1677 = vld [vmem:[%s9 + $0x20] sm:$0xff]
        %v1678 = vld [vmem:[%s9 + $0x28] sm:$0xff]
        %v1679 = vld [vmem:[%s9 + $0x30] sm:$0xff]
        %v1680 = vld [vmem:[%s9 + $0x38] sm:$0xff]
        %v1681 = vld [vmem:[%s9 + $0x40] sm:$0xff]
        %v1682 = vld [vmem:[%s9 + $0x48] sm:$0xff]
        %v1683 = vld [vmem:[%s9 + $0x50] sm:$0xff]
        %v1684 = vld [vmem:[%s9 + $0x58] sm:$0xff]
        %v1685 = vld [vmem:[%s9 + $0x60] sm:$0xff]
        %v1686 = vld [vmem:[%s9 + $0x68] sm:$0xff]
        %v1687 = vld [vmem:[%s9 + $0x70] sm:$0xff]
        %v1688 = vld [vmem:[%s9 + $0x78] sm:$0xff]
        %v1689 = vsub.f32 %v1673, %v1657
        %v1690 = vsub.f32 %v1674, %v1658
        %v1691 = vsub.f32 %v1675, %v1659
        %v1692 = vsub.f32 %v1676, %v1660
        %v1693 = vsub.f32 %v1677, %v1661
        %v1694 = vsub.f32 %v1678, %v1662
        %v1695 = vsub.f32 %v1679, %v1663
        %v1696 = vsub.f32 %v1680, %v1664
        %v1697 = vsub.f32 %v1681, %v1665
        %v1698 = vsub.f32 %v1682, %v1666
        %v1699 = vsub.f32 %v1683, %v1667
        %v1700 = vsub.f32 %v1684, %v1668
        %v1701 = vsub.f32 %v1685, %v1669
        %v1702 = vsub.f32 %v1686, %v1670
        %v1703 = vsub.f32 %v1687, %v1671
        %v1704 = vsub.f32 %v1688, %v1672
        %v1705 = vmul.f32 %v1689, 0.999
        %v1706 = vmul.f32 %v1690, 0.999
        %v1707 = vmul.f32 %v1691, 0.999
        %v1708 = vmul.f32 %v1692, 0.999
        %v1709 = vmul.f32 %v1693, 0.999
        %v1710 = vmul.f32 %v1694, 0.999
        %v1711 = vmul.f32 %v1695, 0.999
        %v1712 = vmul.f32 %v1696, 0.999
        %v1713 = vmul.f32 %v1697, 0.999
        %v1714 = vmul.f32 %v1698, 0.999
        %v1715 = vmul.f32 %v1699, 0.999
        %v1716 = vmul.f32 %v1700, 0.999
        %v1717 = vmul.f32 %v1701, 0.999
        %v1718 = vmul.f32 %v1702, 0.999
        %v1719 = vmul.f32 %v1703, 0.999
        %v1720 = vmul.f32 %v1704, 0.999
        %v1721 = vadd.f32 %v1657, %v1705
        %v1722 = vadd.f32 %v1658, %v1706
        %v1723 = vadd.f32 %v1659, %v1707
        %v1724 = vadd.f32 %v1660, %v1708
        %v1725 = vadd.f32 %v1661, %v1709
        %v1726 = vadd.f32 %v1662, %v1710
        %v1727 = vadd.f32 %v1663, %v1711
        %v1728 = vadd.f32 %v1664, %v1712
        %v1729 = vadd.f32 %v1665, %v1713
        %v1730 = vadd.f32 %v1666, %v1714
        %v1731 = vadd.f32 %v1667, %v1715
        %v1732 = vadd.f32 %v1668, %v1716
        %v1733 = vadd.f32 %v1669, %v1717
        %v1734 = vadd.f32 %v1670, %v1718
        %v1735 = vadd.f32 %v1671, %v1719
        %v1736 = vadd.f32 %v1672, %v1720
        %1737 = vst [vmem:[#allocation10] sm:$0xff] %v1721
        %1738 = vst [vmem:[#allocation10 + $0x8] sm:$0xff] %v1722
        %1739 = vst [vmem:[#allocation10 + $0x10] sm:$0xff] %v1723
        %1740 = vst [vmem:[#allocation10 + $0x18] sm:$0xff] %v1724
        %1741 = vst [vmem:[#allocation10 + $0x20] sm:$0xff] %v1725
        %1742 = vst [vmem:[#allocation10 + $0x28] sm:$0xff] %v1726
        %1743 = vst [vmem:[#allocation10 + $0x30] sm:$0xff] %v1727
        %1744 = vst [vmem:[#allocation10 + $0x38] sm:$0xff] %v1728
        %1745 = vst [vmem:[#allocation10 + $0x40] sm:$0xff] %v1729
        %1746 = vst [vmem:[#allocation10 + $0x48] sm:$0xff] %v1730
        %1747 = vst [vmem:[#allocation10 + $0x50] sm:$0xff] %v1731
        %1748 = vst [vmem:[#allocation10 + $0x58] sm:$0xff] %v1732
        %1749 = vst [vmem:[#allocation10 + $0x60] sm:$0xff] %v1733
        %1750 = vst [vmem:[#allocation10 + $0x68] sm:$0xff] %v1734
        %1751 = vst [vmem:[#allocation10 + $0x70] sm:$0xff] %v1735
        %1752 = vst [vmem:[#allocation10 + $0x78] sm:$0xff] %v1736
        %v1753 = vmul.f32 %v1392, %v1689
        %v1754 = vmul.f32 %v1392, %v1690
        %v1755 = vmul.f32 %v1392, %v1691
        %v1756 = vmul.f32 %v1392, %v1692
        %v1757 = vmul.f32 %v1392, %v1693
        %v1758 = vmul.f32 %v1392, %v1694
        %v1759 = vmul.f32 %v1392, %v1695
        %v1760 = vmul.f32 %v1392, %v1696
        %v1761 = vmul.f32 %v1392, %v1697
        %v1762 = vmul.f32 %v1392, %v1698
        %v1763 = vmul.f32 %v1392, %v1699
        %v1764 = vmul.f32 %v1392, %v1700
        %v1765 = vmul.f32 %v1392, %v1701
        %v1766 = vmul.f32 %v1392, %v1702
        %v1767 = vmul.f32 %v1392, %v1703
        %v1768 = vmul.f32 %v1392, %v1704
        %v1769 = vadd.f32 %v1657, %v1753
        %v1770 = vadd.f32 %v1658, %v1754
        %v1771 = vadd.f32 %v1659, %v1755
        %v1772 = vadd.f32 %v1660, %v1756
        %v1773 = vadd.f32 %v1661, %v1757
        %v1774 = vadd.f32 %v1662, %v1758
        %v1775 = vadd.f32 %v1663, %v1759
        %v1776 = vadd.f32 %v1664, %v1760
        %v1777 = vadd.f32 %v1665, %v1761
        %v1778 = vadd.f32 %v1666, %v1762
        %v1779 = vadd.f32 %v1667, %v1763
        %v1780 = vadd.f32 %v1668, %v1764
        %v1781 = vadd.f32 %v1669, %v1765
        %v1782 = vadd.f32 %v1670, %v1766
        %v1783 = vadd.f32 %v1671, %v1767
        %v1784 = vadd.f32 %v1672, %v1768
        %v1785 = vld [vmem:[%s4] sm:$0x1]
        %v1786 = vld [vmem:[%s10] sm:$0x1]
        %v1787 = vsub.f32 %v1786, %v1785
        %v1788 = vmul.f32 %v1787, 0.999
        %v1789 = vadd.f32 %v1785, %v1788
        %1790 = vst [vmem:[#allocation11] sm:$0x1] %v1789
        %v1791 = vmul.f32 %v1392, %v1787
        %v1792 = vadd.f32 %v1785, %v1791
        %v1793 = vld [vmem:[%s5] sm:$0xff]
        %v1794 = vld [vmem:[%s5 + $0x8] sm:$0xff]
        %v1795 = vld [vmem:[%s5 + $0x10] sm:$0xff]
        %v1796 = vld [vmem:[%s5 + $0x18] sm:$0xff]
        %v1797 = vld [vmem:[%s5 + $0x20] sm:$0xff]
        %v1798 = vld [vmem:[%s5 + $0x28] sm:$0xff]
        %v1799 = vld [vmem:[%s5 + $0x30] sm:$0xff]
        %v1800 = vld [vmem:[%s5 + $0x38] sm:$0xff]
        %v1801 = vld [vmem:[%s5 + $0x40] sm:$0xff]
        %v1802 = vld [vmem:[%s5 + $0x48] sm:$0xff]
        %v1803 = vld [vmem:[%s5 + $0x50] sm:$0xff]
        %v1804 = vld [vmem:[%s5 + $0x58] sm:$0xff]
        %v1805 = vld [vmem:[%s5 + $0x60] sm:$0xff]
        %v1806 = vld [vmem:[%s5 + $0x68] sm:$0xff]
        %v1807 = vld [vmem:[%s5 + $0x70] sm:$0xff]
        %v1808 = vld [vmem:[%s5 + $0x78] sm:$0xff]
        %v1809 = vld [vmem:[%s11] sm:$0xff]
        %v1810 = vld [vmem:[%s11 + $0x8] sm:$0xff]
        %v1811 = vld [vmem:[%s11 + $0x10] sm:$0xff]
        %v1812 = vld [vmem:[%s11 + $0x18] sm:$0xff]
        %v1813 = vld [vmem:[%s11 + $0x20] sm:$0xff]
        %v1814 = vld [vmem:[%s11 + $0x28] sm:$0xff]
        %v1815 = vld [vmem:[%s11 + $0x30] sm:$0xff]
        %v1816 = vld [vmem:[%s11 + $0x38] sm:$0xff]
        %v1817 = vld [vmem:[%s11 + $0x40] sm:$0xff]
        %v1818 = vld [vmem:[%s11 + $0x48] sm:$0xff]
        %v1819 = vld [vmem:[%s11 + $0x50] sm:$0xff]
        %v1820 = vld [vmem:[%s11 + $0x58] sm:$0xff]
        %v1821 = vld [vmem:[%s11 + $0x60] sm:$0xff]
        %v1822 = vld [vmem:[%s11 + $0x68] sm:$0xff]
        %v1823 = vld [vmem:[%s11 + $0x70] sm:$0xff]
        %v1824 = vld [vmem:[%s11 + $0x78] sm:$0xff]
        %v1825 = vsub.f32 %v1809, %v1793
        %v1826 = vsub.f32 %v1810, %v1794
        %v1827 = vsub.f32 %v1811, %v1795
        %v1828 = vsub.f32 %v1812, %v1796
        %v1829 = vsub.f32 %v1813, %v1797
        %v1830 = vsub.f32 %v1814, %v1798
        %v1831 = vsub.f32 %v1815, %v1799
        %v1832 = vsub.f32 %v1816, %v1800
        %v1833 = vsub.f32 %v1817, %v1801
        %v1834 = vsub.f32 %v1818, %v1802
        %v1835 = vsub.f32 %v1819, %v1803
        %v1836 = vsub.f32 %v1820, %v1804
        %v1837 = vsub.f32 %v1821, %v1805
        %v1838 = vsub.f32 %v1822, %v1806
        %v1839 = vsub.f32 %v1823, %v1807
        %v1840 = vsub.f32 %v1824, %v1808
        %v1841 = vmul.f32 %v1825, 0.999
        %v1842 = vmul.f32 %v1826, 0.999
        %v1843 = vmul.f32 %v1827, 0.999
        %v1844 = vmul.f32 %v1828, 0.999
        %v1845 = vmul.f32 %v1829, 0.999
        %v1846 = vmul.f32 %v1830, 0.999
        %v1847 = vmul.f32 %v1831, 0.999
        %v1848 = vmul.f32 %v1832, 0.999
        %v1849 = vmul.f32 %v1833, 0.999
        %v1850 = vmul.f32 %v1834, 0.999
        %v1851 = vmul.f32 %v1835, 0.999
        %v1852 = vmul.f32 %v1836, 0.999
        %v1853 = vmul.f32 %v1837, 0.999
        %v1854 = vmul.f32 %v1838, 0.999
        %v1855 = vmul.f32 %v1839, 0.999
        %v1856 = vmul.f32 %v1840, 0.999
        %v1857 = vadd.f32 %v1793, %v1841
        %v1858 = vadd.f32 %v1794, %v1842
        %v1859 = vadd.f32 %v1795, %v1843
        %v1860 = vadd.f32 %v1796, %v1844
        %v1861 = vadd.f32 %v1797, %v1845
        %v1862 = vadd.f32 %v1798, %v1846
        %v1863 = vadd.f32 %v1799, %v1847
        %v1864 = vadd.f32 %v1800, %v1848
        %v1865 = vadd.f32 %v1801, %v1849
        %v1866 = vadd.f32 %v1802, %v1850
        %v1867 = vadd.f32 %v1803, %v1851
        %v1868 = vadd.f32 %v1804, %v1852
        %v1869 = vadd.f32 %v1805, %v1853
        %v1870 = vadd.f32 %v1806, %v1854
        %v1871 = vadd.f32 %v1807, %v1855
        %v1872 = vadd.f32 %v1808, %v1856
        %1873 = vst [vmem:[#allocation13] sm:$0xff] %v1857
        %1874 = vst [vmem:[#allocation13 + $0x8] sm:$0xff] %v1858
        %1875 = vst [vmem:[#allocation13 + $0x10] sm:$0xff] %v1859
        %1876 = vst [vmem:[#allocation13 + $0x18] sm:$0xff] %v1860
        %1877 = vst [vmem:[#allocation13 + $0x20] sm:$0xff] %v1861
        %1878 = vst [vmem:[#allocation13 + $0x28] sm:$0xff] %v1862
        %1879 = vst [vmem:[#allocation13 + $0x30] sm:$0xff] %v1863
        %1880 = vst [vmem:[#allocation13 + $0x38] sm:$0xff] %v1864
        %1881 = vst [vmem:[#allocation13 + $0x40] sm:$0xff] %v1865
        %1882 = vst [vmem:[#allocation13 + $0x48] sm:$0xff] %v1866
        %1883 = vst [vmem:[#allocation13 + $0x50] sm:$0xff] %v1867
        %1884 = vst [vmem:[#allocation13 + $0x58] sm:$0xff] %v1868
        %1885 = vst [vmem:[#allocation13 + $0x60] sm:$0xff] %v1869
        %1886 = vst [vmem:[#allocation13 + $0x68] sm:$0xff] %v1870
        %1887 = vst [vmem:[#allocation13 + $0x70] sm:$0xff] %v1871
        %1888 = vst [vmem:[#allocation13 + $0x78] sm:$0xff] %v1872
        %v1889 = vmul.f32 %v1392, %v1825
        %v1890 = vmul.f32 %v1392, %v1826
        %v1891 = vmul.f32 %v1392, %v1827
        %v1892 = vmul.f32 %v1392, %v1828
        %v1893 = vmul.f32 %v1392, %v1829
        %v1894 = vmul.f32 %v1392, %v1830
        %v1895 = vmul.f32 %v1392, %v1831
        %v1896 = vmul.f32 %v1392, %v1832
        %v1897 = vmul.f32 %v1392, %v1833
        %v1898 = vmul.f32 %v1392, %v1834
        %v1899 = vmul.f32 %v1392, %v1835
        %v1900 = vmul.f32 %v1392, %v1836
        %v1901 = vmul.f32 %v1392, %v1837
        %v1902 = vmul.f32 %v1392, %v1838
        %v1903 = vmul.f32 %v1392, %v1839
        %v1904 = vmul.f32 %v1392, %v1840
        %v1905 = vadd.f32 %v1793, %v1889
        %v1906 = vadd.f32 %v1794, %v1890
        %v1907 = vadd.f32 %v1795, %v1891
        %v1908 = vadd.f32 %v1796, %v1892
        %v1909 = vadd.f32 %v1797, %v1893
        %v1910 = vadd.f32 %v1798, %v1894
        %v1911 = vadd.f32 %v1799, %v1895
        %v1912 = vadd.f32 %v1800, %v1896
        %v1913 = vadd.f32 %v1801, %v1897
        %v1914 = vadd.f32 %v1802, %v1898
        %v1915 = vadd.f32 %v1803, %v1899
        %v1916 = vadd.f32 %v1804, %v1900
        %v1917 = vadd.f32 %v1805, %v1901
        %v1918 = vadd.f32 %v1806, %v1902
        %v1919 = vadd.f32 %v1807, %v1903
        %v1920 = vadd.f32 %v1808, %v1904
        %v1921 = vld [vmem:[%s6] sm:$0x1]
        %v1922 = vld [vmem:[%s12] sm:$0x1]
        %v1923 = vsub.f32 %v1922, %v1921
        %v1924 = vmul.f32 %v1923, 0.999
        %v1925 = vadd.f32 %v1921, %v1924
        %1926 = vst [vmem:[#allocation14] sm:$0x1] %v1925
        %v1927 = vmul.f32 %v1392, %v1923
        %v1928 = vadd.f32 %v1921, %v1927
        %v1929 = vld [vmem:[%s617] sm:$0xff]
        %v1930 = vld [vmem:[%s617 + $0x8] sm:$0xff]
        %v1931 = vld [vmem:[%s617 + $0x10] sm:$0xff]
        %v1932 = vld [vmem:[%s617 + $0x18] sm:$0xff]
        %v1933 = vld [vmem:[%s617 + $0x20] sm:$0xff]
        %v1934 = vld [vmem:[%s617 + $0x28] sm:$0xff]
        %v1935 = vld [vmem:[%s617 + $0x30] sm:$0xff]
        %v1936 = vld [vmem:[%s617 + $0x38] sm:$0xff]
        %v1937 = vpack.c.bf16 %v1929, %v1929
        %v1938 = vpack.c.bf16 %v1930, %v1930
        %v1939 = vpack.c.bf16 %v1931, %v1931
        %v1940 = vpack.c.bf16 %v1932, %v1932
        %v1941 = vpack.c.bf16 %v1933, %v1933
        %v1942 = vpack.c.bf16 %v1934, %v1934
        %v1943 = vpack.c.bf16 %v1935, %v1935
        %v1944 = vpack.c.bf16 %v1936, %v1936
        %v1945 = vpack.c.bf16 %v1522, %v1521
        %v1946 = vpack.c.bf16 %v1524, %v1523
        %v1947 = vpack.c.bf16 %v1526, %v1525
        %v1948 = vpack.c.bf16 %v1528, %v1527
        %v1949 = vpack.c.bf16 %v1530, %v1529
        %v1950 = vpack.c.bf16 %v1532, %v1531
        %v1951 = vpack.c.bf16 %v1534, %v1533
        %v1952 = vpack.c.bf16 %v1536, %v1535
        %v1953 = vpack.c.bf16 %v1538, %v1537
        %v1954 = vpack.c.bf16 %v1540, %v1539
        %v1955 = vpack.c.bf16 %v1542, %v1541
        %v1956 = vpack.c.bf16 %v1544, %v1543
        %v1957 = vpack.c.bf16 %v1546, %v1545
        %v1958 = vpack.c.bf16 %v1548, %v1547
        %v1959 = vpack.c.bf16 %v1550, %v1549
        %v1960 = vpack.c.bf16 %v1552, %v1551
        %v1961 = vpack.c.bf16 %v1554, %v1553
        %v1962 = vpack.c.bf16 %v1556, %v1555
        %v1963 = vpack.c.bf16 %v1558, %v1557
        %v1964 = vpack.c.bf16 %v1560, %v1559
        %v1965 = vpack.c.bf16 %v1562, %v1561
        %v1966 = vpack.c.bf16 %v1564, %v1563
        %v1967 = vpack.c.bf16 %v1566, %v1565
        %v1968 = vpack.c.bf16 %v1568, %v1567
        %v1969 = vpack.c.bf16 %v1570, %v1569
        %v1970 = vpack.c.bf16 %v1572, %v1571
        %v1971 = vpack.c.bf16 %v1574, %v1573
        %v1972 = vpack.c.bf16 %v1576, %v1575
        %v1973 = vpack.c.bf16 %v1578, %v1577
        %v1974 = vpack.c.bf16 %v1580, %v1579
        %v1975 = vpack.c.bf16 %v1582, %v1581
        %v1976 = vpack.c.bf16 %v1584, %v1583
        %v1977 = vpack.c.bf16 %v1586, %v1585
        %v1978 = vpack.c.bf16 %v1588, %v1587
        %v1979 = vpack.c.bf16 %v1590, %v1589
        %v1980 = vpack.c.bf16 %v1592, %v1591
        %v1981 = vpack.c.bf16 %v1594, %v1593
        %v1982 = vpack.c.bf16 %v1596, %v1595
        %v1983 = vpack.c.bf16 %v1598, %v1597
        %v1984 = vpack.c.bf16 %v1600, %v1599
        %v1985 = vpack.c.bf16 %v1602, %v1601
        %v1986 = vpack.c.bf16 %v1604, %v1603
        %v1987 = vpack.c.bf16 %v1606, %v1605
        %v1988 = vpack.c.bf16 %v1608, %v1607
        %v1989 = vpack.c.bf16 %v1610, %v1609
        %v1990 = vpack.c.bf16 %v1612, %v1611
        %v1991 = vpack.c.bf16 %v1614, %v1613
        %v1992 = vpack.c.bf16 %v1616, %v1615
        %v1993 = vpack.c.bf16 %v1618, %v1617
        %v1994 = vpack.c.bf16 %v1620, %v1619
        %v1995 = vpack.c.bf16 %v1622, %v1621
        %v1996 = vpack.c.bf16 %v1624, %v1623
        %v1997 = vpack.c.bf16 %v1626, %v1625
        %v1998 = vpack.c.bf16 %v1628, %v1627
        %v1999 = vpack.c.bf16 %v1630, %v1629
        %v2000 = vpack.c.bf16 %v1632, %v1631
        %v2001 = vpack.c.bf16 %v1634, %v1633
        %v2002 = vpack.c.bf16 %v1636, %v1635
        %v2003 = vpack.c.bf16 %v1638, %v1637
        %v2004 = vpack.c.bf16 %v1640, %v1639
        %v2005 = vpack.c.bf16 %v1642, %v1641
        %v2006 = vpack.c.bf16 %v1644, %v1643
        %v2007 = vpack.c.bf16 %v1646, %v1645
        %v2008 = vpack.c.bf16 %v1648, %v1647
        %v2010 = vperm.slane %v1656, 0
        %2012 = vmatpush.bf16.msra.mxu0 %v1952
        %2013 = vmatpush.bf16.msra.mxu0 %v1951
        %2014 = vmatpush.bf16.msra.mxu0 %v1950
        %2015 = vmatpush.bf16.msra.mxu0 %v1949
        %2016 = vmatpush.bf16.msra.mxu0 %v1948
        %2017 = vmatpush.bf16.msra.mxu0 %v1947
        %2018 = vmatpush.bf16.msra.mxu0 %v1946
        %2019 = vmatpush.bf16.msra.mxu0 %v1945
        %2020 = vmatmul.bf16.gmra.mxu0 %v1937
        %v2021 = vpop.f32.mrf.mxu0
        %v2022 = vadd.f32 %v2010, %v2021
        %v2023 = vpop.f32.mrf.mxu0
        %2024 = vdwg.mxu0
        %2025 = vmatpush.bf16.msra.mxu0 %v1960
        %2026 = vmatpush.bf16.msra.mxu0 %v1959
        %2027 = vmatpush.bf16.msra.mxu0 %v1958
        %2028 = vmatpush.bf16.msra.mxu0 %v1957
        %2029 = vmatpush.bf16.msra.mxu0 %v1956
        %2030 = vmatpush.bf16.msra.mxu0 %v1955
        %2031 = vmatpush.bf16.msra.mxu0 %v1954
        %2032 = vmatpush.bf16.msra.mxu0 %v1953
        %2033 = vmatmul.bf16.gmra.mxu0 %v1938
        %v2034 = vpop.f32.mrf.mxu0
        %v2035 = vadd.f32 %v2022, %v2034
        %v2036 = vpop.f32.mrf.mxu0
        %2037 = vdwg.mxu0
        %2038 = vmatpush.bf16.msra.mxu0 %v1968
        %2039 = vmatpush.bf16.msra.mxu0 %v1967
        %2040 = vmatpush.bf16.msra.mxu0 %v1966
        %2041 = vmatpush.bf16.msra.mxu0 %v1965
        %2042 = vmatpush.bf16.msra.mxu0 %v1964
        %2043 = vmatpush.bf16.msra.mxu0 %v1963
        %2044 = vmatpush.bf16.msra.mxu0 %v1962
        %2045 = vmatpush.bf16.msra.mxu0 %v1961
        %2046 = vmatmul.bf16.gmra.mxu0 %v1939
        %v2047 = vpop.f32.mrf.mxu0
        %v2048 = vadd.f32 %v2035, %v2047
        %v2049 = vpop.f32.mrf.mxu0
        %2050 = vdwg.mxu0
        %2051 = vmatpush.bf16.msra.mxu0 %v1976
        %2052 = vmatpush.bf16.msra.mxu0 %v1975
        %2053 = vmatpush.bf16.msra.mxu0 %v1974
        %2054 = vmatpush.bf16.msra.mxu0 %v1973
        %2055 = vmatpush.bf16.msra.mxu0 %v1972
        %2056 = vmatpush.bf16.msra.mxu0 %v1971
        %2057 = vmatpush.bf16.msra.mxu0 %v1970
        %2058 = vmatpush.bf16.msra.mxu0 %v1969
        %2059 = vmatmul.bf16.gmra.mxu0 %v1940
        %v2060 = vpop.f32.mrf.mxu0
        %v2061 = vadd.f32 %v2048, %v2060
        %v2062 = vpop.f32.mrf.mxu0
        %2063 = vdwg.mxu0
        %2064 = vmatpush.bf16.msra.mxu0 %v1984
        %2065 = vmatpush.bf16.msra.mxu0 %v1983
        %2066 = vmatpush.bf16.msra.mxu0 %v1982
        %2067 = vmatpush.bf16.msra.mxu0 %v1981
        %2068 = vmatpush.bf16.msra.mxu0 %v1980
        %2069 = vmatpush.bf16.msra.mxu0 %v1979
        %2070 = vmatpush.bf16.msra.mxu0 %v1978
        %2071 = vmatpush.bf16.msra.mxu0 %v1977
        %2072 = vmatmul.bf16.gmra.mxu0 %v1941
        %v2073 = vpop.f32.mrf.mxu0
        %v2074 = vadd.f32 %v2061, %v2073
        %v2075 = vpop.f32.mrf.mxu0
        %2076 = vdwg.mxu0
        %2077 = vmatpush.bf16.msra.mxu0 %v1992
        %2078 = vmatpush.bf16.msra.mxu0 %v1991
        %2079 = vmatpush.bf16.msra.mxu0 %v1990
        %2080 = vmatpush.bf16.msra.mxu0 %v1989
        %2081 = vmatpush.bf16.msra.mxu0 %v1988
        %2082 = vmatpush.bf16.msra.mxu0 %v1987
        %2083 = vmatpush.bf16.msra.mxu0 %v1986
        %2084 = vmatpush.bf16.msra.mxu0 %v1985
        %2085 = vmatmul.bf16.gmra.mxu0 %v1942
        %v2086 = vpop.f32.mrf.mxu0
        %v2087 = vadd.f32 %v2074, %v2086
        %v2088 = vpop.f32.mrf.mxu0
        %2089 = vdwg.mxu0
        %2090 = vmatpush.bf16.msra.mxu0 %v2000
        %2091 = vmatpush.bf16.msra.mxu0 %v1999
        %2092 = vmatpush.bf16.msra.mxu0 %v1998
        %2093 = vmatpush.bf16.msra.mxu0 %v1997
        %2094 = vmatpush.bf16.msra.mxu0 %v1996
        %2095 = vmatpush.bf16.msra.mxu0 %v1995
        %2096 = vmatpush.bf16.msra.mxu0 %v1994
        %2097 = vmatpush.bf16.msra.mxu0 %v1993
        %2098 = vmatmul.bf16.gmra.mxu0 %v1943
        %v2099 = vpop.f32.mrf.mxu0
        %v2100 = vadd.f32 %v2087, %v2099
        %v2101 = vpop.f32.mrf.mxu0
        %2102 = vdwg.mxu0
        %2103 = vmatpush.bf16.msra.mxu0 %v2008
        %2104 = vmatpush.bf16.msra.mxu0 %v2007
        %2105 = vmatpush.bf16.msra.mxu0 %v2006
        %2106 = vmatpush.bf16.msra.mxu0 %v2005
        %2107 = vmatpush.bf16.msra.mxu0 %v2004
        %2108 = vmatpush.bf16.msra.mxu0 %v2003
        %2109 = vmatpush.bf16.msra.mxu0 %v2002
        %2110 = vmatpush.bf16.msra.mxu0 %v2001
        %2111 = vmatmul.bf16.gmra.mxu0 %v1944
        %v2112 = vpop.f32.mrf.mxu0
        %v2113 = vadd.f32 %v2100, %v2112
        %v2114 = vpop.f32.mrf.mxu0
        %2115 = vdwg.mxu0
        %v2116 = vmax.f32 %v2113, 0.0
        %v2117 = vpack.c.bf16 %v2116, %v2116
        %v2118 = vpack.c.bf16 %v1770, %v1769
        %v2119 = vpack.c.bf16 %v1772, %v1771
        %v2120 = vpack.c.bf16 %v1774, %v1773
        %v2121 = vpack.c.bf16 %v1776, %v1775
        %v2122 = vpack.c.bf16 %v1778, %v1777
        %v2123 = vpack.c.bf16 %v1780, %v1779
        %v2124 = vpack.c.bf16 %v1782, %v1781
        %v2125 = vpack.c.bf16 %v1784, %v1783
        %v2127 = vperm.slane %v1792, 0
        %2129 = vmatpush.bf16.msra.mxu0 %v2125
        %2130 = vmatpush.bf16.msra.mxu0 %v2124
        %2131 = vmatpush.bf16.msra.mxu0 %v2123
        %2132 = vmatpush.bf16.msra.mxu0 %v2122
        %2133 = vmatpush.bf16.msra.mxu0 %v2121
        %2134 = vmatpush.bf16.msra.mxu0 %v2120
        %2135 = vmatpush.bf16.msra.mxu0 %v2119
        %2136 = vmatpush.bf16.msra.mxu0 %v2118
        %2137 = vmatmul.bf16.gmra.mxu0 %v2117
        %v2138 = vpop.f32.mrf.mxu0
        %v2139 = vadd.f32 %v2127, %v2138
        %v2140 = vpop.f32.mrf.mxu0
        %2141 = vdwg.mxu0
        %v2142 = vmax.f32 %v2139, 0.0
        %v2143 = vpack.c.bf16 %v2142, %v2142
        %v2144 = vpack.c.bf16 %v1906, %v1905
        %v2145 = vpack.c.bf16 %v1908, %v1907
        %v2146 = vpack.c.bf16 %v1910, %v1909
        %v2147 = vpack.c.bf16 %v1912, %v1911
        %v2148 = vpack.c.bf16 %v1914, %v1913
        %v2149 = vpack.c.bf16 %v1916, %v1915
        %v2150 = vpack.c.bf16 %v1918, %v1917
        %v2151 = vpack.c.bf16 %v1920, %v1919
        %v2153 = vperm.slane %v1928, 0
        %2155 = vmatpush.bf16.msra.mxu0 %v2151
        %2156 = vmatpush.bf16.msra.mxu0 %v2150
        %2157 = vmatpush.bf16.msra.mxu0 %v2149
        %2158 = vmatpush.bf16.msra.mxu0 %v2148
        %2159 = vmatpush.bf16.msra.mxu0 %v2147
        %2160 = vmatpush.bf16.msra.mxu0 %v2146
        %2161 = vmatpush.bf16.msra.mxu0 %v2145
        %2162 = vmatpush.bf16.msra.mxu0 %v2144
        %2163 = vmatmul.bf16.gmra.mxu0 %v2143
        %v2164 = vpop.f32.mrf.mxu0
        %v2165 = vadd.f32 %v2153, %v2164
        %v2166 = vpop.f32.mrf.mxu0
        %2167 = vdwg.mxu0
        %v2168 = vmul.f32 %v2165, %v2165
        %2169 = vadd.xlane.f32.xlu0 %v2168
        %v2170 = vpop.xlane.xlu0 %2169
        %v2171 = vmax.f32 %v2170, 1e-24
        %v2172 = vrsqrt.pop %v2171
        %v2173 = vmul.f32 %v2172, %v2171
        %v2174 = vmul.f32 %v2173, %v2172
        %v2175 = vmul.f32 0.5, %v2174
        %v2176 = vsub.f32 1.5, %v2175
        %v2177 = vmul.f32 %v2172, %v2176
        %vm2178 = vweird.f32 %v2171
        %vm2179 = vweird.f32 %v2172
        %vm2180 = vmor %vm2178, %vm2179
        %v2181 = vsel %vm2180, %v2172, %v2177
        %v2182 = vmul.f32 %v2165, %v2181
        %2183 = vst [vmem:[%s621] sm:$0xff] %v2182
        %p2184 = scmp.lt.s32.totalorder %s37, 1
        %s2185 = scalar_select %p2184, %s37, 1
        %s2186 = smul.addr %s2185, 8
        %s2187 = scalar_lea.vmem %s13, %s2186
        // Predicated region
        $region81: #{moco_forward.2} parent=71 // pred_check
          %p2188 = pneg %p333
        $region82: #{moco_forward.2} parent=71 // pred_check_branch
          %2190 = sbr.rel (%p2188) target = $region84
        $region83: #{moco_forward.2} parent=71 // pred_region
          _
        $region84: #{moco_forward.2} parent=71 // pred_fallthru
          _
        // Predicated region
        $region85: #{moco_forward.2} parent=71 // pred_check
          %p2191 = pneg %p354
        $region86: #{moco_forward.2} parent=71 // pred_check_branch
          %2193 = sbr.rel (%p2191) target = $region88
        $region87: #{moco_forward.2} parent=71 // pred_region
          %2195 = vsyncadd [#allocation4], 0
          %s2196 = sshll.u32 [#allocation7], 4
          %s2197 = int_to_ptr.vmem [resolvable:$true] %s2196
          %s2198 = sshll.u32 %s14, 4
          %s2199 = int_to_ptr.hbm [resolvable:$true] %s2198
          %2204 = dma.vmem_to_hbm [thread:$0]  %s2197, 16384, %s2199, [#allocation4], 128, 128, 8
        $region88: #{moco_forward.2} parent=71 // pred_fallthru
          _
        // Predicated region
        $region89: #{moco_forward.2} parent=71 // pred_check
          %p2205 = pneg %p375
        $region90: #{moco_forward.2} parent=71 // pred_check_branch
          %2207 = sbr.rel (%p2205) target = $region92
        $region91: #{moco_forward.2} parent=71 // pred_region
          %2209 = vsyncadd [#allocation9], 0
          %s2211 = sshll.u32 [#allocation8], 4
          %s2212 = int_to_ptr.vmem [resolvable:$true] %s2211
          %s2213 = sshll.u32 %s15, 4
          %s2214 = int_to_ptr.hbm [resolvable:$true] %s2213
          %2216 = dma.vmem_to_hbm [thread:$0]  %s2212, 16, %s2214, [#allocation9]
        $region92: #{moco_forward.2} parent=71 // pred_fallthru
          _
        // Predicated region
        $region93: #{moco_forward.2} parent=71 // pred_check
          %p2217 = pneg %p396
        $region94: #{moco_forward.2} parent=71 // pred_check_branch
          %2219 = sbr.rel (%p2217) target = $region96
        $region95: #{moco_forward.2} parent=71 // pred_region
          %2221 = vsyncadd [#allocation9], 0
          %s2222 = sshll.u32 [#allocation10], 4
          %s2223 = int_to_ptr.vmem [resolvable:$true] %s2222
          %s2224 = sshll.u32 %s16, 4
          %s2225 = int_to_ptr.hbm [resolvable:$true] %s2224
          %2230 = dma.vmem_to_hbm [thread:$0]  %s2223, 2048, %s2225, [#allocation9], 128, 128, 8
        $region96: #{moco_forward.2} parent=71 // pred_fallthru
          _
        // Predicated region
        $region97: #{moco_forward.2} parent=71 // pred_check
          %p2231 = pneg %p417
        $region98: #{moco_forward.2} parent=71 // pred_check_branch
          %2233 = sbr.rel (%p2231) target = $region100
        $region99: #{moco_forward.2} parent=71 // pred_region
          %2235 = vsyncadd [#allocation12], 0
          %s2237 = sshll.u32 [#allocation11], 4
          %s2238 = int_to_ptr.vmem [resolvable:$true] %s2237
          %s2239 = sshll.u32 %s17, 4
          %s2240 = int_to_ptr.hbm [resolvable:$true] %s2239
          %2242 = dma.vmem_to_hbm [thread:$0]  %s2238, 16, %s2240, [#allocation12]
        $region100: #{moco_forward.2} parent=71 // pred_fallthru
          _
        // Predicated region
        $region101: #{moco_forward.2} parent=71 // pred_check
          %p2243 = pneg %p438
        $region102: #{moco_forward.2} parent=71 // pred_check_branch
          %2245 = sbr.rel (%p2243) target = $region104
        $region103: #{moco_forward.2} parent=71 // pred_region
          %2247 = vsyncadd [#allocation12], 0
          %s2248 = sshll.u32 [#allocation13], 4
          %s2249 = int_to_ptr.vmem [resolvable:$true] %s2248
          %s2250 = sshll.u32 %s18, 4
          %s2251 = int_to_ptr.hbm [resolvable:$true] %s2250
          %2256 = dma.vmem_to_hbm [thread:$0]  %s2249, 2048, %s2251, [#allocation12], 128, 128, 8
        $region104: #{moco_forward.2} parent=71 // pred_fallthru
          _
        // Predicated region
        $region105: #{moco_forward.2} parent=71 // pred_check
          %p2257 = pneg %p459
        $region106: #{moco_forward.2} parent=71 // pred_check_branch
          %2259 = sbr.rel (%p2257) target = $region108
        $region107: #{moco_forward.2} parent=71 // pred_region
          %2261 = vsyncadd [#allocation15], 0
          %s2263 = sshll.u32 [#allocation14], 4
          %s2264 = int_to_ptr.vmem [resolvable:$true] %s2263
          %s2265 = sshll.u32 %s19, 4
          %s2266 = int_to_ptr.hbm [resolvable:$true] %s2265
          %2268 = dma.vmem_to_hbm [thread:$0]  %s2264, 16, %s2266, [#allocation15]
        $region108: #{moco_forward.2} parent=71 // pred_fallthru
          _
        // Predicated region
        $region109: #{moco_forward.2} parent=71 // pred_check
          %p2269 = pneg %p354
        $region110: #{moco_forward.2} parent=71 // pred_check_branch
          %2271 = sbr.rel (%p2269) target = $region112
        $region111: #{moco_forward.2} parent=71 // pred_region
          %2273 = dma.done [#allocation4], 16384
        $region112: #{moco_forward.2} parent=71 // pred_fallthru
          _
        // Predicated region
        $region113: #{moco_forward.2} parent=71 // pred_check
          %p2274 = pneg %p375
        $region114: #{moco_forward.2} parent=71 // pred_check_branch
          %2276 = sbr.rel (%p2274) target = $region116
        $region115: #{moco_forward.2} parent=71 // pred_region
          %2278 = dma.done [#allocation9], 16
        $region116: #{moco_forward.2} parent=71 // pred_fallthru
          _
        // Predicated region
        $region117: #{moco_forward.2} parent=71 // pred_check
          %p2279 = pneg %p396
        $region118: #{moco_forward.2} parent=71 // pred_check_branch
          %2281 = sbr.rel (%p2279) target = $region120
        $region119: #{moco_forward.2} parent=71 // pred_region
          %2283 = dma.done [#allocation9], 2048
        $region120: #{moco_forward.2} parent=71 // pred_fallthru
          _
        // Predicated region
        $region121: #{moco_forward.2} parent=71 // pred_check
          %p2284 = pneg %p417
        $region122: #{moco_forward.2} parent=71 // pred_check_branch
          %2286 = sbr.rel (%p2284) target = $region124
        $region123: #{moco_forward.2} parent=71 // pred_region
          %2288 = dma.done [#allocation12], 16
        $region124: #{moco_forward.2} parent=71 // pred_fallthru
          _
        // Predicated region
        $region125: #{moco_forward.2} parent=71 // pred_check
          %p2289 = pneg %p438
        $region126: #{moco_forward.2} parent=71 // pred_check_branch
          %2291 = sbr.rel (%p2289) target = $region128
        $region127: #{moco_forward.2} parent=71 // pred_region
          %2293 = dma.done [#allocation12], 2048
        $region128: #{moco_forward.2} parent=71 // pred_fallthru
          _
        // Predicated region
        $region129: #{moco_forward.2} parent=71 // pred_check
          %p2294 = pneg %p459
        $region130: #{moco_forward.2} parent=71 // pred_check_branch
          %2296 = sbr.rel (%p2294) target = $region132
        $region131: #{moco_forward.2} parent=71 // pred_region
          %2298 = dma.done [#allocation15], 16
        $region132: #{moco_forward.2} parent=71 // pred_fallthru
          _
      $region72: #{moco_forward.2} parent=5 // pred_fallthru
        _
      %p2299 = scmp.le.s32.totalorder 2, %s32
      // Predicated region
      $region133: #{moco_forward.2} parent=5 // pred_check
        %p2300 = pneg %p2299
      $region134: #{moco_forward.2} parent=5 // pred_check_branch
        %2302 = sbr.rel (%p2300) target = $region136
      $region135: #{moco_forward.2} parent=5 // pred_region
        %s2303 = ssub.s32 %s32, 2
        // Predicated region
        $region137: #{moco_forward.2} parent=135 // pred_check
          %p2304 = pneg %p339
        $region138: #{moco_forward.2} parent=135 // pred_check_branch
          %2306 = sbr.rel (%p2304) target = $region140
        $region139: #{moco_forward.2} parent=135 // pred_region
          %p2307 = scmp.lt.s32.totalorder %s38, 1
          %s2308 = scalar_select %p2307, %s38, 1
          %s2309 = smul.addr %s2308, 8
          %s2310 = scalar_lea.vmem %s13, %s2309
        $region140: #{moco_forward.2} parent=135 // pred_fallthru
          _
      $region136: #{moco_forward.2} parent=5 // pred_fallthru
        _
    $region6: #{moco_forward.2} parent=1 // loop_footer
      %s36 = sadd.s32 1, %s32
    $region7: #{moco_forward.2} parent=1 // loop_footer_branch
      %31 = sbr.rel target = $region3
    $region8: #{moco_forward.2} parent=1 // loop_exit
      _
    %2311 = vsyncpa [#allocation3], 1
    %s2312 = scalar_lea.sflag [#allocation3], 1
    %2313 = vsyncpa %s2312, 1
    %2314 = vsyncpa [#allocation6], 1
    %2315 = vsyncpa [#allocation4], 1
    %s2316 = scalar_lea.sflag [#allocation4], 1
    %2317 = vsyncpa %s2316, 1
    %2318 = vsyncpa [#allocation9], 1
    %2319 = vsyncpa [#allocation12], 1
    %2320 = vsyncpa [#allocation15], 1

</llo_original>
